<compile_context>
chip_gen: v6e
topology: v6e:2x2x1
jax: 0.10.0
libtpu: 0.0.40
codegen_flags: <defaults>
</compile_context>

<pallas_src>
import math

import jax
import jax.numpy as jnp
from jax.experimental import pallas as pl
from jax.experimental.pallas import tpu as pltpu

BN_EPS = 1e-5
CPAD = 128                      # conv output channels padded to one full lane width
TM_MAX = 256                    # M tile (rows of the im2col GEMM); conservative for v7x VMEM
VMEM_LIMIT = 48 * 1024 * 1024   # explicit scoped-VMEM cap (above 32 MiB default, < 64 MiB v7x)

IMAGENET_MEAN = jnp.array([0.485, 0.456, 0.406], jnp.float32)
IMAGENET_STD = jnp.array([0.229, 0.224, 0.225], jnp.float32)


def _round_up(a, b):
    return (a + b - 1) // b * b


# ----------------------------- Pallas kernels ------------------------------------------


def _normalize_kernel(x_ref, scale_ref, shift_ref, o_ref):
    # Per-(image, channel) affine: one grid step = one (1, 1, H*W) row, scalars from SMEM.
    i = pl.program_id(0)
    o_ref[...] = x_ref[...] * scale_ref[i] + shift_ref[i]


def _conv_gemm_bn_relu_kernel(pat_ref, w_ref, scale_ref, shift_ref, o_ref):
    # conv (im2col GEMM, bf16 operands, f32 accumulate) -> folded eval-BN -> ReLU.
    acc = jnp.dot(pat_ref[...], w_ref[...], preferred_element_type=jnp.float32)
    y = acc * scale_ref[...] + shift_ref[...]
    o_ref[...] = jnp.maximum(y, 0.0).astype(o_ref.dtype)


def _conv_gemm_bn_add_relu_kernel(pat_ref, w_ref, scale_ref, shift_ref, res_ref, o_ref):
    # Same as above + fused residual add (BasicBlock second conv) before the ReLU.
    acc = jnp.dot(pat_ref[...], w_ref[...], preferred_element_type=jnp.float32)
    y = acc * scale_ref[...] + shift_ref[...] + res_ref[...]
    o_ref[...] = jnp.maximum(y, 0.0).astype(o_ref.dtype)


def _maxpool3x3_dense_kernel(x_ref, o_ref):
    # Dense (stride-1) 3x3 max over a -inf padded image; stride-2 phase picked in wrapper.
    x = x_ref[...]                        # (1, Hp, Wp, C)
    H, W = o_ref.shape[1], o_ref.shape[2]
    m = x[0, 0:H, 0:W, :]
    for kh in range(3):
        for kw in range(3):
            if kh == 0 and kw == 0:
                continue
            m = jnp.maximum(m, x[0, kh:kh + H, kw:kw + W, :])
    o_ref[0] = m


# ----------------------------- wrappers -------------------------------------------------


def normalize_pallas(x, mean, std):
    """(x - mean_c) / std_c on NCHW input, as a Pallas per-row affine kernel."""
    N, C, H, W = x.shape
    HW = H * W
    scale = (1.0 / std).astype(jnp.float32)
    shift = (-mean / std).astype(jnp.float32)
    if HW % 128 != 0:
        # lane-dim not 128-aligned: fall back to trivial elementwise glue
        return x * scale[None, :, None, None] + shift[None, :, None, None]
    xr = x.reshape(N * C, 1, HW)
    scale_r = jnp.tile(scale, N)          # row i = (n*C + c) -> channel c
    shift_r = jnp.tile(shift, N)
    out = pl.pallas_call(
        _normalize_kernel,
        out_shape=jax.ShapeDtypeStruct((N * C, 1, HW), jnp.float32),
        grid_spec=pltpu.PrefetchScalarGridSpec(
            num_scalar_prefetch=0,
            grid=(N * C,),
            in_specs=[
                pl.BlockSpec((1, 1, HW), lambda i: (i, 0, 0)),
                pl.BlockSpec(memory_space=pltpu.MemorySpace.SMEM),
                pl.BlockSpec(memory_space=pltpu.MemorySpace.SMEM),
            ],
            out_specs=pl.BlockSpec((1, 1, HW), lambda i: (i, 0, 0)),
        ),
        compiler_params=pltpu.CompilerParams(
            dimension_semantics=("parallel",), vmem_limit_bytes=VMEM_LIMIT),
    )(xr, scale_r, shift_r)
    return out.reshape(N, C, H, W)


def _im2col_nhwc(x_bf16, ksize, stride, padding):
    """NHWC bf16 -> (N*OH*OW, ksize*ksize*Cin) bf16 patches.

    Built by channel-concatenation of shifted strided views; the final reshape only merges
    leading dims (no HBM transpose shuffle)."""
    N, H, W, Cin = x_bf16.shape
    OH = (H + 2 * padding - ksize) // stride + 1
    OW = (W + 2 * padding - ksize) // stride + 1
    xp = jnp.pad(x_bf16, ((0, 0), (padding, padding), (padding, padding), (0, 0)))
    taps = []
    for kh in range(ksize):
        for kw in range(ksize):
            taps.append(xp[:, kh:kh + OH * stride:stride, kw:kw + OW * stride:stride, :])
    pat = jnp.concatenate(taps, axis=-1)                 # (N, OH, OW, K)
    return pat.reshape(N * OH * OW, ksize * ksize * Cin), OH, OW


def _conv_bn_act(pat, w_kc, scale, shift, residual=None):
    """Tiled, pipelined im2col GEMM + folded-BN (+ residual) + ReLU. Returns (M, CPAD) f32."""
    M, K = pat.shape
    tm = min(TM_MAX, _round_up(M, 8))
    M_pad = _round_up(M, tm)
    if M_pad != M:
        pat = jnp.pad(pat, ((0, M_pad - M), (0, 0)))
        if residual is not None:
            residual = jnp.pad(residual, ((0, M_pad - M), (0, 0)))

    in_specs = [
        pl.BlockSpec((tm, K), lambda i: (i, 0)),         # patch tile (bf16)
        pl.BlockSpec((K, CPAD), lambda i: (0, 0)),       # weights (bf16, resident)
        pl.BlockSpec((1, CPAD), lambda i: (0, 0)),       # folded BN scale
        pl.BlockSpec((1, CPAD), lambda i: (0, 0)),       # folded BN shift
    ]
    args = [pat, w_kc, scale, shift]
    if residual is None:
        kernel = _conv_gemm_bn_relu_kernel
    else:
        kernel = _conv_gemm_bn_add_relu_kernel
        in_specs.append(pl.BlockSpec((tm, CPAD), lambda i: (i, 0)))
        args.append(residual)

    out = pl.pallas_call(
        kernel,
        out_shape=jax.ShapeDtypeStruct((M_pad, CPAD), jnp.float32),
        grid_spec=pltpu.PrefetchScalarGridSpec(
            num_scalar_prefetch=0,
            grid=(M_pad // tm,),
            in_specs=in_specs,
            out_specs=pl.BlockSpec((tm, CPAD), lambda i: (i, 0)),
        ),
        compiler_params=pltpu.CompilerParams(
            dimension_semantics=("parallel",),           # tiles independent (eval-mode BN)
            vmem_limit_bytes=VMEM_LIMIT),
    )(*args)
    return out[:M]


def _conv_layer(x_nhwc, w_kc, scale, shift, *, ksize, stride, padding, cin, residual=None):
    """One conv + eval-BN + ReLU (+ fused residual add). Input/output NHWC, C padded to 128."""
    N = x_nhwc.shape[0]
    x_bf16 = x_nhwc[..., :cin].astype(jnp.bfloat16)      # drop zero pad-channels, bf16 MXU feed
    pat, OH, OW = _im2col_nhwc(x_bf16, ksize, stride, padding)
    res_flat = None
    if residual is not None:
        res_flat = residual.reshape(N * OH * OW, CPAD)
    out = _conv_bn_act(pat, w_kc, scale, shift, residual=res_flat)
    return out.reshape(N, OH, OW, CPAD)


def _maxpool_3x3_s2_p1(x_nhwc):
    """MaxPool2d(kernel=3, stride=2, padding=1) on NHWC (C = CPAD)."""
    N, H, W, C = x_nhwc.shape
    OH = (H + 2 - 3) // 2 + 1
    OW = (W + 2 - 3) // 2 + 1
    xp = jnp.pad(x_nhwc, ((0, 0), (1, 1), (1, 1), (0, 0)), constant_values=-jnp.inf)
    Hp, Wp = H + 2, W + 2
    dense = pl.pallas_call(
        _maxpool3x3_dense_kernel,
        out_shape=jax.ShapeDtypeStruct((N, H, W, C), jnp.float32),
        grid_spec=pltpu.PrefetchScalarGridSpec(
            num_scalar_prefetch=0,
            grid=(N,),
            in_specs=[pl.BlockSpec((1, Hp, Wp, C), lambda n: (n, 0, 0, 0))],
            out_specs=pl.BlockSpec((1, H, W, C), lambda n: (n, 0, 0, 0)),
        ),
        compiler_params=pltpu.CompilerParams(
            dimension_semantics=("parallel",), vmem_limit_bytes=VMEM_LIMIT),
    )(xp)
    # stride-2 phase selection (window centers at even dense indices) - plain-JAX glue.
    return dense[:, 0:2 * OH:2, 0:2 * OW:2, :]


# ----------------------------- parameters ------------------------------------------------


def _fold_bn(gamma, beta, running_mean, running_var):
    """Eval-mode BatchNorm folded into per-channel scale/shift, padded to CPAD lanes."""
    scale = gamma / jnp.sqrt(running_var + BN_EPS)
    shift = beta - running_mean * scale
    scale = jnp.pad(scale, (0, CPAD - scale.shape[0])).reshape(1, CPAD).astype(jnp.float32)
    shift = jnp.pad(shift, (0, CPAD - shift.shape[0])).reshape(1, CPAD).astype(jnp.float32)
    return scale, shift


def _prep_weight(w):
    """(Cout, Cin, KH, KW) -> (KH*KW*Cin, CPAD) bf16, matching the im2col (kh, kw, cin) order."""
    Cout, Cin, KH, KW = w.shape
    wk = jnp.transpose(w, (2, 3, 1, 0)).reshape(KH * KW * Cin, Cout)
    wk = jnp.pad(wk, ((0, 0), (0, CPAD - Cout)))
    return wk.astype(jnp.bfloat16)


def make_params(key):
    def conv_w(k, cout, cin, ks):
        std = math.sqrt(2.0 / (cin * ks * ks))
        return std * jax.random.normal(k, (cout, cin, ks, ks), jnp.float32)

    def bn_stats(k, c):
        k1, k2, k3, k4 = jax.random.split(k, 4)
        gamma = jax.random.uniform(k1, (c,), jnp.float32, minval=0.5, maxval=1.5)
        beta = 0.1 * jax.random.normal(k2, (c,), jnp.float32)
        rmean = 0.1 * jax.random.normal(k3, (c,), jnp.float32)
        rvar = jax.random.uniform(k4, (c,), jnp.float32, minval=0.5, maxval=1.5)
        return gamma, beta, rmean, rvar

    keys = jax.random.split(key, 10)
    params = {
        "conv1_w": _prep_weight(conv_w(keys[0], 64, 3, 7)),
        "bn1": _fold_bn(*bn_stats(keys[1], 64)),
    }
    for b in range(2):  # layer1: two BasicBlocks (stride 1, no downsample)
        params[f"l1b{b}_conv1_w"] = _prep_weight(conv_w(keys[2 + 4 * b], 64, 64, 3))
        params[f"l1b{b}_bn1"] = _fold_bn(*bn_stats(keys[3 + 4 * b], 64))
        params[f"l1b{b}_conv2_w"] = _prep_weight(conv_w(keys[4 + 4 * b], 64, 64, 3))
        params[f"l1b{b}_bn2"] = _fold_bn(*bn_stats(keys[5 + 4 * b], 64))
    return params


# ----------------------------- full forward ----------------------------------------------


def feature_extractor_forward(x, params):
    """x: (N, 3, H, W) f32. Returns (layer1_out, features) like FeatureExtractorResNet18."""
    features = {}
    # ImageNet normalization
    x_norm = normalize_pallas(x, IMAGENET_MEAN, IMAGENET_STD)           # NCHW f32
    features["normalize"] = x_norm

    x_nhwc = jnp.transpose(x_norm, (0, 2, 3, 1))                        # (N, H, W, 3)

    # conv1 (7x7 / stride 2 / pad 3) + bn1 + relu
    s1, b1 = params["bn1"]
    c1 = _conv_layer(x_nhwc, params["conv1_w"], s1, b1,
                     ksize=7, stride=2, padding=3, cin=3)               # (N, H/2, W/2, 128)
    features["conv1"] = jnp.transpose(c1[..., :64], (0, 3, 1, 2))

    # maxpool (3x3 / stride 2 / pad 1)
    h = _maxpool_3x3_s2_p1(c1)                                          # (N, H/4, W/4, 128)

    # layer1: BasicBlock x2: relu(bn2(conv2(relu(bn1(conv1(x))))) + x)
    for b in range(2):
        sa, ba = params[f"l1b{b}_bn1"]
        sb, bb = params[f"l1b{b}_bn2"]
        y = _conv_layer(h, params[f"l1b{b}_conv1_w"], sa, ba,
                        ksize=3, stride=1, padding=1, cin=64)
        h = _conv_layer(y, params[f"l1b{b}_conv2_w"], sb, bb,
                        ksize=3, stride=1, padding=1, cin=64, residual=h)

    layer1 = jnp.transpose(h[..., :64], (0, 3, 1, 2))
    features["layer1"] = layer1
    return layer1, features


if __name__ == "__main__":
    key = jax.random.PRNGKey(0)
    kx, kp = jax.random.split(key)

    N, C, H, W = 2, 3, 32, 32
    x = jax.random.uniform(kx, (N, C, H, W), dtype=jnp.float32)
    params = make_params(kp)

    fwd = jax.jit(feature_extractor_forward)
    out, features = fwd(x, params)
    out = jax.block_until_ready(out)

    assert out.shape == (N, 64, H // 4, W // 4), out.shape
    assert features["normalize"].shape == (N, 3, H, W)
    assert features["conv1"].shape == (N, 64, H // 2, W // 2)
    assert features["layer1"].shape == (N, 64, H // 4, W // 4)
    assert bool(jnp.all(jnp.isfinite(out)))
    assert bool(jnp.all(features["conv1"] >= 0.0))   # ReLU
    assert bool(jnp.all(out >= 0.0))                 # ReLU
    print("KERNEL_OK")
</pallas_src>

<mosaic_0001>
module attributes {stable_mosaic.version = 11 : i64} {
  func.func @_normalize_kernel(%arg0: i32, %arg1: memref<1x1x1024xf32, #tpu.memory_space<vmem>>, %arg2: memref<6xf32, #tpu.memory_space<smem>>, %arg3: memref<6xf32, #tpu.memory_space<smem>>, %arg4: memref<1x1x1024xf32, #tpu.memory_space<vmem>>) attributes {dimension_semantics = [#tpu.dimension_semantics<parallel>], iteration_bounds = array<i64: 6>, scalar_prefetch = 0 : i64, scratch_operands = 0 : i64, tpu.core_type = #tpu.core_type<tc>, window_params = [{transform_indices = @transform_0, window_bounds = array<i64: 1, 1, 1024>}, {transform_indices = @transform_1, window_bounds = array<i64: 6>}, {transform_indices = @transform_2, window_bounds = array<i64: 6>}, {transform_indices = @transform_3, window_bounds = array<i64: 1, 1, 1024>}]} {
    %c0 = arith.constant 0 : index
    %c0_0 = arith.constant 0 : index
    %c0_1 = arith.constant 0 : index
    %0 = vector.load %arg1[%c0, %c0_0, %c0_1] : memref<1x1x1024xf32, #tpu.memory_space<vmem>>, vector<1x1x1024xf32>
    %1 = arith.index_cast %arg0 : i32 to index
    %2 = memref.load %arg2[%1] : memref<6xf32, #tpu.memory_space<smem>>
    %3 = vector.broadcast %2 : f32 to vector<1x1x1024xf32>
    %4 = arith.mulf %0, %3 : vector<1x1x1024xf32>
    %5 = arith.index_cast %arg0 : i32 to index
    %6 = memref.load %arg3[%5] : memref<6xf32, #tpu.memory_space<smem>>
    %7 = vector.broadcast %6 : f32 to vector<1x1x1024xf32>
    %8 = arith.addf %4, %7 : vector<1x1x1024xf32>
    %c0_2 = arith.constant 0 : index
    %c0_3 = arith.constant 0 : index
    %c0_4 = arith.constant 0 : index
    %9 = vector.load %arg4[%c0_2, %c0_3, %c0_4] : memref<1x1x1024xf32, #tpu.memory_space<vmem>>, vector<1x1x1024xf32>
    tpu.vector_store %arg4[%c0_2, %c0_3, %c0_4], %8 {strides = array<i32>} : memref<1x1x1024xf32, #tpu.memory_space<vmem>>, vector<1x1x1024xf32>,
    return
  }
  func.func @transform_0(%arg0: i32) -> (i32, i32, i32) {
    %c0_i32 = arith.constant 0 : i32
    %c0_i32_0 = arith.constant 0 : i32
    %c0_i32_1 = arith.constant 0 : i32
    return %arg0, %c0_i32, %c0_i32_0 : i32, i32, i32
  }
  func.func @transform_1(%arg0: i32) -> i32 {
    %c0_i32 = arith.constant 0 : i32
    %c0_i32_0 = arith.constant 0 : i32
    return %c0_i32 : i32
  }
  func.func @transform_2(%arg0: i32) -> i32 {
    %c0_i32 = arith.constant 0 : i32
    %c0_i32_0 = arith.constant 0 : i32
    return %c0_i32 : i32
  }
  func.func @transform_3(%arg0: i32) -> (i32, i32, i32) {
    %c0_i32 = arith.constant 0 : i32
    %c0_i32_0 = arith.constant 0 : i32
    %c0_i32_1 = arith.constant 0 : i32
    return %arg0, %c0_i32, %c0_i32_0 : i32, i32, i32
  }
}

module attributes {stable_mosaic.version = 11 : i64} {
  func.func @_conv_gemm_bn_relu_kernel(%arg0: i32, %arg1: memref<256x147xbf16, #tpu.memory_space<vmem>>, %arg2: memref<147x128xbf16, #tpu.memory_space<vmem>>, %arg3: memref<1x128xf32, #tpu.memory_space<vmem>>, %arg4: memref<1x128xf32, #tpu.memory_space<vmem>>, %arg5: memref<256x128xf32, #tpu.memory_space<vmem>>) attributes {dimension_semantics = [#tpu.dimension_semantics<parallel>], iteration_bounds = array<i64: 2>, scalar_prefetch = 0 : i64, scratch_operands = 0 : i64, tpu.core_type = #tpu.core_type<tc>, window_params = [{transform_indices = @transform_0, window_bounds = array<i64: 256, 147>}, {pipeline_mode = #tpu.pipeline_mode<synchronous>, transform_indices = @transform_1, window_bounds = array<i64: 147, 128>}, {pipeline_mode = #tpu.pipeline_mode<synchronous>, transform_indices = @transform_2, window_bounds = array<i64: 1, 128>}, {pipeline_mode = #tpu.pipeline_mode<synchronous>, transform_indices = @transform_3, window_bounds = array<i64: 1, 128>}, {transform_indices = @transform_4, window_bounds = array<i64: 256, 128>}]} {
    %c0 = arith.constant 0 : index
    %c0_0 = arith.constant 0 : index
    %0 = vector.load %arg1[%c0, %c0_0] : memref<256x147xbf16, #tpu.memory_space<vmem>>, vector<256x147xbf16>
    %c0_1 = arith.constant 0 : index
    %c0_2 = arith.constant 0 : index
    %1 = vector.load %arg2[%c0_1, %c0_2] : memref<147x128xbf16, #tpu.memory_space<vmem>>, vector<147x128xbf16>
    %cst = arith.constant dense<0.000000e+00> : vector<256x128xf32>
    %2 = tpu.matmul %0, %1, %cst {dimension_numbers = #tpu.dot_dimension_numbers<[1], [0], [0], [1], [0, 0, 1, 1], [], []>} : vector<256x147xbf16>, vector<147x128xbf16>, vector<256x128xf32> -> vector<256x128xf32>
    %c0_3 = arith.constant 0 : index
    %c0_4 = arith.constant 0 : index
    %3 = vector.load %arg3[%c0_3, %c0_4] : memref<1x128xf32, #tpu.memory_space<vmem>>, vector<1x128xf32>
    %4 = vector.broadcast %3 : vector<1x128xf32> to vector<256x128xf32>
    %5 = arith.mulf %2, %4 : vector<256x128xf32>
    %c0_5 = arith.constant 0 : index
    %c0_6 = arith.constant 0 : index
    %6 = vector.load %arg4[%c0_5, %c0_6] : memref<1x128xf32, #tpu.memory_space<vmem>>, vector<1x128xf32>
    %7 = vector.broadcast %6 : vector<1x128xf32> to vector<256x128xf32>
    %8 = arith.addf %5, %7 : vector<256x128xf32>
    %cst_7 = arith.constant 0.000000e+00 : f32
    %9 = vector.broadcast %cst_7 : f32 to vector<256x128xf32>
    %10 = arith.maximumf %8, %9 : vector<256x128xf32>
    %c0_8 = arith.constant 0 : index
    %c0_9 = arith.constant 0 : index
    %11 = vector.load %arg5[%c0_8, %c0_9] : memref<256x128xf32, #tpu.memory_space<vmem>>, vector<256x128xf32>
    tpu.vector_store %arg5[%c0_8, %c0_9], %10 {strides = array<i32>} : memref<256x128xf32, #tpu.memory_space<vmem>>, vector<256x128xf32>,
    return
  }
  func.func @transform_0(%arg0: i32) -> (i32, i32) {
    %c0_i32 = arith.constant 0 : i32
    %c0_i32_0 = arith.constant 0 : i32
    return %arg0, %c0_i32 : i32, i32
  }
  func.func @transform_1(%arg0: i32) -> (i32, i32) {
    %c0_i32 = arith.constant 0 : i32
    %c0_i32_0 = arith.constant 0 : i32
    %c0_i32_1 = arith.constant 0 : i32
    return %c0_i32, %c0_i32_0 : i32, i32
  }
  func.func @transform_2(%arg0: i32) -> (i32, i32) {
    %c0_i32 = arith.constant 0 : i32
    %c0_i32_0 = arith.constant 0 : i32
    %c0_i32_1 = arith.constant 0 : i32
    return %c0_i32, %c0_i32_0 : i32, i32
  }
  func.func @transform_3(%arg0: i32) -> (i32, i32) {
    %c0_i32 = arith.constant 0 : i32
    %c0_i32_0 = arith.constant 0 : i32
    %c0_i32_1 = arith.constant 0 : i32
    return %c0_i32, %c0_i32_0 : i32, i32
  }
  func.func @transform_4(%arg0: i32) -> (i32, i32) {
    %c0_i32 = arith.constant 0 : i32
    %c0_i32_0 = arith.constant 0 : i32
    return %arg0, %c0_i32 : i32, i32
  }
}

module attributes {stable_mosaic.version = 11 : i64} {
  func.func @_maxpool3x3_dense_kernel(%arg0: i32, %arg1: memref<1x18x18x128xf32, #tpu.memory_space<vmem>>, %arg2: memref<1x16x16x128xf32, #tpu.memory_space<vmem>>) attributes {dimension_semantics = [#tpu.dimension_semantics<parallel>], iteration_bounds = array<i64: 2>, scalar_prefetch = 0 : i64, scratch_operands = 0 : i64, tpu.core_type = #tpu.core_type<tc>, window_params = [{transform_indices = @transform_0, window_bounds = array<i64: 1, 18, 18, 128>}, {transform_indices = @transform_1, window_bounds = array<i64: 1, 16, 16, 128>}]} {
    %c0 = arith.constant 0 : index
    %c0_0 = arith.constant 0 : index
    %c0_1 = arith.constant 0 : index
    %c0_2 = arith.constant 0 : index
    %0 = vector.load %arg1[%c0, %c0_0, %c0_1, %c0_2] : memref<1x18x18x128xf32, #tpu.memory_space<vmem>>, vector<1x18x18x128xf32>
    %1 = vector.extract_strided_slice %0 {offsets = [0, 0, 0, 0], sizes = [1, 16, 16, 128], strides = [1, 1, 1, 1]} : vector<1x18x18x128xf32> to vector<1x16x16x128xf32>
    %2 = vector.shape_cast %1 : vector<1x16x16x128xf32> to vector<16x16x128xf32>
    %3 = vector.extract_strided_slice %0 {offsets = [0, 0, 1, 0], sizes = [1, 16, 16, 128], strides = [1, 1, 1, 1]} : vector<1x18x18x128xf32> to vector<1x16x16x128xf32>
    %4 = vector.shape_cast %3 : vector<1x16x16x128xf32> to vector<16x16x128xf32>
    %5 = arith.maximumf %2, %4 : vector<16x16x128xf32>
    %6 = vector.extract_strided_slice %0 {offsets = [0, 0, 2, 0], sizes = [1, 16, 16, 128], strides = [1, 1, 1, 1]} : vector<1x18x18x128xf32> to vector<1x16x16x128xf32>
    %7 = vector.shape_cast %6 : vector<1x16x16x128xf32> to vector<16x16x128xf32>
    %8 = arith.maximumf %5, %7 : vector<16x16x128xf32>
    %9 = vector.extract_strided_slice %0 {offsets = [0, 1, 0, 0], sizes = [1, 16, 16, 128], strides = [1, 1, 1, 1]} : vector<1x18x18x128xf32> to vector<1x16x16x128xf32>
    %10 = vector.shape_cast %9 : vector<1x16x16x128xf32> to vector<16x16x128xf32>
    %11 = arith.maximumf %8, %10 : vector<16x16x128xf32>
    %12 = vector.extract_strided_slice %0 {offsets = [0, 1, 1, 0], sizes = [1, 16, 16, 128], strides = [1, 1, 1, 1]} : vector<1x18x18x128xf32> to vector<1x16x16x128xf32>
    %13 = vector.shape_cast %12 : vector<1x16x16x128xf32> to vector<16x16x128xf32>
    %14 = arith.maximumf %11, %13 : vector<16x16x128xf32>
    %15 = vector.extract_strided_slice %0 {offsets = [0, 1, 2, 0], sizes = [1, 16, 16, 128], strides = [1, 1, 1, 1]} : vector<1x18x18x128xf32> to vector<1x16x16x128xf32>
    %16 = vector.shape_cast %15 : vector<1x16x16x128xf32> to vector<16x16x128xf32>
    %17 = arith.maximumf %14, %16 : vector<16x16x128xf32>
    %18 = vector.extract_strided_slice %0 {offsets = [0, 2, 0, 0], sizes = [1, 16, 16, 128], strides = [1, 1, 1, 1]} : vector<1x18x18x128xf32> to vector<1x16x16x128xf32>
    %19 = vector.shape_cast %18 : vector<1x16x16x128xf32> to vector<16x16x128xf32>
    %20 = arith.maximumf %17, %19 : vector<16x16x128xf32>
    %21 = vector.extract_strided_slice %0 {offsets = [0, 2, 1, 0], sizes = [1, 16, 16, 128], strides = [1, 1, 1, 1]} : vector<1x18x18x128xf32> to vector<1x16x16x128xf32>
    %22 = vector.shape_cast %21 : vector<1x16x16x128xf32> to vector<16x16x128xf32>
    %23 = arith.maximumf %20, %22 : vector<16x16x128xf32>
    %24 = vector.extract_strided_slice %0 {offsets = [0, 2, 2, 0], sizes = [1, 16, 16, 128], strides = [1, 1, 1, 1]} : vector<1x18x18x128xf32> to vector<1x16x16x128xf32>
    %25 = vector.shape_cast %24 : vector<1x16x16x128xf32> to vector<16x16x128xf32>
    %26 = arith.maximumf %23, %25 : vector<16x16x128xf32>
    %c0_3 = arith.constant 0 : index
    %c0_4 = arith.constant 0 : index
    %c0_5 = arith.constant 0 : index
    %c0_6 = arith.constant 0 : index
    %27 = vector.load %arg2[%c0_3, %c0_4, %c0_5, %c0_6] : memref<1x16x16x128xf32, #tpu.memory_space<vmem>>, vector<1x16x16x128xf32>
    %28 = vector.shape_cast %27 : vector<1x16x16x128xf32> to vector<16x16x128xf32>
    %29 = vector.shape_cast %26 : vector<16x16x128xf32> to vector<1x16x16x128xf32>
    tpu.vector_store %arg2[%c0_3, %c0_4, %c0_5, %c0_6], %29 {strides = array<i32>} : memref<1x16x16x128xf32, #tpu.memory_space<vmem>>, vector<1x16x16x128xf32>,
    return
  }
  func.func @transform_0(%arg0: i32) -> (i32, i32, i32, i32) {
    %c0_i32 = arith.constant 0 : i32
    %c0_i32_0 = arith.constant 0 : i32
    %c0_i32_1 = arith.constant 0 : i32
    %c0_i32_2 = arith.constant 0 : i32
    return %arg0, %c0_i32, %c0_i32_0, %c0_i32_1 : i32, i32, i32, i32
  }
  func.func @transform_1(%arg0: i32) -> (i32, i32, i32, i32) {
    %c0_i32 = arith.constant 0 : i32
    %c0_i32_0 = arith.constant 0 : i32
    %c0_i32_1 = arith.constant 0 : i32
    %c0_i32_2 = arith.constant 0 : i32
    return %arg0, %c0_i32, %c0_i32_0, %c0_i32_1 : i32, i32, i32, i32
  }
}

module attributes {stable_mosaic.version = 11 : i64} {
  func.func @_conv_gemm_bn_add_relu_kernel(%arg0: i32, %arg1: memref<128x576xbf16, #tpu.memory_space<vmem>>, %arg2: memref<576x128xbf16, #tpu.memory_space<vmem>>, %arg3: memref<1x128xf32, #tpu.memory_space<vmem>>, %arg4: memref<1x128xf32, #tpu.memory_space<vmem>>, %arg5: memref<128x128xf32, #tpu.memory_space<vmem>>, %arg6: memref<128x128xf32, #tpu.memory_space<vmem>>) attributes {dimension_semantics = [#tpu.dimension_semantics<parallel>], iteration_bounds = array<i64: 1>, scalar_prefetch = 0 : i64, scratch_operands = 0 : i64, tpu.core_type = #tpu.core_type<tc>, window_params = [{transform_indices = @transform_0, window_bounds = array<i64: 128, 576>}, {pipeline_mode = #tpu.pipeline_mode<synchronous>, transform_indices = @transform_1, window_bounds = array<i64: 576, 128>}, {pipeline_mode = #tpu.pipeline_mode<synchronous>, transform_indices = @transform_2, window_bounds = array<i64: 1, 128>}, {pipeline_mode = #tpu.pipeline_mode<synchronous>, transform_indices = @transform_3, window_bounds = array<i64: 1, 128>}, {transform_indices = @transform_4, window_bounds = array<i64: 128, 128>}, {transform_indices = @transform_5, window_bounds = array<i64: 128, 128>}]} {
    %c0 = arith.constant 0 : index
    %c0_0 = arith.constant 0 : index
    %0 = vector.load %arg1[%c0, %c0_0] : memref<128x576xbf16, #tpu.memory_space<vmem>>, vector<128x576xbf16>
    %c0_1 = arith.constant 0 : index
    %c0_2 = arith.constant 0 : index
    %1 = vector.load %arg2[%c0_1, %c0_2] : memref<576x128xbf16, #tpu.memory_space<vmem>>, vector<576x128xbf16>
    %cst = arith.constant dense<0.000000e+00> : vector<128x128xf32>
    %2 = tpu.matmul %0, %1, %cst {dimension_numbers = #tpu.dot_dimension_numbers<[1], [0], [0], [1], [0, 0, 1, 1], [], []>} : vector<128x576xbf16>, vector<576x128xbf16>, vector<128x128xf32> -> vector<128x128xf32>
    %c0_3 = arith.constant 0 : index
    %c0_4 = arith.constant 0 : index
    %3 = vector.load %arg3[%c0_3, %c0_4] : memref<1x128xf32, #tpu.memory_space<vmem>>, vector<1x128xf32>
    %4 = vector.broadcast %3 : vector<1x128xf32> to vector<128x128xf32>
    %5 = arith.mulf %2, %4 : vector<128x128xf32>
    %c0_5 = arith.constant 0 : index
    %c0_6 = arith.constant 0 : index
    %6 = vector.load %arg4[%c0_5, %c0_6] : memref<1x128xf32, #tpu.memory_space<vmem>>, vector<1x128xf32>
    %7 = vector.broadcast %6 : vector<1x128xf32> to vector<128x128xf32>
    %8 = arith.addf %5, %7 : vector<128x128xf32>
    %c0_7 = arith.constant 0 : index
    %c0_8 = arith.constant 0 : index
    %9 = vector.load %arg5[%c0_7, %c0_8] : memref<128x128xf32, #tpu.memory_space<vmem>>, vector<128x128xf32>
    %10 = arith.addf %8, %9 : vector<128x128xf32>
    %cst_9 = arith.constant 0.000000e+00 : f32
    %11 = vector.broadcast %cst_9 : f32 to vector<128x128xf32>
    %12 = arith.maximumf %10, %11 : vector<128x128xf32>
    %c0_10 = arith.constant 0 : index
    %c0_11 = arith.constant 0 : index
    %13 = vector.load %arg6[%c0_10, %c0_11] : memref<128x128xf32, #tpu.memory_space<vmem>>, vector<128x128xf32>
    tpu.vector_store %arg6[%c0_10, %c0_11], %12 {strides = array<i32>} : memref<128x128xf32, #tpu.memory_space<vmem>>, vector<128x128xf32>,
    return
  }
  func.func @transform_0(%arg0: i32) -> (i32, i32) {
    %c0_i32 = arith.constant 0 : i32
    %c0_i32_0 = arith.constant 0 : i32
    return %arg0, %c0_i32 : i32, i32
  }
  func.func @transform_1(%arg0: i32) -> (i32, i32) {
    %c0_i32 = arith.constant 0 : i32
    %c0_i32_0 = arith.constant 0 : i32
    %c0_i32_1 = arith.constant 0 : i32
    return %c0_i32, %c0_i32_0 : i32, i32
  }
  func.func @transform_2(%arg0: i32) -> (i32, i32) {
    %c0_i32 = arith.constant 0 : i32
    %c0_i32_0 = arith.constant 0 : i32
    %c0_i32_1 = arith.constant 0 : i32
    return %c0_i32, %c0_i32_0 : i32, i32
  }
  func.func @transform_3(%arg0: i32) -> (i32, i32) {
    %c0_i32 = arith.constant 0 : i32
    %c0_i32_0 = arith.constant 0 : i32
    %c0_i32_1 = arith.constant 0 : i32
    return %c0_i32, %c0_i32_0 : i32, i32
  }
  func.func @transform_4(%arg0: i32) -> (i32, i32) {
    %c0_i32 = arith.constant 0 : i32
    %c0_i32_0 = arith.constant 0 : i32
    return %arg0, %c0_i32 : i32, i32
  }
  func.func @transform_5(%arg0: i32) -> (i32, i32) {
    %c0_i32 = arith.constant 0 : i32
    %c0_i32_0 = arith.constant 0 : i32
    return %arg0, %c0_i32 : i32, i32
  }
}

module attributes {stable_mosaic.version = 11 : i64} {
  func.func @_conv_gemm_bn_relu_kernel(%arg0: i32, %arg1: memref<128x576xbf16, #tpu.memory_space<vmem>>, %arg2: memref<576x128xbf16, #tpu.memory_space<vmem>>, %arg3: memref<1x128xf32, #tpu.memory_space<vmem>>, %arg4: memref<1x128xf32, #tpu.memory_space<vmem>>, %arg5: memref<128x128xf32, #tpu.memory_space<vmem>>) attributes {dimension_semantics = [#tpu.dimension_semantics<parallel>], iteration_bounds = array<i64: 1>, scalar_prefetch = 0 : i64, scratch_operands = 0 : i64, tpu.core_type = #tpu.core_type<tc>, window_params = [{transform_indices = @transform_0, window_bounds = array<i64: 128, 576>}, {pipeline_mode = #tpu.pipeline_mode<synchronous>, transform_indices = @transform_1, window_bounds = array<i64: 576, 128>}, {pipeline_mode = #tpu.pipeline_mode<synchronous>, transform_indices = @transform_2, window_bounds = array<i64: 1, 128>}, {pipeline_mode = #tpu.pipeline_mode<synchronous>, transform_indices = @transform_3, window_bounds = array<i64: 1, 128>}, {transform_indices = @transform_4, window_bounds = array<i64: 128, 128>}]} {
    %c0 = arith.constant 0 : index
    %c0_0 = arith.constant 0 : index
    %0 = vector.load %arg1[%c0, %c0_0] : memref<128x576xbf16, #tpu.memory_space<vmem>>, vector<128x576xbf16>
    %c0_1 = arith.constant 0 : index
    %c0_2 = arith.constant 0 : index
    %1 = vector.load %arg2[%c0_1, %c0_2] : memref<576x128xbf16, #tpu.memory_space<vmem>>, vector<576x128xbf16>
    %cst = arith.constant dense<0.000000e+00> : vector<128x128xf32>
    %2 = tpu.matmul %0, %1, %cst {dimension_numbers = #tpu.dot_dimension_numbers<[1], [0], [0], [1], [0, 0, 1, 1], [], []>} : vector<128x576xbf16>, vector<576x128xbf16>, vector<128x128xf32> -> vector<128x128xf32>
    %c0_3 = arith.constant 0 : index
    %c0_4 = arith.constant 0 : index
    %3 = vector.load %arg3[%c0_3, %c0_4] : memref<1x128xf32, #tpu.memory_space<vmem>>, vector<1x128xf32>
    %4 = vector.broadcast %3 : vector<1x128xf32> to vector<128x128xf32>
    %5 = arith.mulf %2, %4 : vector<128x128xf32>
    %c0_5 = arith.constant 0 : index
    %c0_6 = arith.constant 0 : index
    %6 = vector.load %arg4[%c0_5, %c0_6] : memref<1x128xf32, #tpu.memory_space<vmem>>, vector<1x128xf32>
    %7 = vector.broadcast %6 : vector<1x128xf32> to vector<128x128xf32>
    %8 = arith.addf %5, %7 : vector<128x128xf32>
    %cst_7 = arith.constant 0.000000e+00 : f32
    %9 = vector.broadcast %cst_7 : f32 to vector<128x128xf32>
    %10 = arith.maximumf %8, %9 : vector<128x128xf32>
    %c0_8 = arith.constant 0 : index
    %c0_9 = arith.constant 0 : index
    %11 = vector.load %arg5[%c0_8, %c0_9] : memref<128x128xf32, #tpu.memory_space<vmem>>, vector<128x128xf32>
    tpu.vector_store %arg5[%c0_8, %c0_9], %10 {strides = array<i32>} : memref<128x128xf32, #tpu.memory_space<vmem>>, vector<128x128xf32>,
    return
  }
  func.func @transform_0(%arg0: i32) -> (i32, i32) {
    %c0_i32 = arith.constant 0 : i32
    %c0_i32_0 = arith.constant 0 : i32
    return %arg0, %c0_i32 : i32, i32
  }
  func.func @transform_1(%arg0: i32) -> (i32, i32) {
    %c0_i32 = arith.constant 0 : i32
    %c0_i32_0 = arith.constant 0 : i32
    %c0_i32_1 = arith.constant 0 : i32
    return %c0_i32, %c0_i32_0 : i32, i32
  }
  func.func @transform_2(%arg0: i32) -> (i32, i32) {
    %c0_i32 = arith.constant 0 : i32
    %c0_i32_0 = arith.constant 0 : i32
    %c0_i32_1 = arith.constant 0 : i32
    return %c0_i32, %c0_i32_0 : i32, i32
  }
  func.func @transform_3(%arg0: i32) -> (i32, i32) {
    %c0_i32 = arith.constant 0 : i32
    %c0_i32_0 = arith.constant 0 : i32
    %c0_i32_1 = arith.constant 0 : i32
    return %c0_i32, %c0_i32_0 : i32, i32
  }
  func.func @transform_4(%arg0: i32) -> (i32, i32) {
    %c0_i32 = arith.constant 0 : i32
    %c0_i32_0 = arith.constant 0 : i32
    return %arg0, %c0_i32 : i32, i32
  }
}

</mosaic_0001>

<llo_original>
// kernel: tile.11
$region0: #{tile.11}
  %s0 = inlined_call_operand.vmem [shape: f32[2,3], index: 0, kind: input, shape index: {}]
  %s1 = inlined_call_operand.vmem [shape: f32[6], index: 1, kind: output, shape index: {}]
  $region1: #{tile.11} parent=0
    #allocation0 [shape = 'u8[4096]{0}', space=vmem, size = 0x1000, scoped, tag = 'scoped mem for output reshape']
    #allocation1 [shape = 'u8[4096]{0}', space=vmem, size = 0x1000, scoped, tag = 'scoped mem for input reshape']
    %s3 = sshll.u32 1, 2
    %s4 = ssub.s32 %s3, 1
    %v5 = vld [vmem:[%s0] sm:%s4]
    %6 = vst [vmem:[#allocation1] sm:%s4] %v5
    %v7 = vld [vmem:[#allocation1] sm:$0x1]
    %vm8 = vcmask 23552
    %9 = vst.msk [vmem:[#allocation0] sm:$0x1] %vm8, %v7
    %s10 = scalar_lea.vmem [#allocation1], 1
    %v11 = vld [vmem:[%s10] sm:$0x1]
    %12 = vrot.lane.b32.xlu0 %v11, 3
    %v13 = vpop.permute.xlu0 %12
    %vm14 = vcmask 48152
    %15 = vst.msk [vmem:[#allocation0] sm:$0x1] %vm14, %v13
    %s17 = sshll.u32 1, 1
    %s18 = ssub.s32 %s17, 1
    %v20 = vld [vmem:[#allocation0] sm:%s18]
    %s21 = sshll.u32 1, 1
    %s22 = ssub.s32 %s21, 1
    %23 = vst [vmem:[%s1] sm:%s22] %v20

// kernel: tile.10
$region0: #{tile.10}
  #allocation0 [shape = 's32[1]{0}', space=sflag, size = 0x4, scoped, tag = 'scoped memory for tile.10']
  %s0 = inlined_call_operand.vmem [shape: f32[3], index: 0, kind: input, shape index: {}]
  %s1 = inlined_call_operand.vmem [shape: f32[2,3], index: 1, kind: output, shape index: {}]
  // Predicated region
  $region2: #{tile.10} parent=0 // pred_check
    _
  $region3: #{tile.10} parent=0 // pred_check_branch
    %3 = sbr.rel (0) target = $region5
  $region4: #{tile.10} parent=0 // pred_region
    _
  $region5: #{tile.10} parent=0 // pred_fallthru
    _
  %v4 = vld [vmem:[%s0] ss:$0 sm:$0xff]
  %5 = vst [vmem:[%s1] sm:$0x3] %v4

// kernel: feature_extractor_forward.7
$region0: #{feature_extractor_forward.7}
  #allocation0 [shape = 'u32[]', space=smem, size = 0x4, offset = 0x4, fixed_abs, tag = 'smem constant byte address 0x4 - core index']
  #allocation1 [shape = 'u32[144,128]{1,0:T(1,128)}', space=vmem, size = 0x12000, scoped, tag = 'internal scratch']
  %s0 = inlined_call_operand.vmem [shape: f32[6,1,1024], index: 0, kind: input, shape index: {}]
  %s1 = inlined_call_operand.vmem [shape: f32[6], index: 1, kind: input, shape index: {}]
  %s2 = inlined_call_operand.vmem [shape: f32[6], index: 2, kind: input, shape index: {}]
  %s3 = inlined_call_operand.vmem [shape: f32[6,1,1024], index: 3, kind: output, shape index: {}]
  %s4 = sld [smem:[#allocation0]]
  $region53: #{feature_extractor_forward.7} parent=0
    _
  %s6 = ssub.s32 1, %s4
  %s7 = scalar_select 0, %s6, %s4
  $region1: #{feature_extractor_forward.7} parent=0
    #allocation2 [shape = 'u8[512]{0}', space=smem, size = 0x200, scoped, tag = 'input window, operand 1, single buffered']
    #allocation3 [shape = 's32[2]{0}', space=sflag, size = 0x8, scoped, tag = 'scoped memory for feature_extractor_forward.7']
    #allocation4 [shape = 'u8[512]{0}', space=smem, size = 0x200, scoped, tag = 'input window, operand 2, single buffered']
    #allocation5 [shape = 's32[1]{0}', space=sflag, size = 0x4, scoped, tag = 'scoped memory for feature_extractor_forward.7']
    %8 = vsyncpa [#allocation3], 0
    %9 = vsyncpa [#allocation5], 0
    loop: start=0, step=1, limit=8
    $region2: #{feature_extractor_forward.7} parent=1 // loop_pre_header
      _
    $region3: #{feature_extractor_forward.7} parent=1 // loop_header
      %s11 = sphi 0, %s15
      %p12 = scmp.ge.s32.totalorder %s11, 8
      %s21 = sphi 0, %s23
      %s24 = sphi 0, %s21
      %s25 = sphi 0, %s24
      %s41 = sphi 0, %s25
      %s45 = sphi 0, %s45
      %s47 = sphi 0, %s45
      %s48 = sphi 0, %s47
      %s62 = sphi 0, %s48
      %s66 = sphi 0, %s66
      %s68 = sphi 0, %s66
      %s69 = sphi 0, %s68
      %s83 = sphi 0, %s69
      %s89 = sphi 0, %s91
      %s92 = sphi 0, %s89
      %s93 = sphi 0, %s92
      %s109 = sphi 0, %s93
    $region4: #{feature_extractor_forward.7} parent=1 // loop_header_branch
      %14 = sbr.rel (%p12) target = $region8
    $region5: #{feature_extractor_forward.7} parent=1 // loop_body
      %s16 = ssub.s32 %s11, 1
      %s17 = ssub.s32 %s11, 2
      %s18 = sadd.s32 %s11, 1
      %s19 = ssub.s32 %s11, %s18
      %p20 = scmp.eq.s32.totalorder %s19, 0
      %s22 = sadd.s32 %s21, 1
      %s23 = scalar_select %p20, %s21, %s22
      %p26 = pneg %p20
      %p27 = scmp.eq.s32.totalorder %s11, 5
      %p28 = por %p26, %p27
      %p29 = scmp.ne.s32.totalorder %s21, %s24
      %p30 = scmp.eq.s32.totalorder %s11, 0
      %p31 = por %p29, %p30
      %p32 = scmp.ne.s32.totalorder %s21, %s24
      %p33 = scmp.eq.s32.totalorder %s16, 5
      %p34 = por %p32, %p33
      %p35 = scmp.ne.s32.totalorder %s24, %s25
      %p36 = scmp.eq.s32.totalorder %s16, 0
      %p37 = por %p35, %p36
      %p38 = scmp.ne.s32.totalorder %s24, %s25
      %p39 = scmp.eq.s32.totalorder %s17, 5
      %p40 = por %p38, %p39
      %p42 = scmp.ne.s32.totalorder %s25, %s41
      %p43 = scmp.eq.s32.totalorder %s17, 0
      %p44 = por %p42, %p43
      %s46 = sadd.s32 %s45, 1
      %p49 = scmp.eq.s32.totalorder %s11, 5
      %p50 = scmp.ne.s32.totalorder %s45, %s47
      %p51 = scmp.eq.s32.totalorder %s11, 0
      %p52 = por %p50, %p51
      %p53 = scmp.ne.s32.totalorder %s45, %s47
      %p54 = scmp.eq.s32.totalorder %s16, 5
      %p55 = por %p53, %p54
      %p56 = scmp.ne.s32.totalorder %s47, %s48
      %p57 = scmp.eq.s32.totalorder %s16, 0
      %p58 = por %p56, %p57
      %p59 = scmp.ne.s32.totalorder %s47, %s48
      %p60 = scmp.eq.s32.totalorder %s17, 5
      %p61 = por %p59, %p60
      %p63 = scmp.ne.s32.totalorder %s48, %s62
      %p64 = scmp.eq.s32.totalorder %s17, 0
      %p65 = por %p63, %p64
      %s67 = sadd.s32 %s66, 1
      %p70 = scmp.eq.s32.totalorder %s11, 5
      %p71 = scmp.ne.s32.totalorder %s66, %s68
      %p72 = scmp.eq.s32.totalorder %s11, 0
      %p73 = por %p71, %p72
      %p74 = scmp.ne.s32.totalorder %s66, %s68
      %p75 = scmp.eq.s32.totalorder %s16, 5
      %p76 = por %p74, %p75
      %p77 = scmp.ne.s32.totalorder %s68, %s69
      %p78 = scmp.eq.s32.totalorder %s16, 0
      %p79 = por %p77, %p78
      %p80 = scmp.ne.s32.totalorder %s68, %s69
      %p81 = scmp.eq.s32.totalorder %s17, 5
      %p82 = por %p80, %p81
      %p84 = scmp.ne.s32.totalorder %s69, %s83
      %p85 = scmp.eq.s32.totalorder %s17, 0
      %p86 = por %p84, %p85
      %s87 = ssub.s32 %s11, %s18
      %p88 = scmp.eq.s32.totalorder %s87, 0
      %s90 = sadd.s32 %s89, 1
      %s91 = scalar_select %p88, %s89, %s90
      %p94 = pneg %p88
      %p95 = scmp.eq.s32.totalorder %s11, 5
      %p96 = por %p94, %p95
      %p97 = scmp.ne.s32.totalorder %s89, %s92
      %p98 = scmp.eq.s32.totalorder %s11, 0
      %p99 = por %p97, %p98
      %p100 = scmp.ne.s32.totalorder %s89, %s92
      %p101 = scmp.eq.s32.totalorder %s16, 5
      %p102 = por %p100, %p101
      %p103 = scmp.ne.s32.totalorder %s92, %s93
      %p104 = scmp.eq.s32.totalorder %s16, 0
      %p105 = por %p103, %p104
      %p106 = scmp.ne.s32.totalorder %s92, %s93
      %p107 = scmp.eq.s32.totalorder %s17, 5
      %p108 = por %p106, %p107
      %p110 = scmp.ne.s32.totalorder %s93, %s109
      %p111 = scmp.eq.s32.totalorder %s17, 0
      %p112 = por %p110, %p111
      %p113 = scmp.le.s32.totalorder 1, %s11
      %p114 = scmp.lt.s32.totalorder %s11, 7
      %p115 = pnand %p113, %p114
      %p116 = pneg %p115
      // Predicated region
      $region9: #{feature_extractor_forward.7} parent=5 // pred_check
        _
      $region10: #{feature_extractor_forward.7} parent=5 // pred_check_branch
        %118 = sbr.rel (%p115) target = $region12
      $region11: #{feature_extractor_forward.7} parent=5 // pred_region
        %s119 = ssub.s32 %s11, 1
        // Predicated region
        $region13: #{feature_extractor_forward.7} parent=11 // pred_check
          %p120 = pneg %p58
        $region14: #{feature_extractor_forward.7} parent=11 // pred_check_branch
          %122 = sbr.rel (%p120) target = $region16
        $region15: #{feature_extractor_forward.7} parent=11 // pred_region
          %s124 = ssub.s32 16, 16
          %125 = vsyncadd [#allocation3], %s124
          %s127 = sshll.u32 %s1, 4
          %s128 = int_to_ptr.vmem [resolvable:$true] %s127
          %130 = dma.vmem_to_smem %s128, 16, [#allocation2], [#allocation3]
        $region16: #{feature_extractor_forward.7} parent=11 // pred_fallthru
          _
        // Predicated region
        $region17: #{feature_extractor_forward.7} parent=11 // pred_check
          %p131 = pneg %p79
        $region18: #{feature_extractor_forward.7} parent=11 // pred_check_branch
          %133 = sbr.rel (%p131) target = $region20
        $region19: #{feature_extractor_forward.7} parent=11 // pred_region
          %s135 = ssub.s32 16, 16
          %136 = vsyncadd [#allocation5], %s135
          %s138 = sshll.u32 %s2, 4
          %s139 = int_to_ptr.vmem [resolvable:$true] %s138
          %141 = dma.vmem_to_smem %s139, 16, [#allocation4], [#allocation5]
        $region20: #{feature_extractor_forward.7} parent=11 // pred_fallthru
          _
      $region12: #{feature_extractor_forward.7} parent=5 // pred_fallthru
        _
      %p142 = scmp.lt.s32.totalorder %s11, 6
      // Predicated region
      $region21: #{feature_extractor_forward.7} parent=5 // pred_check
        %p143 = pneg %p142
      $region22: #{feature_extractor_forward.7} parent=5 // pred_check_branch
        %145 = sbr.rel (%p143) target = $region24
      $region23: #{feature_extractor_forward.7} parent=5 // pred_region
        // Predicated region
        $region25: #{feature_extractor_forward.7} parent=23 // pred_check
          %p146 = pneg %p31
        $region26: #{feature_extractor_forward.7} parent=23 // pred_check_branch
          %148 = sbr.rel (%p146) target = $region28
        $region27: #{feature_extractor_forward.7} parent=23 // pred_region
          %p149 = scmp.lt.s32.totalorder %s11, 5
          %s150 = scalar_select %p149, %s11, 5
          %s151 = smul.addr %s150, 8
          %s152 = scalar_lea.vmem %s0, %s151
        $region28: #{feature_extractor_forward.7} parent=23 // pred_fallthru
          _
      $region24: #{feature_extractor_forward.7} parent=5 // pred_fallthru
        _
      %p153 = scmp.le.s32.totalorder 1, %s11
      %p154 = scmp.lt.s32.totalorder %s11, 7
      %p155 = pnand %p153, %p154
      %p156 = pneg %p155
      // Predicated region
      $region29: #{feature_extractor_forward.7} parent=5 // pred_check
        _
      $region30: #{feature_extractor_forward.7} parent=5 // pred_check_branch
        %158 = sbr.rel (%p155) target = $region32
      $region31: #{feature_extractor_forward.7} parent=5 // pred_region
        %s159 = ssub.s32 %s11, 1
        // Predicated region
        $region33: #{feature_extractor_forward.7} parent=31 // pred_check
          %p160 = pneg %p58
        $region34: #{feature_extractor_forward.7} parent=31 // pred_check_branch
          %162 = sbr.rel (%p160) target = $region36
        $region35: #{feature_extractor_forward.7} parent=31 // pred_region
          %163 = dma.done [#allocation3], 16
        $region36: #{feature_extractor_forward.7} parent=31 // pred_fallthru
          _
        // Predicated region
        $region37: #{feature_extractor_forward.7} parent=31 // pred_check
          %p164 = pneg %p79
        $region38: #{feature_extractor_forward.7} parent=31 // pred_check_branch
          %166 = sbr.rel (%p164) target = $region40
        $region39: #{feature_extractor_forward.7} parent=31 // pred_region
          %167 = dma.done [#allocation5], 16
        $region40: #{feature_extractor_forward.7} parent=31 // pred_fallthru
          _
        %168 = sfence
        %p169 = scmp.lt.s32.totalorder %s16, 5
        %s170 = scalar_select %p169, %s16, 5
        %s171 = smul.addr %s170, 8
        %s172 = scalar_lea.vmem %s0, %s171
        %p173 = pneg %p37
        %p174 = pneg %p34
        %p175 = pneg %p58
        %p176 = pneg %p55
        %p177 = pneg %p79
        %p178 = pneg %p76
        %p179 = pneg %p105
        %p180 = pneg %p102
        %p181 = scmp.lt.s32.totalorder %s16, 5
        %s182 = scalar_select %p181, %s16, 5
        %s183 = smul.addr %s182, 8
        %s184 = scalar_lea.vmem %s3, %s183
        %p185 = scmp.lt.s32.totalorder %s16, 5
        %s186 = scalar_select %p185, %s16, 5
        %s187 = smul.addr %s186, 8
        %s188 = scalar_lea.vmem %s0, %s187
        %p189 = scmp.lt.s32.totalorder %s16, 5
        %s190 = scalar_select %p189, %s16, 5
        %s191 = smul.addr %s190, 8
        %s192 = scalar_lea.vmem %s3, %s191
        %v193 = vld [vmem:[%s188] sm:$0xff]
        %s194 = sld [smem:[#allocation2 + %s16]]
        %v195 = vstv %s194
        %v196 = vmul.f32 %v193, %v195
        %s197 = sld [smem:[#allocation4 + %s16]]
        %v198 = vstv %s197
        %v199 = vadd.f32 %v196, %v198
        %200 = vst [vmem:[%s192] sm:$0xff] %v199
        %p201 = scmp.lt.s32.totalorder %s16, 5
        %s202 = scalar_select %p201, %s16, 5
        %s203 = smul.addr %s202, 8
        %s204 = scalar_lea.vmem %s3, %s203
        // Predicated region
        $region41: #{feature_extractor_forward.7} parent=31 // pred_check
          %p205 = pneg %p102
        $region42: #{feature_extractor_forward.7} parent=31 // pred_check_branch
          %207 = sbr.rel (%p205) target = $region44
        $region43: #{feature_extractor_forward.7} parent=31 // pred_region
          _
        $region44: #{feature_extractor_forward.7} parent=31 // pred_fallthru
          _
      $region32: #{feature_extractor_forward.7} parent=5 // pred_fallthru
        _
      %p208 = scmp.le.s32.totalorder 2, %s11
      // Predicated region
      $region45: #{feature_extractor_forward.7} parent=5 // pred_check
        %p209 = pneg %p208
      $region46: #{feature_extractor_forward.7} parent=5 // pred_check_branch
        %211 = sbr.rel (%p209) target = $region48
      $region47: #{feature_extractor_forward.7} parent=5 // pred_region
        %s212 = ssub.s32 %s11, 2
        // Predicated region
        $region49: #{feature_extractor_forward.7} parent=47 // pred_check
          %p213 = pneg %p108
        $region50: #{feature_extractor_forward.7} parent=47 // pred_check_branch
          %215 = sbr.rel (%p213) target = $region52
        $region51: #{feature_extractor_forward.7} parent=47 // pred_region
          %p216 = scmp.lt.s32.totalorder %s17, 5
          %s217 = scalar_select %p216, %s17, 5
          %s218 = smul.addr %s217, 8
          %s219 = scalar_lea.vmem %s3, %s218
        $region52: #{feature_extractor_forward.7} parent=47 // pred_fallthru
          _
      $region48: #{feature_extractor_forward.7} parent=5 // pred_fallthru
        _
    $region6: #{feature_extractor_forward.7} parent=1 // loop_footer
      %s15 = sadd.s32 1, %s11
    $region7: #{feature_extractor_forward.7} parent=1 // loop_footer_branch
      %10 = sbr.rel target = $region3
    $region8: #{feature_extractor_forward.7} parent=1 // loop_exit
      _
    %220 = vsyncpa [#allocation3], 1
    %s221 = scalar_lea.sflag [#allocation3], 1
    %222 = vsyncpa %s221, 1
    %223 = vsyncpa [#allocation5], 1

// kernel: feature_extractor_forward.8
$region0: #{feature_extractor_forward.8}
  #allocation0 [shape = 'u32[]', space=smem, size = 0x4, offset = 0x4, fixed_abs, tag = 'smem constant byte address 0x4 - core index']
  #allocation1 [shape = 'u32[144,128]{1,0:T(1,128)}', space=vmem, size = 0x12000, scoped, tag = 'internal scratch']
  %s0 = inlined_call_operand.vmem [shape: bf16[512,147], index: 0, kind: input, shape index: {}]
  %s1 = inlined_call_operand.vmem [shape: bf16[147,128], index: 1, kind: input, shape index: {}]
  %s2 = inlined_call_operand.vmem [shape: f32[1,128], index: 2, kind: input, shape index: {}]
  %s3 = inlined_call_operand.vmem [shape: f32[1,128], index: 3, kind: input, shape index: {}]
  %s4 = inlined_call_operand.vmem [shape: f32[512,128], index: 4, kind: output, shape index: {}]
  %s5 = sld [smem:[#allocation0]]
  $region49: #{feature_extractor_forward.8} parent=0
    _
  %s7 = ssub.s32 1, %s5
  %s8 = scalar_select 0, %s7, %s5
  loop: start=0, step=1, limit=4
  $region2: #{feature_extractor_forward.8} parent=0 // loop_pre_header
    _
  $region3: #{feature_extractor_forward.8} parent=0 // loop_header
    %s10 = sphi 0, %s14
    %p11 = scmp.ge.s32.totalorder %s10, 4
    %s20 = sphi 0, %s22
    %s23 = sphi 0, %s20
    %s24 = sphi 0, %s23
    %s40 = sphi 0, %s24
    %s44 = sphi 0, %s44
    %s46 = sphi 0, %s44
    %s47 = sphi 0, %s46
    %s61 = sphi 0, %s47
    %s65 = sphi 0, %s65
    %s67 = sphi 0, %s65
    %s68 = sphi 0, %s67
    %s82 = sphi 0, %s68
    %s86 = sphi 0, %s86
    %s88 = sphi 0, %s86
    %s89 = sphi 0, %s88
    %s103 = sphi 0, %s89
    %s109 = sphi 0, %s111
    %s112 = sphi 0, %s109
    %s113 = sphi 0, %s112
    %s129 = sphi 0, %s113
  $region4: #{feature_extractor_forward.8} parent=0 // loop_header_branch
    %13 = sbr.rel (%p11) target = $region8
  $region5: #{feature_extractor_forward.8} parent=0 // loop_body
    %s15 = ssub.s32 %s10, 1
    %s16 = ssub.s32 %s10, 2
    %s17 = sadd.s32 %s10, 1
    %s18 = ssub.s32 %s10, %s17
    %p19 = scmp.eq.s32.totalorder %s18, 0
    %s21 = sadd.s32 %s20, 1
    %s22 = scalar_select %p19, %s20, %s21
    %p25 = pneg %p19
    %p26 = scmp.eq.s32.totalorder %s10, 1
    %p27 = por %p25, %p26
    %p28 = scmp.ne.s32.totalorder %s20, %s23
    %p29 = scmp.eq.s32.totalorder %s10, 0
    %p30 = por %p28, %p29
    %p31 = scmp.ne.s32.totalorder %s20, %s23
    %p32 = scmp.eq.s32.totalorder %s15, 1
    %p33 = por %p31, %p32
    %p34 = scmp.ne.s32.totalorder %s23, %s24
    %p35 = scmp.eq.s32.totalorder %s15, 0
    %p36 = por %p34, %p35
    %p37 = scmp.ne.s32.totalorder %s23, %s24
    %p38 = scmp.eq.s32.totalorder %s16, 1
    %p39 = por %p37, %p38
    %p41 = scmp.ne.s32.totalorder %s24, %s40
    %p42 = scmp.eq.s32.totalorder %s16, 0
    %p43 = por %p41, %p42
    %s45 = sadd.s32 %s44, 1
    %p48 = scmp.eq.s32.totalorder %s10, 1
    %p49 = scmp.ne.s32.totalorder %s44, %s46
    %p50 = scmp.eq.s32.totalorder %s10, 0
    %p51 = por %p49, %p50
    %p52 = scmp.ne.s32.totalorder %s44, %s46
    %p53 = scmp.eq.s32.totalorder %s15, 1
    %p54 = por %p52, %p53
    %p55 = scmp.ne.s32.totalorder %s46, %s47
    %p56 = scmp.eq.s32.totalorder %s15, 0
    %p57 = por %p55, %p56
    %p58 = scmp.ne.s32.totalorder %s46, %s47
    %p59 = scmp.eq.s32.totalorder %s16, 1
    %p60 = por %p58, %p59
    %p62 = scmp.ne.s32.totalorder %s47, %s61
    %p63 = scmp.eq.s32.totalorder %s16, 0
    %p64 = por %p62, %p63
    %s66 = sadd.s32 %s65, 1
    %p69 = scmp.eq.s32.totalorder %s10, 1
    %p70 = scmp.ne.s32.totalorder %s65, %s67
    %p71 = scmp.eq.s32.totalorder %s10, 0
    %p72 = por %p70, %p71
    %p73 = scmp.ne.s32.totalorder %s65, %s67
    %p74 = scmp.eq.s32.totalorder %s15, 1
    %p75 = por %p73, %p74
    %p76 = scmp.ne.s32.totalorder %s67, %s68
    %p77 = scmp.eq.s32.totalorder %s15, 0
    %p78 = por %p76, %p77
    %p79 = scmp.ne.s32.totalorder %s67, %s68
    %p80 = scmp.eq.s32.totalorder %s16, 1
    %p81 = por %p79, %p80
    %p83 = scmp.ne.s32.totalorder %s68, %s82
    %p84 = scmp.eq.s32.totalorder %s16, 0
    %p85 = por %p83, %p84
    %s87 = sadd.s32 %s86, 1
    %p90 = scmp.eq.s32.totalorder %s10, 1
    %p91 = scmp.ne.s32.totalorder %s86, %s88
    %p92 = scmp.eq.s32.totalorder %s10, 0
    %p93 = por %p91, %p92
    %p94 = scmp.ne.s32.totalorder %s86, %s88
    %p95 = scmp.eq.s32.totalorder %s15, 1
    %p96 = por %p94, %p95
    %p97 = scmp.ne.s32.totalorder %s88, %s89
    %p98 = scmp.eq.s32.totalorder %s15, 0
    %p99 = por %p97, %p98
    %p100 = scmp.ne.s32.totalorder %s88, %s89
    %p101 = scmp.eq.s32.totalorder %s16, 1
    %p102 = por %p100, %p101
    %p104 = scmp.ne.s32.totalorder %s89, %s103
    %p105 = scmp.eq.s32.totalorder %s16, 0
    %p106 = por %p104, %p105
    %s107 = ssub.s32 %s10, %s17
    %p108 = scmp.eq.s32.totalorder %s107, 0
    %s110 = sadd.s32 %s109, 1
    %s111 = scalar_select %p108, %s109, %s110
    %p114 = pneg %p108
    %p115 = scmp.eq.s32.totalorder %s10, 1
    %p116 = por %p114, %p115
    %p117 = scmp.ne.s32.totalorder %s109, %s112
    %p118 = scmp.eq.s32.totalorder %s10, 0
    %p119 = por %p117, %p118
    %p120 = scmp.ne.s32.totalorder %s109, %s112
    %p121 = scmp.eq.s32.totalorder %s15, 1
    %p122 = por %p120, %p121
    %p123 = scmp.ne.s32.totalorder %s112, %s113
    %p124 = scmp.eq.s32.totalorder %s15, 0
    %p125 = por %p123, %p124
    %p126 = scmp.ne.s32.totalorder %s112, %s113
    %p127 = scmp.eq.s32.totalorder %s16, 1
    %p128 = por %p126, %p127
    %p130 = scmp.ne.s32.totalorder %s113, %s129
    %p131 = scmp.eq.s32.totalorder %s16, 0
    %p132 = por %p130, %p131
    %p133 = scmp.le.s32.totalorder 1, %s10
    %p134 = scmp.lt.s32.totalorder %s10, 3
    %p135 = pnand %p133, %p134
    %p136 = pneg %p135
    // Predicated region
    $region9: #{feature_extractor_forward.8} parent=5 // pred_check
      _
    $region10: #{feature_extractor_forward.8} parent=5 // pred_check_branch
      %138 = sbr.rel (%p135) target = $region12
    $region11: #{feature_extractor_forward.8} parent=5 // pred_region
      %s139 = ssub.s32 %s10, 1
      // Predicated region
      $region13: #{feature_extractor_forward.8} parent=11 // pred_check
        %p140 = pneg %p57
      $region14: #{feature_extractor_forward.8} parent=11 // pred_check_branch
        %142 = sbr.rel (%p140) target = $region16
      $region15: #{feature_extractor_forward.8} parent=11 // pred_region
        _
      $region16: #{feature_extractor_forward.8} parent=11 // pred_fallthru
        _
      // Predicated region
      $region17: #{feature_extractor_forward.8} parent=11 // pred_check
        %p143 = pneg %p78
      $region18: #{feature_extractor_forward.8} parent=11 // pred_check_branch
        %145 = sbr.rel (%p143) target = $region20
      $region19: #{feature_extractor_forward.8} parent=11 // pred_region
        _
      $region20: #{feature_extractor_forward.8} parent=11 // pred_fallthru
        _
      // Predicated region
      $region21: #{feature_extractor_forward.8} parent=11 // pred_check
        %p146 = pneg %p99
      $region22: #{feature_extractor_forward.8} parent=11 // pred_check_branch
        %148 = sbr.rel (%p146) target = $region24
      $region23: #{feature_extractor_forward.8} parent=11 // pred_region
        _
      $region24: #{feature_extractor_forward.8} parent=11 // pred_fallthru
        _
    $region12: #{feature_extractor_forward.8} parent=5 // pred_fallthru
      _
    %p149 = scmp.lt.s32.totalorder %s10, 2
    // Predicated region
    $region25: #{feature_extractor_forward.8} parent=5 // pred_check
      %p150 = pneg %p149
    $region26: #{feature_extractor_forward.8} parent=5 // pred_check_branch
      %152 = sbr.rel (%p150) target = $region28
    $region27: #{feature_extractor_forward.8} parent=5 // pred_region
      // Predicated region
      $region29: #{feature_extractor_forward.8} parent=27 // pred_check
        %p153 = pneg %p30
      $region30: #{feature_extractor_forward.8} parent=27 // pred_check_branch
        %155 = sbr.rel (%p153) target = $region32
      $region31: #{feature_extractor_forward.8} parent=27 // pred_region
        %s156 = smul.u32 32, %s10
        %p157 = scmp.lt.s32.totalorder %s156, 63
        %s158 = scalar_select %p157, %s156, 63
        %s159 = smul.addr %s158, 2
        %s160 = smul.addr %s159, 4
        %s161 = scalar_lea.vmem %s0, %s160
        %s162 = smul.u32 32, %s10
      $region32: #{feature_extractor_forward.8} parent=27 // pred_fallthru
        _
    $region28: #{feature_extractor_forward.8} parent=5 // pred_fallthru
      _
    %p163 = scmp.le.s32.totalorder 1, %s10
    %p164 = scmp.lt.s32.totalorder %s10, 3
    %p165 = pnand %p163, %p164
    %p166 = pneg %p165
    // Predicated region
    $region33: #{feature_extractor_forward.8} parent=5 // pred_check
      _
    $region34: #{feature_extractor_forward.8} parent=5 // pred_check_branch
      %168 = sbr.rel (%p165) target = $region36
    $region35: #{feature_extractor_forward.8} parent=5 // pred_region
      %s169 = ssub.s32 %s10, 1
      %s170 = smul.u32 32, %s15
      %p171 = scmp.lt.s32.totalorder %s170, 63
      %s172 = scalar_select %p171, %s170, 63
      %s173 = smul.addr %s172, 2
      %s174 = smul.addr %s173, 4
      %s175 = scalar_lea.vmem %s0, %s174
      %p176 = pneg %p36
      %p177 = pneg %p33
      %p178 = pneg %p57
      %p179 = pneg %p54
      %p180 = pneg %p78
      %p181 = pneg %p75
      %p182 = pneg %p99
      %p183 = pneg %p96
      %p184 = pneg %p125
      %p185 = pneg %p122
      %s186 = smul.u32 32, %s15
      %p187 = scmp.lt.s32.totalorder %s186, 63
      %s188 = scalar_select %p187, %s186, 63
      %s189 = smul.addr %s188, 8
      %s190 = scalar_lea.vmem %s4, %s189
      %s191 = smul.u32 32, %s15
      %p192 = scmp.lt.s32.totalorder %s191, 63
      %s193 = scalar_select %p192, %s191, 63
      %s194 = smul.addr %s193, 2
      %s195 = smul.addr %s194, 4
      %s196 = scalar_lea.vmem %s0, %s195
      %s197 = smul.u32 32, %s15
      %s198 = smul.u32 32, %s15
      %p199 = scmp.lt.s32.totalorder %s198, 63
      %s200 = scalar_select %p199, %s198, 63
      %s201 = smul.addr %s200, 8
      %s202 = scalar_lea.vmem %s4, %s201
      %s203 = smul.u32 32, %s15
      %v205 = vld [vmem:[%s196] sm:$0xff]
      %v206 = vld [vmem:[%s196 + $0x8] sm:$0xff]
      %v207 = vld [vmem:[%s196 + $0x10] sm:$0xff]
      %v208 = vld [vmem:[%s196 + $0x18] sm:$0xff]
      %v209 = vld [vmem:[%s196 + $0x20] sm:$0xff]
      %v210 = vld [vmem:[%s196 + $0x28] sm:$0xff]
      %v211 = vld [vmem:[%s196 + $0x30] sm:$0xff]
      %v212 = vld [vmem:[%s196 + $0x38] sm:$0xff]
      %v213 = vld [vmem:[%s196 + $0x40] sm:$0xff]
      %v214 = vld [vmem:[%s196 + $0x48] sm:$0xff]
      %v215 = vld [vmem:[%s196 + $0x50] sm:$0xff]
      %v216 = vld [vmem:[%s196 + $0x58] sm:$0xff]
      %v217 = vld [vmem:[%s196 + $0x60] sm:$0xff]
      %v218 = vld [vmem:[%s196 + $0x68] sm:$0xff]
      %v219 = vld [vmem:[%s196 + $0x70] sm:$0xff]
      %v220 = vld [vmem:[%s196 + $0x78] sm:$0xff]
      %v221 = vld [vmem:[%s196 + $0x80] sm:$0xff]
      %v222 = vld [vmem:[%s196 + $0x88] sm:$0xff]
      %v223 = vld [vmem:[%s196 + $0x90] sm:$0xff]
      %v224 = vld [vmem:[%s196 + $0x98] sm:$0xff]
      %v225 = vld [vmem:[%s196 + $0xa0] sm:$0xff]
      %v226 = vld [vmem:[%s196 + $0xa8] sm:$0xff]
      %v227 = vld [vmem:[%s196 + $0xb0] sm:$0xff]
      %v228 = vld [vmem:[%s196 + $0xb8] sm:$0xff]
      %v229 = vld [vmem:[%s196 + $0xc0] sm:$0xff]
      %v230 = vld [vmem:[%s196 + $0xc8] sm:$0xff]
      %v231 = vld [vmem:[%s196 + $0xd0] sm:$0xff]
      %v232 = vld [vmem:[%s196 + $0xd8] sm:$0xff]
      %v233 = vld [vmem:[%s196 + $0xe0] sm:$0xff]
      %v234 = vld [vmem:[%s196 + $0xe8] sm:$0xff]
      %v235 = vld [vmem:[%s196 + $0xf0] sm:$0xff]
      %v236 = vld [vmem:[%s196 + $0xf8] sm:$0xff]
      %v237 = vld [vmem:[%s1] sm:$0xf]
      %v238 = vld [vmem:[%s1 + $0x4] sm:$0xf]
      %v239 = vld [vmem:[%s1 + $0x8] sm:$0xf]
      %v240 = vld [vmem:[%s1 + $0xc] sm:$0xf]
      %v241 = vld [vmem:[%s1 + $0x10] sm:$0xf]
      %v242 = vld [vmem:[%s1 + $0x14] sm:$0xf]
      %v243 = vld [vmem:[%s1 + $0x18] sm:$0xf]
      %v244 = vld [vmem:[%s1 + $0x1c] sm:$0xf]
      %v245 = vld [vmem:[%s1 + $0x20] sm:$0xf]
      %v246 = vld [vmem:[%s1 + $0x24] sm:$0xf]
      %v247 = vld [vmem:[%s1 + $0x28] sm:$0xf]
      %v248 = vld [vmem:[%s1 + $0x2c] sm:$0xf]
      %v249 = vld [vmem:[%s1 + $0x30] sm:$0xf]
      %v250 = vld [vmem:[%s1 + $0x34] sm:$0xf]
      %v251 = vld [vmem:[%s1 + $0x38] sm:$0xf]
      %v252 = vld [vmem:[%s1 + $0x3c] sm:$0xf]
      %v253 = vld [vmem:[%s1 + $0x40] sm:$0xf]
      %v254 = vld [vmem:[%s1 + $0x44] sm:$0xf]
      %v255 = vld [vmem:[%s1 + $0x48] sm:$0x3]
      %v288 = vunpack.c.l.b16 %v205
      %v289 = vunpack.c.h.b16 %v205
      %v290 = vunpack.c.l.b16 %v206
      %v291 = vunpack.c.h.b16 %v206
      %v292 = vunpack.c.l.b16 %v207
      %v293 = vunpack.c.h.b16 %v207
      %v294 = vunpack.c.l.b16 %v208
      %v295 = vunpack.c.h.b16 %v208
      %v296 = vunpack.c.l.b16 %v209
      %v297 = vunpack.c.h.b16 %v209
      %v298 = vunpack.c.l.b16 %v210
      %v299 = vunpack.c.h.b16 %v210
      %v300 = vunpack.c.l.b16 %v211
      %v301 = vunpack.c.h.b16 %v211
      %v302 = vunpack.c.l.b16 %v212
      %v303 = vunpack.c.h.b16 %v212
      %v304 = vunpack.c.l.b16 %v213
      %v305 = vunpack.c.h.b16 %v213
      %v306 = vunpack.c.l.b16 %v214
      %v307 = vunpack.c.h.b16 %v214
      %v308 = vunpack.c.l.b16 %v215
      %v309 = vunpack.c.h.b16 %v215
      %v310 = vunpack.c.l.b16 %v216
      %v311 = vunpack.c.h.b16 %v216
      %v312 = vunpack.c.l.b16 %v217
      %v313 = vunpack.c.h.b16 %v217
      %v314 = vunpack.c.l.b16 %v218
      %v315 = vunpack.c.h.b16 %v218
      %v316 = vunpack.c.l.b16 %v219
      %v317 = vunpack.c.h.b16 %v219
      %v318 = vunpack.c.l.b16 %v220
      %v319 = vunpack.c.h.b16 %v220
      %v320 = vunpack.c.l.b16 %v221
      %v321 = vunpack.c.h.b16 %v221
      %v322 = vunpack.c.l.b16 %v222
      %v323 = vunpack.c.h.b16 %v222
      %v324 = vunpack.c.l.b16 %v223
      %v325 = vunpack.c.h.b16 %v223
      %v326 = vunpack.c.l.b16 %v224
      %v327 = vunpack.c.h.b16 %v224
      %v328 = vunpack.c.l.b16 %v225
      %v329 = vunpack.c.h.b16 %v225
      %v330 = vunpack.c.l.b16 %v226
      %v331 = vunpack.c.h.b16 %v226
      %v332 = vunpack.c.l.b16 %v227
      %v333 = vunpack.c.h.b16 %v227
      %v334 = vunpack.c.l.b16 %v228
      %v335 = vunpack.c.h.b16 %v228
      %v336 = vunpack.c.l.b16 %v229
      %v337 = vunpack.c.h.b16 %v229
      %v338 = vunpack.c.l.b16 %v230
      %v339 = vunpack.c.h.b16 %v230
      %v340 = vunpack.c.l.b16 %v231
      %v341 = vunpack.c.h.b16 %v231
      %v342 = vunpack.c.l.b16 %v232
      %v343 = vunpack.c.h.b16 %v232
      %v344 = vunpack.c.l.b16 %v233
      %v345 = vunpack.c.h.b16 %v233
      %v346 = vunpack.c.l.b16 %v234
      %v347 = vunpack.c.h.b16 %v234
      %v348 = vunpack.c.l.b16 %v235
      %v349 = vunpack.c.h.b16 %v235
      %v350 = vunpack.c.l.b16 %v236
      %v351 = vunpack.c.h.b16 %v236
      %v352 = vpack.c.b16 %v290, %v288
      %v353 = vpack.c.b16 %v291, %v289
      %v354 = vpack.c.b16 %v294, %v292
      %v355 = vpack.c.b16 %v295, %v293
      %v356 = vpack.c.b16 %v298, %v296
      %v357 = vpack.c.b16 %v299, %v297
      %v358 = vpack.c.b16 %v302, %v300
      %v359 = vpack.c.b16 %v303, %v301
      %v360 = vpack.c.b16 %v306, %v304
      %v361 = vpack.c.b16 %v307, %v305
      %v362 = vpack.c.b16 %v310, %v308
      %v363 = vpack.c.b16 %v311, %v309
      %v364 = vpack.c.b16 %v314, %v312
      %v365 = vpack.c.b16 %v315, %v313
      %v366 = vpack.c.b16 %v318, %v316
      %v367 = vpack.c.b16 %v319, %v317
      %v368 = vpack.c.b16 %v322, %v320
      %v369 = vpack.c.b16 %v323, %v321
      %v370 = vpack.c.b16 %v326, %v324
      %v371 = vpack.c.b16 %v327, %v325
      %v372 = vpack.c.b16 %v330, %v328
      %v373 = vpack.c.b16 %v331, %v329
      %v374 = vpack.c.b16 %v334, %v332
      %v375 = vpack.c.b16 %v335, %v333
      %v376 = vpack.c.b16 %v338, %v336
      %v377 = vpack.c.b16 %v339, %v337
      %v378 = vpack.c.b16 %v342, %v340
      %v379 = vpack.c.b16 %v343, %v341
      %v380 = vpack.c.b16 %v346, %v344
      %v381 = vpack.c.b16 %v347, %v345
      %v382 = vpack.c.b16 %v350, %v348
      %v383 = vpack.c.b16 %v351, %v349
      %v419 = vunpack.c.l.b16 %v237
      %v420 = vunpack.c.l.b16 %v238
      %v421 = vunpack.c.l.b16 %v239
      %v422 = vunpack.c.l.b16 %v240
      %v423 = vunpack.c.l.b16 %v241
      %v424 = vunpack.c.l.b16 %v242
      %v425 = vunpack.c.l.b16 %v243
      %v426 = vunpack.c.l.b16 %v244
      %v427 = vunpack.c.l.b16 %v245
      %v428 = vunpack.c.l.b16 %v246
      %v429 = vunpack.c.l.b16 %v247
      %v430 = vunpack.c.l.b16 %v248
      %v431 = vunpack.c.l.b16 %v249
      %v432 = vunpack.c.l.b16 %v250
      %v433 = vunpack.c.l.b16 %v251
      %v434 = vunpack.c.l.b16 %v252
      %v435 = vunpack.c.l.b16 %v253
      %v436 = vunpack.c.l.b16 %v254
      %v437 = vunpack.c.l.b16 %v255
      %v438 = vpack.c.b16 %v420, %v419
      %v439 = vpack.c.b16 %v422, %v421
      %v440 = vpack.c.b16 %v424, %v423
      %v441 = vpack.c.b16 %v426, %v425
      %v442 = vpack.c.b16 %v428, %v427
      %v443 = vpack.c.b16 %v430, %v429
      %v444 = vpack.c.b16 %v432, %v431
      %v445 = vpack.c.b16 %v434, %v433
      %v446 = vpack.c.b16 %v436, %v435
      %v447 = vpack.c.b16 %v437, %v437
      %vm457 = vcmask 154624
      %v459 = vsel %vm457, %v353, 0
      %v462 = vsel %vm457, %v355, 0
      %v465 = vsel %vm457, %v357, 0
      %v468 = vsel %vm457, %v359, 0
      %v471 = vsel %vm457, %v361, 0
      %v474 = vsel %vm457, %v363, 0
      %v477 = vsel %vm457, %v365, 0
      %v480 = vsel %vm457, %v367, 0
      %v483 = vsel %vm457, %v369, 0
      %v486 = vsel %vm457, %v371, 0
      %v489 = vsel %vm457, %v373, 0
      %v492 = vsel %vm457, %v375, 0
      %v495 = vsel %vm457, %v377, 0
      %v498 = vsel %vm457, %v379, 0
      %v501 = vsel %vm457, %v381, 0
      %v504 = vsel %vm457, %v383, 0
      %vm506 = vcmask 1040384
      %vm507 = vcmask 1041408
      %v508 = vsel %vm506, 4294967295, 65535
      %v509 = vsel %vm507, %v508, 0
      %v511 = vand.u32 %v447, %v509
      %513 = vmatprep.subr.bf16.mxu0 0
      %514 = vmatpush1.bf16.msra.mxu0 %v445
      %515 = vmatprep.subr.bf16.mxu0 0
      %516 = vmatpush1.bf16.msra.mxu0 %v444
      %517 = vmatprep.subr.bf16.mxu0 0
      %518 = vmatpush1.bf16.msra.mxu0 %v443
      %519 = vmatprep.subr.bf16.mxu0 0
      %520 = vmatpush1.bf16.msra.mxu0 %v442
      %521 = vmatprep.subr.bf16.mxu0 0
      %522 = vmatpush1.bf16.msra.mxu0 %v441
      %523 = vmatprep.subr.bf16.mxu0 0
      %524 = vmatpush1.bf16.msra.mxu0 %v440
      %525 = vmatprep.subr.bf16.mxu0 0
      %526 = vmatpush1.bf16.msra.mxu0 %v439
      %527 = vmatprep.subr.bf16.mxu0 0
      %528 = vmatpush1.bf16.msra.mxu0 %v438
      %529 = vmatprep.subr.bf16.mxu0 0
      %530 = vmatpush2.bf16.msra.mxu0 0
      %531 = vmatprep.subr.bf16.mxu0 0
      %532 = vmatpush2.bf16.msra.mxu0 0
      %533 = vmatprep.subr.bf16.mxu0 0
      %534 = vmatpush2.bf16.msra.mxu0 0
      %535 = vmatprep.subr.bf16.mxu0 0
      %536 = vmatpush2.bf16.msra.mxu0 0
      %537 = vmatprep.subr.bf16.mxu0 0
      %538 = vmatpush2.bf16.msra.mxu0 0
      %539 = vmatprep.subr.bf16.mxu0 0
      %540 = vmatpush2.bf16.msra.mxu0 0
      %541 = vmatprep.subr.bf16.mxu0 0
      %542 = vmatpush2.bf16.msra.mxu0 %v511
      %543 = vmatprep.subr.bf16.mxu0 0
      %544 = vmatpush2.bf16.msra.mxu0 %v446
      %545 = vmatprep.mubr.bf16.mxu0 %v459
      %546 = vmatmul.mubr.bf16.gmra.mxu0 %v352
      %v547 = vpop.f32.mrf.mxu0
      %v548 = vadd.f32 0.0, %v547
      %v549 = vpop.f32.mrf.mxu0
      %v550 = vpop.f32.mrf.mxu0
      %v551 = vadd.f32 0.0, %v550
      %v552 = vpop.f32.mrf.mxu0
      %553 = vmatprep.mubr.bf16.mxu0 %v462
      %554 = vmatmul.mubr.bf16.gmra.mxu0 %v354
      %v555 = vpop.f32.mrf.mxu0
      %v556 = vadd.f32 0.0, %v555
      %v557 = vpop.f32.mrf.mxu0
      %v558 = vpop.f32.mrf.mxu0
      %v559 = vadd.f32 0.0, %v558
      %v560 = vpop.f32.mrf.mxu0
      %561 = vmatprep.mubr.bf16.mxu0 %v465
      %562 = vmatmul.mubr.bf16.gmra.mxu0 %v356
      %v563 = vpop.f32.mrf.mxu0
      %v564 = vadd.f32 0.0, %v563
      %v565 = vpop.f32.mrf.mxu0
      %v566 = vpop.f32.mrf.mxu0
      %v567 = vadd.f32 0.0, %v566
      %v568 = vpop.f32.mrf.mxu0
      %569 = vmatprep.mubr.bf16.mxu0 %v468
      %570 = vmatmul.mubr.bf16.gmra.mxu0 %v358
      %v571 = vpop.f32.mrf.mxu0
      %v572 = vadd.f32 0.0, %v571
      %v573 = vpop.f32.mrf.mxu0
      %v574 = vpop.f32.mrf.mxu0
      %v575 = vadd.f32 0.0, %v574
      %v576 = vpop.f32.mrf.mxu0
      %577 = vmatprep.mubr.bf16.mxu0 %v471
      %578 = vmatmul.mubr.bf16.gmra.mxu0 %v360
      %v579 = vpop.f32.mrf.mxu0
      %v580 = vadd.f32 0.0, %v579
      %v581 = vpop.f32.mrf.mxu0
      %v582 = vpop.f32.mrf.mxu0
      %v583 = vadd.f32 0.0, %v582
      %v584 = vpop.f32.mrf.mxu0
      %585 = vmatprep.mubr.bf16.mxu0 %v474
      %586 = vmatmul.mubr.bf16.gmra.mxu0 %v362
      %v587 = vpop.f32.mrf.mxu0
      %v588 = vadd.f32 0.0, %v587
      %v589 = vpop.f32.mrf.mxu0
      %v590 = vpop.f32.mrf.mxu0
      %v591 = vadd.f32 0.0, %v590
      %v592 = vpop.f32.mrf.mxu0
      %593 = vmatprep.mubr.bf16.mxu0 %v477
      %594 = vmatmul.mubr.bf16.gmra.mxu0 %v364
      %v595 = vpop.f32.mrf.mxu0
      %v596 = vadd.f32 0.0, %v595
      %v597 = vpop.f32.mrf.mxu0
      %v598 = vpop.f32.mrf.mxu0
      %v599 = vadd.f32 0.0, %v598
      %v600 = vpop.f32.mrf.mxu0
      %601 = vmatprep.mubr.bf16.mxu0 %v480
      %602 = vmatmul.mubr.bf16.gmra.mxu0 %v366
      %v603 = vpop.f32.mrf.mxu0
      %v604 = vadd.f32 0.0, %v603
      %v605 = vpop.f32.mrf.mxu0
      %v606 = vpop.f32.mrf.mxu0
      %v607 = vadd.f32 0.0, %v606
      %v608 = vpop.f32.mrf.mxu0
      %609 = vmatprep.mubr.bf16.mxu0 %v483
      %610 = vmatmul.mubr.bf16.gmra.mxu0 %v368
      %v611 = vpop.f32.mrf.mxu0
      %v612 = vadd.f32 0.0, %v611
      %v613 = vpop.f32.mrf.mxu0
      %v614 = vpop.f32.mrf.mxu0
      %v615 = vadd.f32 0.0, %v614
      %v616 = vpop.f32.mrf.mxu0
      %617 = vmatprep.mubr.bf16.mxu0 %v486
      %618 = vmatmul.mubr.bf16.gmra.mxu0 %v370
      %v619 = vpop.f32.mrf.mxu0
      %v620 = vadd.f32 0.0, %v619
      %v621 = vpop.f32.mrf.mxu0
      %v622 = vpop.f32.mrf.mxu0
      %v623 = vadd.f32 0.0, %v622
      %v624 = vpop.f32.mrf.mxu0
      %625 = vmatprep.mubr.bf16.mxu0 %v489
      %626 = vmatmul.mubr.bf16.gmra.mxu0 %v372
      %v627 = vpop.f32.mrf.mxu0
      %v628 = vadd.f32 0.0, %v627
      %v629 = vpop.f32.mrf.mxu0
      %v630 = vpop.f32.mrf.mxu0
      %v631 = vadd.f32 0.0, %v630
      %v632 = vpop.f32.mrf.mxu0
      %633 = vmatprep.mubr.bf16.mxu0 %v492
      %634 = vmatmul.mubr.bf16.gmra.mxu0 %v374
      %v635 = vpop.f32.mrf.mxu0
      %v636 = vadd.f32 0.0, %v635
      %v637 = vpop.f32.mrf.mxu0
      %v638 = vpop.f32.mrf.mxu0
      %v639 = vadd.f32 0.0, %v638
      %v640 = vpop.f32.mrf.mxu0
      %641 = vmatprep.mubr.bf16.mxu0 %v495
      %642 = vmatmul.mubr.bf16.gmra.mxu0 %v376
      %v643 = vpop.f32.mrf.mxu0
      %v644 = vadd.f32 0.0, %v643
      %v645 = vpop.f32.mrf.mxu0
      %v646 = vpop.f32.mrf.mxu0
      %v647 = vadd.f32 0.0, %v646
      %v648 = vpop.f32.mrf.mxu0
      %649 = vmatprep.mubr.bf16.mxu0 %v498
      %650 = vmatmul.mubr.bf16.gmra.mxu0 %v378
      %v651 = vpop.f32.mrf.mxu0
      %v652 = vadd.f32 0.0, %v651
      %v653 = vpop.f32.mrf.mxu0
      %v654 = vpop.f32.mrf.mxu0
      %v655 = vadd.f32 0.0, %v654
      %v656 = vpop.f32.mrf.mxu0
      %657 = vmatprep.mubr.bf16.mxu0 %v501
      %658 = vmatmul.mubr.bf16.gmra.mxu0 %v380
      %v659 = vpop.f32.mrf.mxu0
      %v660 = vadd.f32 0.0, %v659
      %v661 = vpop.f32.mrf.mxu0
      %v662 = vpop.f32.mrf.mxu0
      %v663 = vadd.f32 0.0, %v662
      %v664 = vpop.f32.mrf.mxu0
      %665 = vmatprep.mubr.bf16.mxu0 %v504
      %666 = vmatmul.mubr.bf16.gmra.mxu0 %v382
      %v667 = vpop.f32.mrf.mxu0
      %v668 = vadd.f32 0.0, %v667
      %v669 = vpop.f32.mrf.mxu0
      %v670 = vpop.f32.mrf.mxu0
      %v671 = vadd.f32 0.0, %v670
      %v672 = vpop.f32.mrf.mxu0
      %673 = vdwg.mxu0
      %v674 = vld [vmem:[%s2] sm:$0x1]
      %v676 = vlaneseq
      %v677 = vshrl.u32 %v676, 7
      %v678 = vsub.s32 0, %v677
      %v679 = vrot.slane %v674, %v678
      %v681 = vmul.f32 %v548, %v679
      %v682 = vmul.f32 %v551, %v679
      %v683 = vmul.f32 %v556, %v679
      %v684 = vmul.f32 %v559, %v679
      %v685 = vmul.f32 %v564, %v679
      %v686 = vmul.f32 %v567, %v679
      %v687 = vmul.f32 %v572, %v679
      %v688 = vmul.f32 %v575, %v679
      %v689 = vmul.f32 %v580, %v679
      %v690 = vmul.f32 %v583, %v679
      %v691 = vmul.f32 %v588, %v679
      %v692 = vmul.f32 %v591, %v679
      %v693 = vmul.f32 %v596, %v679
      %v694 = vmul.f32 %v599, %v679
      %v695 = vmul.f32 %v604, %v679
      %v696 = vmul.f32 %v607, %v679
      %v697 = vmul.f32 %v612, %v679
      %v698 = vmul.f32 %v615, %v679
      %v699 = vmul.f32 %v620, %v679
      %v700 = vmul.f32 %v623, %v679
      %v701 = vmul.f32 %v628, %v679
      %v702 = vmul.f32 %v631, %v679
      %v703 = vmul.f32 %v636, %v679
      %v704 = vmul.f32 %v639, %v679
      %v705 = vmul.f32 %v644, %v679
      %v706 = vmul.f32 %v647, %v679
      %v707 = vmul.f32 %v652, %v679
      %v708 = vmul.f32 %v655, %v679
      %v709 = vmul.f32 %v660, %v679
      %v710 = vmul.f32 %v663, %v679
      %v711 = vmul.f32 %v668, %v679
      %v712 = vmul.f32 %v671, %v679
      %v713 = vld [vmem:[%s3] sm:$0x1]
      %v715 = vlaneseq
      %v716 = vshrl.u32 %v715, 7
      %v717 = vsub.s32 0, %v716
      %v718 = vrot.slane %v713, %v717
      %v720 = vadd.f32 %v681, %v718
      %v721 = vadd.f32 %v682, %v718
      %v722 = vadd.f32 %v683, %v718
      %v723 = vadd.f32 %v684, %v718
      %v724 = vadd.f32 %v685, %v718
      %v725 = vadd.f32 %v686, %v718
      %v726 = vadd.f32 %v687, %v718
      %v727 = vadd.f32 %v688, %v718
      %v728 = vadd.f32 %v689, %v718
      %v729 = vadd.f32 %v690, %v718
      %v730 = vadd.f32 %v691, %v718
      %v731 = vadd.f32 %v692, %v718
      %v732 = vadd.f32 %v693, %v718
      %v733 = vadd.f32 %v694, %v718
      %v734 = vadd.f32 %v695, %v718
      %v735 = vadd.f32 %v696, %v718
      %v736 = vadd.f32 %v697, %v718
      %v737 = vadd.f32 %v698, %v718
      %v738 = vadd.f32 %v699, %v718
      %v739 = vadd.f32 %v700, %v718
      %v740 = vadd.f32 %v701, %v718
      %v741 = vadd.f32 %v702, %v718
      %v742 = vadd.f32 %v703, %v718
      %v743 = vadd.f32 %v704, %v718
      %v744 = vadd.f32 %v705, %v718
      %v745 = vadd.f32 %v706, %v718
      %v746 = vadd.f32 %v707, %v718
      %v747 = vadd.f32 %v708, %v718
      %v748 = vadd.f32 %v709, %v718
      %v749 = vadd.f32 %v710, %v718
      %v750 = vadd.f32 %v711, %v718
      %v751 = vadd.f32 %v712, %v718
      %v752 = vmax.f32 %v720, 0.0
      %v753 = vmax.f32 %v721, 0.0
      %v754 = vmax.f32 %v722, 0.0
      %v755 = vmax.f32 %v723, 0.0
      %v756 = vmax.f32 %v724, 0.0
      %v757 = vmax.f32 %v725, 0.0
      %v758 = vmax.f32 %v726, 0.0
      %v759 = vmax.f32 %v727, 0.0
      %v760 = vmax.f32 %v728, 0.0
      %v761 = vmax.f32 %v729, 0.0
      %v762 = vmax.f32 %v730, 0.0
      %v763 = vmax.f32 %v731, 0.0
      %v764 = vmax.f32 %v732, 0.0
      %v765 = vmax.f32 %v733, 0.0
      %v766 = vmax.f32 %v734, 0.0
      %v767 = vmax.f32 %v735, 0.0
      %v768 = vmax.f32 %v736, 0.0
      %v769 = vmax.f32 %v737, 0.0
      %v770 = vmax.f32 %v738, 0.0
      %v771 = vmax.f32 %v739, 0.0
      %v772 = vmax.f32 %v740, 0.0
      %v773 = vmax.f32 %v741, 0.0
      %v774 = vmax.f32 %v742, 0.0
      %v775 = vmax.f32 %v743, 0.0
      %v776 = vmax.f32 %v744, 0.0
      %v777 = vmax.f32 %v745, 0.0
      %v778 = vmax.f32 %v746, 0.0
      %v779 = vmax.f32 %v747, 0.0
      %v780 = vmax.f32 %v748, 0.0
      %v781 = vmax.f32 %v749, 0.0
      %v782 = vmax.f32 %v750, 0.0
      %v783 = vmax.f32 %v751, 0.0
      %784 = vst [vmem:[%s202] sm:$0xff] %v752
      %785 = vst [vmem:[%s202 + $0x8] sm:$0xff] %v753
      %786 = vst [vmem:[%s202 + $0x10] sm:$0xff] %v754
      %787 = vst [vmem:[%s202 + $0x18] sm:$0xff] %v755
      %788 = vst [vmem:[%s202 + $0x20] sm:$0xff] %v756
      %789 = vst [vmem:[%s202 + $0x28] sm:$0xff] %v757
      %790 = vst [vmem:[%s202 + $0x30] sm:$0xff] %v758
      %791 = vst [vmem:[%s202 + $0x38] sm:$0xff] %v759
      %792 = vst [vmem:[%s202 + $0x40] sm:$0xff] %v760
      %793 = vst [vmem:[%s202 + $0x48] sm:$0xff] %v761
      %794 = vst [vmem:[%s202 + $0x50] sm:$0xff] %v762
      %795 = vst [vmem:[%s202 + $0x58] sm:$0xff] %v763
      %796 = vst [vmem:[%s202 + $0x60] sm:$0xff] %v764
      %797 = vst [vmem:[%s202 + $0x68] sm:$0xff] %v765
      %798 = vst [vmem:[%s202 + $0x70] sm:$0xff] %v766
      %799 = vst [vmem:[%s202 + $0x78] sm:$0xff] %v767
      %800 = vst [vmem:[%s202 + $0x80] sm:$0xff] %v768
      %801 = vst [vmem:[%s202 + $0x88] sm:$0xff] %v769
      %802 = vst [vmem:[%s202 + $0x90] sm:$0xff] %v770
      %803 = vst [vmem:[%s202 + $0x98] sm:$0xff] %v771
      %804 = vst [vmem:[%s202 + $0xa0] sm:$0xff] %v772
      %805 = vst [vmem:[%s202 + $0xa8] sm:$0xff] %v773
      %806 = vst [vmem:[%s202 + $0xb0] sm:$0xff] %v774
      %807 = vst [vmem:[%s202 + $0xb8] sm:$0xff] %v775
      %808 = vst [vmem:[%s202 + $0xc0] sm:$0xff] %v776
      %809 = vst [vmem:[%s202 + $0xc8] sm:$0xff] %v777
      %810 = vst [vmem:[%s202 + $0xd0] sm:$0xff] %v778
      %811 = vst [vmem:[%s202 + $0xd8] sm:$0xff] %v779
      %812 = vst [vmem:[%s202 + $0xe0] sm:$0xff] %v780
      %813 = vst [vmem:[%s202 + $0xe8] sm:$0xff] %v781
      %814 = vst [vmem:[%s202 + $0xf0] sm:$0xff] %v782
      %815 = vst [vmem:[%s202 + $0xf8] sm:$0xff] %v783
      %s816 = smul.u32 32, %s15
      %p817 = scmp.lt.s32.totalorder %s816, 63
      %s818 = scalar_select %p817, %s816, 63
      %s819 = smul.addr %s818, 8
      %s820 = scalar_lea.vmem %s4, %s819
      // Predicated region
      $region37: #{feature_extractor_forward.8} parent=35 // pred_check
        %p821 = pneg %p122
      $region38: #{feature_extractor_forward.8} parent=35 // pred_check_branch
        %823 = sbr.rel (%p821) target = $region40
      $region39: #{feature_extractor_forward.8} parent=35 // pred_region
        %s824 = smul.u32 32, %s15
      $region40: #{feature_extractor_forward.8} parent=35 // pred_fallthru
        _
    $region36: #{feature_extractor_forward.8} parent=5 // pred_fallthru
      _
    %p825 = scmp.le.s32.totalorder 2, %s10
    // Predicated region
    $region41: #{feature_extractor_forward.8} parent=5 // pred_check
      %p826 = pneg %p825
    $region42: #{feature_extractor_forward.8} parent=5 // pred_check_branch
      %828 = sbr.rel (%p826) target = $region44
    $region43: #{feature_extractor_forward.8} parent=5 // pred_region
      %s829 = ssub.s32 %s10, 2
      // Predicated region
      $region45: #{feature_extractor_forward.8} parent=43 // pred_check
        %p830 = pneg %p128
      $region46: #{feature_extractor_forward.8} parent=43 // pred_check_branch
        %832 = sbr.rel (%p830) target = $region48
      $region47: #{feature_extractor_forward.8} parent=43 // pred_region
        %s833 = smul.u32 32, %s16
        %p834 = scmp.lt.s32.totalorder %s833, 63
        %s835 = scalar_select %p834, %s833, 63
        %s836 = smul.addr %s835, 8
        %s837 = scalar_lea.vmem %s4, %s836
      $region48: #{feature_extractor_forward.8} parent=43 // pred_fallthru
        _
    $region44: #{feature_extractor_forward.8} parent=5 // pred_fallthru
      _
  $region6: #{feature_extractor_forward.8} parent=0 // loop_footer
    %s14 = sadd.s32 1, %s10
  $region7: #{feature_extractor_forward.8} parent=0 // loop_footer_branch
    %9 = sbr.rel target = $region3
  $region8: #{feature_extractor_forward.8} parent=0 // loop_exit
    _

// kernel: feature_extractor_forward.9
$region0: #{feature_extractor_forward.9}
  #allocation0 [shape = 'u32[]', space=smem, size = 0x4, offset = 0x4, fixed_abs, tag = 'smem constant byte address 0x4 - core index']
  #allocation1 [shape = 'u32[144,128]{1,0:T(1,128)}', space=vmem, size = 0x12000, scoped, tag = 'internal scratch']
  %s0 = inlined_call_operand.vmem [shape: f32[2,18,18,128], index: 0, kind: input, shape index: {}]
  %s1 = inlined_call_operand.vmem [shape: f32[2,16,16,128], index: 1, kind: output, shape index: {}]
  %s2 = sld [smem:[#allocation0]]
  $region37: #{feature_extractor_forward.9} parent=0
    _
  %s4 = ssub.s32 1, %s2
  %s5 = scalar_select 0, %s4, %s2
  loop: start=0, step=1, limit=4
  $region2: #{feature_extractor_forward.9} parent=0 // loop_pre_header
    _
  $region3: #{feature_extractor_forward.9} parent=0 // loop_header
    %s7 = sphi 0, %s11
    %p8 = scmp.ge.s32.totalorder %s7, 4
    %s17 = sphi 0, %s19
    %s20 = sphi 0, %s17
    %s21 = sphi 0, %s20
    %s37 = sphi 0, %s21
    %s43 = sphi 0, %s45
    %s46 = sphi 0, %s43
    %s47 = sphi 0, %s46
    %s63 = sphi 0, %s47
  $region4: #{feature_extractor_forward.9} parent=0 // loop_header_branch
    %10 = sbr.rel (%p8) target = $region8
  $region5: #{feature_extractor_forward.9} parent=0 // loop_body
    %s12 = ssub.s32 %s7, 1
    %s13 = ssub.s32 %s7, 2
    %s14 = sadd.s32 %s7, 1
    %s15 = ssub.s32 %s7, %s14
    %p16 = scmp.eq.s32.totalorder %s15, 0
    %s18 = sadd.s32 %s17, 1
    %s19 = scalar_select %p16, %s17, %s18
    %p22 = pneg %p16
    %p23 = scmp.eq.s32.totalorder %s7, 1
    %p24 = por %p22, %p23
    %p25 = scmp.ne.s32.totalorder %s17, %s20
    %p26 = scmp.eq.s32.totalorder %s7, 0
    %p27 = por %p25, %p26
    %p28 = scmp.ne.s32.totalorder %s17, %s20
    %p29 = scmp.eq.s32.totalorder %s12, 1
    %p30 = por %p28, %p29
    %p31 = scmp.ne.s32.totalorder %s20, %s21
    %p32 = scmp.eq.s32.totalorder %s12, 0
    %p33 = por %p31, %p32
    %p34 = scmp.ne.s32.totalorder %s20, %s21
    %p35 = scmp.eq.s32.totalorder %s13, 1
    %p36 = por %p34, %p35
    %p38 = scmp.ne.s32.totalorder %s21, %s37
    %p39 = scmp.eq.s32.totalorder %s13, 0
    %p40 = por %p38, %p39
    %s41 = ssub.s32 %s7, %s14
    %p42 = scmp.eq.s32.totalorder %s41, 0
    %s44 = sadd.s32 %s43, 1
    %s45 = scalar_select %p42, %s43, %s44
    %p48 = pneg %p42
    %p49 = scmp.eq.s32.totalorder %s7, 1
    %p50 = por %p48, %p49
    %p51 = scmp.ne.s32.totalorder %s43, %s46
    %p52 = scmp.eq.s32.totalorder %s7, 0
    %p53 = por %p51, %p52
    %p54 = scmp.ne.s32.totalorder %s43, %s46
    %p55 = scmp.eq.s32.totalorder %s12, 1
    %p56 = por %p54, %p55
    %p57 = scmp.ne.s32.totalorder %s46, %s47
    %p58 = scmp.eq.s32.totalorder %s12, 0
    %p59 = por %p57, %p58
    %p60 = scmp.ne.s32.totalorder %s46, %s47
    %p61 = scmp.eq.s32.totalorder %s13, 1
    %p62 = por %p60, %p61
    %p64 = scmp.ne.s32.totalorder %s47, %s63
    %p65 = scmp.eq.s32.totalorder %s13, 0
    %p66 = por %p64, %p65
    %p67 = scmp.le.s32.totalorder 1, %s7
    %p68 = scmp.lt.s32.totalorder %s7, 3
    %p69 = pnand %p67, %p68
    %p70 = pneg %p69
    // Predicated region
    $region9: #{feature_extractor_forward.9} parent=5 // pred_check
      _
    $region10: #{feature_extractor_forward.9} parent=5 // pred_check_branch
      %72 = sbr.rel (%p69) target = $region12
    $region11: #{feature_extractor_forward.9} parent=5 // pred_region
      %s73 = ssub.s32 %s7, 1
    $region12: #{feature_extractor_forward.9} parent=5 // pred_fallthru
      _
    %p74 = scmp.lt.s32.totalorder %s7, 2
    // Predicated region
    $region13: #{feature_extractor_forward.9} parent=5 // pred_check
      %p75 = pneg %p74
    $region14: #{feature_extractor_forward.9} parent=5 // pred_check_branch
      %77 = sbr.rel (%p75) target = $region16
    $region15: #{feature_extractor_forward.9} parent=5 // pred_region
      // Predicated region
      $region17: #{feature_extractor_forward.9} parent=15 // pred_check
        %p78 = pneg %p27
      $region18: #{feature_extractor_forward.9} parent=15 // pred_check_branch
        %80 = sbr.rel (%p78) target = $region20
      $region19: #{feature_extractor_forward.9} parent=15 // pred_region
        %p81 = scmp.lt.s32.totalorder %s7, 1
        %s82 = scalar_select %p81, %s7, 1
        %s83 = smul.addr %s82, 54
        %s84 = smul.addr %s83, 8
        %s85 = scalar_lea.vmem %s0, %s84
      $region20: #{feature_extractor_forward.9} parent=15 // pred_fallthru
        _
    $region16: #{feature_extractor_forward.9} parent=5 // pred_fallthru
      _
    %p86 = scmp.le.s32.totalorder 1, %s7
    %p87 = scmp.lt.s32.totalorder %s7, 3
    %p88 = pnand %p86, %p87
    %p89 = pneg %p88
    // Predicated region
    $region21: #{feature_extractor_forward.9} parent=5 // pred_check
      _
    $region22: #{feature_extractor_forward.9} parent=5 // pred_check_branch
      %91 = sbr.rel (%p88) target = $region24
    $region23: #{feature_extractor_forward.9} parent=5 // pred_region
      %s92 = ssub.s32 %s7, 1
      %p93 = scmp.lt.s32.totalorder %s12, 1
      %s94 = scalar_select %p93, %s12, 1
      %s95 = smul.addr %s94, 54
      %s96 = smul.addr %s95, 8
      %s97 = scalar_lea.vmem %s0, %s96
      %p98 = pneg %p33
      %p99 = pneg %p30
      %p100 = pneg %p59
      %p101 = pneg %p56
      %p102 = scmp.lt.s32.totalorder %s12, 1
      %s103 = scalar_select %p102, %s12, 1
      %s104 = smul.addr %s103, 32
      %s105 = smul.addr %s104, 8
      %s106 = scalar_lea.vmem %s1, %s105
      %p107 = scmp.lt.s32.totalorder %s12, 1
      %s108 = scalar_select %p107, %s12, 1
      %s109 = smul.addr %s108, 54
      %s110 = smul.addr %s109, 8
      %s111 = scalar_lea.vmem %s0, %s110
      %p112 = scmp.lt.s32.totalorder %s12, 1
      %s113 = scalar_select %p112, %s12, 1
      %s114 = smul.addr %s113, 32
      %s115 = smul.addr %s114, 8
      %s116 = scalar_lea.vmem %s1, %s115
      %v117 = vld [vmem:[%s111] sm:$0xff]
      %v118 = vld [vmem:[%s111 + $0x8] sm:$0xff]
      %v119 = vld [vmem:[%s111 + $0x10] sm:$0x3]
      %v120 = vld [vmem:[%s111 + $0x18] sm:$0xff]
      %v121 = vld [vmem:[%s111 + $0x20] sm:$0xff]
      %v122 = vld [vmem:[%s111 + $0x28] sm:$0x3]
      %v123 = vld [vmem:[%s111 + $0x30] sm:$0xff]
      %v124 = vld [vmem:[%s111 + $0x38] sm:$0xff]
      %v125 = vld [vmem:[%s111 + $0x40] sm:$0x3]
      %v126 = vld [vmem:[%s111 + $0x48] sm:$0xff]
      %v127 = vld [vmem:[%s111 + $0x50] sm:$0xff]
      %v128 = vld [vmem:[%s111 + $0x58] sm:$0x3]
      %v129 = vld [vmem:[%s111 + $0x60] sm:$0xff]
      %v130 = vld [vmem:[%s111 + $0x68] sm:$0xff]
      %v131 = vld [vmem:[%s111 + $0x70] sm:$0x3]
      %v132 = vld [vmem:[%s111 + $0x78] sm:$0xff]
      %v133 = vld [vmem:[%s111 + $0x80] sm:$0xff]
      %v134 = vld [vmem:[%s111 + $0x88] sm:$0x3]
      %v135 = vld [vmem:[%s111 + $0x90] sm:$0xff]
      %v136 = vld [vmem:[%s111 + $0x98] sm:$0xff]
      %v137 = vld [vmem:[%s111 + $0xa0] sm:$0x3]
      %v138 = vld [vmem:[%s111 + $0xa8] sm:$0xff]
      %v139 = vld [vmem:[%s111 + $0xb0] sm:$0xff]
      %v140 = vld [vmem:[%s111 + $0xb8] sm:$0x3]
      %v141 = vld [vmem:[%s111 + $0xc0] sm:$0xff]
      %v142 = vld [vmem:[%s111 + $0xc8] sm:$0xff]
      %v143 = vld [vmem:[%s111 + $0xd0] sm:$0x3]
      %v144 = vld [vmem:[%s111 + $0xd8] sm:$0xff]
      %v145 = vld [vmem:[%s111 + $0xe0] sm:$0xff]
      %v146 = vld [vmem:[%s111 + $0xe8] sm:$0x3]
      %v147 = vld [vmem:[%s111 + $0xf0] sm:$0xff]
      %v148 = vld [vmem:[%s111 + $0xf8] sm:$0xff]
      %v149 = vld [vmem:[%s111 + $0x100] sm:$0x3]
      %v150 = vld [vmem:[%s111 + $0x108] sm:$0xff]
      %v151 = vld [vmem:[%s111 + $0x110] sm:$0xff]
      %v152 = vld [vmem:[%s111 + $0x118] sm:$0x3]
      %v153 = vld [vmem:[%s111 + $0x120] sm:$0xff]
      %v154 = vld [vmem:[%s111 + $0x128] sm:$0xff]
      %v155 = vld [vmem:[%s111 + $0x130] sm:$0x3]
      %v156 = vld [vmem:[%s111 + $0x138] sm:$0xff]
      %v157 = vld [vmem:[%s111 + $0x140] sm:$0xff]
      %v158 = vld [vmem:[%s111 + $0x148] sm:$0x3]
      %v159 = vld [vmem:[%s111 + $0x150] sm:$0xff]
      %v160 = vld [vmem:[%s111 + $0x158] sm:$0xff]
      %v161 = vld [vmem:[%s111 + $0x160] sm:$0x3]
      %v162 = vld [vmem:[%s111 + $0x168] sm:$0xff]
      %v163 = vld [vmem:[%s111 + $0x170] sm:$0xff]
      %v164 = vld [vmem:[%s111 + $0x178] sm:$0x3]
      %v165 = vld [vmem:[%s111 + $0x180] sm:$0xff]
      %v166 = vld [vmem:[%s111 + $0x188] sm:$0xff]
      %v167 = vld [vmem:[%s111 + $0x190] sm:$0x3]
      %v168 = vld [vmem:[%s111 + $0x198] sm:$0xff]
      %v169 = vld [vmem:[%s111 + $0x1a0] sm:$0xff]
      %v170 = vld [vmem:[%s111 + $0x1a8] sm:$0x3]
      %vm219 = vcmask 1046528
      %v220 = vrot.slane %v117, 1
      %v221 = vrot.slane %v118, 1
      %v222 = vsel %vm219, %v220, %v221
      %v223 = vrot.slane %v119, 1
      %v224 = vsel %vm219, %v221, %v223
      %v225 = vrot.slane %v120, 1
      %v226 = vrot.slane %v121, 1
      %v227 = vsel %vm219, %v225, %v226
      %v228 = vrot.slane %v122, 1
      %v229 = vsel %vm219, %v226, %v228
      %v230 = vrot.slane %v123, 1
      %v231 = vrot.slane %v124, 1
      %v232 = vsel %vm219, %v230, %v231
      %v233 = vrot.slane %v125, 1
      %v234 = vsel %vm219, %v231, %v233
      %v235 = vrot.slane %v126, 1
      %v236 = vrot.slane %v127, 1
      %v237 = vsel %vm219, %v235, %v236
      %v238 = vrot.slane %v128, 1
      %v239 = vsel %vm219, %v236, %v238
      %v240 = vrot.slane %v129, 1
      %v241 = vrot.slane %v130, 1
      %v242 = vsel %vm219, %v240, %v241
      %v243 = vrot.slane %v131, 1
      %v244 = vsel %vm219, %v241, %v243
      %v245 = vrot.slane %v132, 1
      %v246 = vrot.slane %v133, 1
      %v247 = vsel %vm219, %v245, %v246
      %v248 = vrot.slane %v134, 1
      %v249 = vsel %vm219, %v246, %v248
      %v250 = vrot.slane %v135, 1
      %v251 = vrot.slane %v136, 1
      %v252 = vsel %vm219, %v250, %v251
      %v253 = vrot.slane %v137, 1
      %v254 = vsel %vm219, %v251, %v253
      %v255 = vrot.slane %v138, 1
      %v256 = vrot.slane %v139, 1
      %v257 = vsel %vm219, %v255, %v256
      %v258 = vrot.slane %v140, 1
      %v259 = vsel %vm219, %v256, %v258
      %v260 = vrot.slane %v141, 1
      %v261 = vrot.slane %v142, 1
      %v262 = vsel %vm219, %v260, %v261
      %v263 = vrot.slane %v143, 1
      %v264 = vsel %vm219, %v261, %v263
      %v265 = vrot.slane %v144, 1
      %v266 = vrot.slane %v145, 1
      %v267 = vsel %vm219, %v265, %v266
      %v268 = vrot.slane %v146, 1
      %v269 = vsel %vm219, %v266, %v268
      %v270 = vrot.slane %v147, 1
      %v271 = vrot.slane %v148, 1
      %v272 = vsel %vm219, %v270, %v271
      %v273 = vrot.slane %v149, 1
      %v274 = vsel %vm219, %v271, %v273
      %v275 = vrot.slane %v150, 1
      %v276 = vrot.slane %v151, 1
      %v277 = vsel %vm219, %v275, %v276
      %v278 = vrot.slane %v152, 1
      %v279 = vsel %vm219, %v276, %v278
      %v280 = vrot.slane %v153, 1
      %v281 = vrot.slane %v154, 1
      %v282 = vsel %vm219, %v280, %v281
      %v283 = vrot.slane %v155, 1
      %v284 = vsel %vm219, %v281, %v283
      %v285 = vrot.slane %v156, 1
      %v286 = vrot.slane %v157, 1
      %v287 = vsel %vm219, %v285, %v286
      %v288 = vrot.slane %v158, 1
      %v289 = vsel %vm219, %v286, %v288
      %v290 = vrot.slane %v159, 1
      %v291 = vrot.slane %v160, 1
      %v292 = vsel %vm219, %v290, %v291
      %v293 = vrot.slane %v161, 1
      %v294 = vsel %vm219, %v291, %v293
      %v295 = vrot.slane %v162, 1
      %v296 = vrot.slane %v163, 1
      %v297 = vsel %vm219, %v295, %v296
      %v298 = vrot.slane %v164, 1
      %v299 = vsel %vm219, %v296, %v298
      %v332 = vmax.f32 %v117, %v222
      %v333 = vmax.f32 %v118, %v224
      %v334 = vmax.f32 %v120, %v227
      %v335 = vmax.f32 %v121, %v229
      %v336 = vmax.f32 %v123, %v232
      %v337 = vmax.f32 %v124, %v234
      %v338 = vmax.f32 %v126, %v237
      %v339 = vmax.f32 %v127, %v239
      %v340 = vmax.f32 %v129, %v242
      %v341 = vmax.f32 %v130, %v244
      %v342 = vmax.f32 %v132, %v247
      %v343 = vmax.f32 %v133, %v249
      %v344 = vmax.f32 %v135, %v252
      %v345 = vmax.f32 %v136, %v254
      %v346 = vmax.f32 %v138, %v257
      %v347 = vmax.f32 %v139, %v259
      %v348 = vmax.f32 %v141, %v262
      %v349 = vmax.f32 %v142, %v264
      %v350 = vmax.f32 %v144, %v267
      %v351 = vmax.f32 %v145, %v269
      %v352 = vmax.f32 %v147, %v272
      %v353 = vmax.f32 %v148, %v274
      %v354 = vmax.f32 %v150, %v277
      %v355 = vmax.f32 %v151, %v279
      %v356 = vmax.f32 %v153, %v282
      %v357 = vmax.f32 %v154, %v284
      %v358 = vmax.f32 %v156, %v287
      %v359 = vmax.f32 %v157, %v289
      %v360 = vmax.f32 %v159, %v292
      %v361 = vmax.f32 %v160, %v294
      %v362 = vmax.f32 %v162, %v297
      %v363 = vmax.f32 %v163, %v299
      %vm364 = vcmask 1045504
      %v365 = vrot.slane %v117, 2
      %v366 = vrot.slane %v118, 2
      %v367 = vsel %vm364, %v365, %v366
      %v368 = vrot.slane %v119, 2
      %v369 = vsel %vm364, %v366, %v368
      %v370 = vrot.slane %v120, 2
      %v371 = vrot.slane %v121, 2
      %v372 = vsel %vm364, %v370, %v371
      %v373 = vrot.slane %v122, 2
      %v374 = vsel %vm364, %v371, %v373
      %v375 = vrot.slane %v123, 2
      %v376 = vrot.slane %v124, 2
      %v377 = vsel %vm364, %v375, %v376
      %v378 = vrot.slane %v125, 2
      %v379 = vsel %vm364, %v376, %v378
      %v380 = vrot.slane %v126, 2
      %v381 = vrot.slane %v127, 2
      %v382 = vsel %vm364, %v380, %v381
      %v383 = vrot.slane %v128, 2
      %v384 = vsel %vm364, %v381, %v383
      %v385 = vrot.slane %v129, 2
      %v386 = vrot.slane %v130, 2
      %v387 = vsel %vm364, %v385, %v386
      %v388 = vrot.slane %v131, 2
      %v389 = vsel %vm364, %v386, %v388
      %v390 = vrot.slane %v132, 2
      %v391 = vrot.slane %v133, 2
      %v392 = vsel %vm364, %v390, %v391
      %v393 = vrot.slane %v134, 2
      %v394 = vsel %vm364, %v391, %v393
      %v395 = vrot.slane %v135, 2
      %v396 = vrot.slane %v136, 2
      %v397 = vsel %vm364, %v395, %v396
      %v398 = vrot.slane %v137, 2
      %v399 = vsel %vm364, %v396, %v398
      %v400 = vrot.slane %v138, 2
      %v401 = vrot.slane %v139, 2
      %v402 = vsel %vm364, %v400, %v401
      %v403 = vrot.slane %v140, 2
      %v404 = vsel %vm364, %v401, %v403
      %v405 = vrot.slane %v141, 2
      %v406 = vrot.slane %v142, 2
      %v407 = vsel %vm364, %v405, %v406
      %v408 = vrot.slane %v143, 2
      %v409 = vsel %vm364, %v406, %v408
      %v410 = vrot.slane %v144, 2
      %v411 = vrot.slane %v145, 2
      %v412 = vsel %vm364, %v410, %v411
      %v413 = vrot.slane %v146, 2
      %v414 = vsel %vm364, %v411, %v413
      %v415 = vrot.slane %v147, 2
      %v416 = vrot.slane %v148, 2
      %v417 = vsel %vm364, %v415, %v416
      %v418 = vrot.slane %v149, 2
      %v419 = vsel %vm364, %v416, %v418
      %v420 = vrot.slane %v150, 2
      %v421 = vrot.slane %v151, 2
      %v422 = vsel %vm364, %v420, %v421
      %v423 = vrot.slane %v152, 2
      %v424 = vsel %vm364, %v421, %v423
      %v425 = vrot.slane %v153, 2
      %v426 = vrot.slane %v154, 2
      %v427 = vsel %vm364, %v425, %v426
      %v428 = vrot.slane %v155, 2
      %v429 = vsel %vm364, %v426, %v428
      %v430 = vrot.slane %v156, 2
      %v431 = vrot.slane %v157, 2
      %v432 = vsel %vm364, %v430, %v431
      %v433 = vrot.slane %v158, 2
      %v434 = vsel %vm364, %v431, %v433
      %v435 = vrot.slane %v159, 2
      %v436 = vrot.slane %v160, 2
      %v437 = vsel %vm364, %v435, %v436
      %v438 = vrot.slane %v161, 2
      %v439 = vsel %vm364, %v436, %v438
      %v440 = vrot.slane %v162, 2
      %v441 = vrot.slane %v163, 2
      %v442 = vsel %vm364, %v440, %v441
      %v443 = vrot.slane %v164, 2
      %v444 = vsel %vm364, %v441, %v443
      %v477 = vmax.f32 %v332, %v367
      %v478 = vmax.f32 %v333, %v369
      %v479 = vmax.f32 %v334, %v372
      %v480 = vmax.f32 %v335, %v374
      %v481 = vmax.f32 %v336, %v377
      %v482 = vmax.f32 %v337, %v379
      %v483 = vmax.f32 %v338, %v382
      %v484 = vmax.f32 %v339, %v384
      %v485 = vmax.f32 %v340, %v387
      %v486 = vmax.f32 %v341, %v389
      %v487 = vmax.f32 %v342, %v392
      %v488 = vmax.f32 %v343, %v394
      %v489 = vmax.f32 %v344, %v397
      %v490 = vmax.f32 %v345, %v399
      %v491 = vmax.f32 %v346, %v402
      %v492 = vmax.f32 %v347, %v404
      %v493 = vmax.f32 %v348, %v407
      %v494 = vmax.f32 %v349, %v409
      %v495 = vmax.f32 %v350, %v412
      %v496 = vmax.f32 %v351, %v414
      %v497 = vmax.f32 %v352, %v417
      %v498 = vmax.f32 %v353, %v419
      %v499 = vmax.f32 %v354, %v422
      %v500 = vmax.f32 %v355, %v424
      %v501 = vmax.f32 %v356, %v427
      %v502 = vmax.f32 %v357, %v429
      %v503 = vmax.f32 %v358, %v432
      %v504 = vmax.f32 %v359, %v434
      %v505 = vmax.f32 %v360, %v437
      %v506 = vmax.f32 %v361, %v439
      %v507 = vmax.f32 %v362, %v442
      %v508 = vmax.f32 %v363, %v444
      %v509 = vmax.f32 %v477, %v120
      %v510 = vmax.f32 %v478, %v121
      %v511 = vmax.f32 %v479, %v123
      %v512 = vmax.f32 %v480, %v124
      %v513 = vmax.f32 %v481, %v126
      %v514 = vmax.f32 %v482, %v127
      %v515 = vmax.f32 %v483, %v129
      %v516 = vmax.f32 %v484, %v130
      %v517 = vmax.f32 %v485, %v132
      %v518 = vmax.f32 %v486, %v133
      %v519 = vmax.f32 %v487, %v135
      %v520 = vmax.f32 %v488, %v136
      %v521 = vmax.f32 %v489, %v138
      %v522 = vmax.f32 %v490, %v139
      %v523 = vmax.f32 %v491, %v141
      %v524 = vmax.f32 %v492, %v142
      %v525 = vmax.f32 %v493, %v144
      %v526 = vmax.f32 %v494, %v145
      %v527 = vmax.f32 %v495, %v147
      %v528 = vmax.f32 %v496, %v148
      %v529 = vmax.f32 %v497, %v150
      %v530 = vmax.f32 %v498, %v151
      %v531 = vmax.f32 %v499, %v153
      %v532 = vmax.f32 %v500, %v154
      %v533 = vmax.f32 %v501, %v156
      %v534 = vmax.f32 %v502, %v157
      %v535 = vmax.f32 %v503, %v159
      %v536 = vmax.f32 %v504, %v160
      %v537 = vmax.f32 %v505, %v162
      %v538 = vmax.f32 %v506, %v163
      %v539 = vmax.f32 %v507, %v165
      %v540 = vmax.f32 %v508, %v166
      %v544 = vrot.slane %v165, 1
      %v545 = vrot.slane %v166, 1
      %v546 = vsel %vm219, %v544, %v545
      %v547 = vrot.slane %v167, 1
      %v548 = vsel %vm219, %v545, %v547
      %v551 = vmax.f32 %v509, %v227
      %v552 = vmax.f32 %v510, %v229
      %v553 = vmax.f32 %v511, %v232
      %v554 = vmax.f32 %v512, %v234
      %v555 = vmax.f32 %v513, %v237
      %v556 = vmax.f32 %v514, %v239
      %v557 = vmax.f32 %v515, %v242
      %v558 = vmax.f32 %v516, %v244
      %v559 = vmax.f32 %v517, %v247
      %v560 = vmax.f32 %v518, %v249
      %v561 = vmax.f32 %v519, %v252
      %v562 = vmax.f32 %v520, %v254
      %v563 = vmax.f32 %v521, %v257
      %v564 = vmax.f32 %v522, %v259
      %v565 = vmax.f32 %v523, %v262
      %v566 = vmax.f32 %v524, %v264
      %v567 = vmax.f32 %v525, %v267
      %v568 = vmax.f32 %v526, %v269
      %v569 = vmax.f32 %v527, %v272
      %v570 = vmax.f32 %v528, %v274
      %v571 = vmax.f32 %v529, %v277
      %v572 = vmax.f32 %v530, %v279
      %v573 = vmax.f32 %v531, %v282
      %v574 = vmax.f32 %v532, %v284
      %v575 = vmax.f32 %v533, %v287
      %v576 = vmax.f32 %v534, %v289
      %v577 = vmax.f32 %v535, %v292
      %v578 = vmax.f32 %v536, %v294
      %v579 = vmax.f32 %v537, %v297
      %v580 = vmax.f32 %v538, %v299
      %v581 = vmax.f32 %v539, %v546
      %v582 = vmax.f32 %v540, %v548
      %v583 = vrot.slane %v165, 2
      %v584 = vrot.slane %v166, 2
      %v585 = vsel %vm364, %v583, %v584
      %v586 = vrot.slane %v167, 2
      %v587 = vsel %vm364, %v584, %v586
      %v590 = vmax.f32 %v551, %v372
      %v591 = vmax.f32 %v552, %v374
      %v592 = vmax.f32 %v553, %v377
      %v593 = vmax.f32 %v554, %v379
      %v594 = vmax.f32 %v555, %v382
      %v595 = vmax.f32 %v556, %v384
      %v596 = vmax.f32 %v557, %v387
      %v597 = vmax.f32 %v558, %v389
      %v598 = vmax.f32 %v559, %v392
      %v599 = vmax.f32 %v560, %v394
      %v600 = vmax.f32 %v561, %v397
      %v601 = vmax.f32 %v562, %v399
      %v602 = vmax.f32 %v563, %v402
      %v603 = vmax.f32 %v564, %v404
      %v604 = vmax.f32 %v565, %v407
      %v605 = vmax.f32 %v566, %v409
      %v606 = vmax.f32 %v567, %v412
      %v607 = vmax.f32 %v568, %v414
      %v608 = vmax.f32 %v569, %v417
      %v609 = vmax.f32 %v570, %v419
      %v610 = vmax.f32 %v571, %v422
      %v611 = vmax.f32 %v572, %v424
      %v612 = vmax.f32 %v573, %v427
      %v613 = vmax.f32 %v574, %v429
      %v614 = vmax.f32 %v575, %v432
      %v615 = vmax.f32 %v576, %v434
      %v616 = vmax.f32 %v577, %v437
      %v617 = vmax.f32 %v578, %v439
      %v618 = vmax.f32 %v579, %v442
      %v619 = vmax.f32 %v580, %v444
      %v620 = vmax.f32 %v581, %v585
      %v621 = vmax.f32 %v582, %v587
      %v622 = vmax.f32 %v590, %v123
      %v623 = vmax.f32 %v591, %v124
      %v624 = vmax.f32 %v592, %v126
      %v625 = vmax.f32 %v593, %v127
      %v626 = vmax.f32 %v594, %v129
      %v627 = vmax.f32 %v595, %v130
      %v628 = vmax.f32 %v596, %v132
      %v629 = vmax.f32 %v597, %v133
      %v630 = vmax.f32 %v598, %v135
      %v631 = vmax.f32 %v599, %v136
      %v632 = vmax.f32 %v600, %v138
      %v633 = vmax.f32 %v601, %v139
      %v634 = vmax.f32 %v602, %v141
      %v635 = vmax.f32 %v603, %v142
      %v636 = vmax.f32 %v604, %v144
      %v637 = vmax.f32 %v605, %v145
      %v638 = vmax.f32 %v606, %v147
      %v639 = vmax.f32 %v607, %v148
      %v640 = vmax.f32 %v608, %v150
      %v641 = vmax.f32 %v609, %v151
      %v642 = vmax.f32 %v610, %v153
      %v643 = vmax.f32 %v611, %v154
      %v644 = vmax.f32 %v612, %v156
      %v645 = vmax.f32 %v613, %v157
      %v646 = vmax.f32 %v614, %v159
      %v647 = vmax.f32 %v615, %v160
      %v648 = vmax.f32 %v616, %v162
      %v649 = vmax.f32 %v617, %v163
      %v650 = vmax.f32 %v618, %v165
      %v651 = vmax.f32 %v619, %v166
      %v652 = vmax.f32 %v620, %v168
      %v653 = vmax.f32 %v621, %v169
      %v657 = vrot.slane %v168, 1
      %v658 = vrot.slane %v169, 1
      %v659 = vsel %vm219, %v657, %v658
      %v660 = vrot.slane %v170, 1
      %v661 = vsel %vm219, %v658, %v660
      %v664 = vmax.f32 %v622, %v232
      %v665 = vmax.f32 %v623, %v234
      %v666 = vmax.f32 %v624, %v237
      %v667 = vmax.f32 %v625, %v239
      %v668 = vmax.f32 %v626, %v242
      %v669 = vmax.f32 %v627, %v244
      %v670 = vmax.f32 %v628, %v247
      %v671 = vmax.f32 %v629, %v249
      %v672 = vmax.f32 %v630, %v252
      %v673 = vmax.f32 %v631, %v254
      %v674 = vmax.f32 %v632, %v257
      %v675 = vmax.f32 %v633, %v259
      %v676 = vmax.f32 %v634, %v262
      %v677 = vmax.f32 %v635, %v264
      %v678 = vmax.f32 %v636, %v267
      %v679 = vmax.f32 %v637, %v269
      %v680 = vmax.f32 %v638, %v272
      %v681 = vmax.f32 %v639, %v274
      %v682 = vmax.f32 %v640, %v277
      %v683 = vmax.f32 %v641, %v279
      %v684 = vmax.f32 %v642, %v282
      %v685 = vmax.f32 %v643, %v284
      %v686 = vmax.f32 %v644, %v287
      %v687 = vmax.f32 %v645, %v289
      %v688 = vmax.f32 %v646, %v292
      %v689 = vmax.f32 %v647, %v294
      %v690 = vmax.f32 %v648, %v297
      %v691 = vmax.f32 %v649, %v299
      %v692 = vmax.f32 %v650, %v546
      %v693 = vmax.f32 %v651, %v548
      %v694 = vmax.f32 %v652, %v659
      %v695 = vmax.f32 %v653, %v661
      %v696 = vrot.slane %v168, 2
      %v697 = vrot.slane %v169, 2
      %v698 = vsel %vm364, %v696, %v697
      %v699 = vrot.slane %v170, 2
      %v700 = vsel %vm364, %v697, %v699
      %v703 = vmax.f32 %v664, %v377
      %v704 = vmax.f32 %v665, %v379
      %v705 = vmax.f32 %v666, %v382
      %v706 = vmax.f32 %v667, %v384
      %v707 = vmax.f32 %v668, %v387
      %v708 = vmax.f32 %v669, %v389
      %v709 = vmax.f32 %v670, %v392
      %v710 = vmax.f32 %v671, %v394
      %v711 = vmax.f32 %v672, %v397
      %v712 = vmax.f32 %v673, %v399
      %v713 = vmax.f32 %v674, %v402
      %v714 = vmax.f32 %v675, %v404
      %v715 = vmax.f32 %v676, %v407
      %v716 = vmax.f32 %v677, %v409
      %v717 = vmax.f32 %v678, %v412
      %v718 = vmax.f32 %v679, %v414
      %v719 = vmax.f32 %v680, %v417
      %v720 = vmax.f32 %v681, %v419
      %v721 = vmax.f32 %v682, %v422
      %v722 = vmax.f32 %v683, %v424
      %v723 = vmax.f32 %v684, %v427
      %v724 = vmax.f32 %v685, %v429
      %v725 = vmax.f32 %v686, %v432
      %v726 = vmax.f32 %v687, %v434
      %v727 = vmax.f32 %v688, %v437
      %v728 = vmax.f32 %v689, %v439
      %v729 = vmax.f32 %v690, %v442
      %v730 = vmax.f32 %v691, %v444
      %v731 = vmax.f32 %v692, %v585
      %v732 = vmax.f32 %v693, %v587
      %v733 = vmax.f32 %v694, %v698
      %v734 = vmax.f32 %v695, %v700
      %735 = vst [vmem:[%s116] sm:$0xff] %v703
      %736 = vst [vmem:[%s116 + $0x8] sm:$0xff] %v704
      %737 = vst [vmem:[%s116 + $0x10] sm:$0xff] %v705
      %738 = vst [vmem:[%s116 + $0x18] sm:$0xff] %v706
      %739 = vst [vmem:[%s116 + $0x20] sm:$0xff] %v707
      %740 = vst [vmem:[%s116 + $0x28] sm:$0xff] %v708
      %741 = vst [vmem:[%s116 + $0x30] sm:$0xff] %v709
      %742 = vst [vmem:[%s116 + $0x38] sm:$0xff] %v710
      %743 = vst [vmem:[%s116 + $0x40] sm:$0xff] %v711
      %744 = vst [vmem:[%s116 + $0x48] sm:$0xff] %v712
      %745 = vst [vmem:[%s116 + $0x50] sm:$0xff] %v713
      %746 = vst [vmem:[%s116 + $0x58] sm:$0xff] %v714
      %747 = vst [vmem:[%s116 + $0x60] sm:$0xff] %v715
      %748 = vst [vmem:[%s116 + $0x68] sm:$0xff] %v716
      %749 = vst [vmem:[%s116 + $0x70] sm:$0xff] %v717
      %750 = vst [vmem:[%s116 + $0x78] sm:$0xff] %v718
      %751 = vst [vmem:[%s116 + $0x80] sm:$0xff] %v719
      %752 = vst [vmem:[%s116 + $0x88] sm:$0xff] %v720
      %753 = vst [vmem:[%s116 + $0x90] sm:$0xff] %v721
      %754 = vst [vmem:[%s116 + $0x98] sm:$0xff] %v722
      %755 = vst [vmem:[%s116 + $0xa0] sm:$0xff] %v723
      %756 = vst [vmem:[%s116 + $0xa8] sm:$0xff] %v724
      %757 = vst [vmem:[%s116 + $0xb0] sm:$0xff] %v725
      %758 = vst [vmem:[%s116 + $0xb8] sm:$0xff] %v726
      %759 = vst [vmem:[%s116 + $0xc0] sm:$0xff] %v727
      %760 = vst [vmem:[%s116 + $0xc8] sm:$0xff] %v728
      %761 = vst [vmem:[%s116 + $0xd0] sm:$0xff] %v729
      %762 = vst [vmem:[%s116 + $0xd8] sm:$0xff] %v730
      %763 = vst [vmem:[%s116 + $0xe0] sm:$0xff] %v731
      %764 = vst [vmem:[%s116 + $0xe8] sm:$0xff] %v732
      %765 = vst [vmem:[%s116 + $0xf0] sm:$0xff] %v733
      %766 = vst [vmem:[%s116 + $0xf8] sm:$0xff] %v734
      %p767 = scmp.lt.s32.totalorder %s12, 1
      %s768 = scalar_select %p767, %s12, 1
      %s769 = smul.addr %s768, 32
      %s770 = smul.addr %s769, 8
      %s771 = scalar_lea.vmem %s1, %s770
      // Predicated region
      $region25: #{feature_extractor_forward.9} parent=23 // pred_check
        %p772 = pneg %p56
      $region26: #{feature_extractor_forward.9} parent=23 // pred_check_branch
        %774 = sbr.rel (%p772) target = $region28
      $region27: #{feature_extractor_forward.9} parent=23 // pred_region
        _
      $region28: #{feature_extractor_forward.9} parent=23 // pred_fallthru
        _
    $region24: #{feature_extractor_forward.9} parent=5 // pred_fallthru
      _
    %p775 = scmp.le.s32.totalorder 2, %s7
    // Predicated region
    $region29: #{feature_extractor_forward.9} parent=5 // pred_check
      %p776 = pneg %p775
    $region30: #{feature_extractor_forward.9} parent=5 // pred_check_branch
      %778 = sbr.rel (%p776) target = $region32
    $region31: #{feature_extractor_forward.9} parent=5 // pred_region
      %s779 = ssub.s32 %s7, 2
      // Predicated region
      $region33: #{feature_extractor_forward.9} parent=31 // pred_check
        %p780 = pneg %p62
      $region34: #{feature_extractor_forward.9} parent=31 // pred_check_branch
        %782 = sbr.rel (%p780) target = $region36
      $region35: #{feature_extractor_forward.9} parent=31 // pred_region
        %p783 = scmp.lt.s32.totalorder %s13, 1
        %s784 = scalar_select %p783, %s13, 1
        %s785 = smul.addr %s784, 32
        %s786 = smul.addr %s785, 8
        %s787 = scalar_lea.vmem %s1, %s786
      $region36: #{feature_extractor_forward.9} parent=31 // pred_fallthru
        _
    $region32: #{feature_extractor_forward.9} parent=5 // pred_fallthru
      _
  $region6: #{feature_extractor_forward.9} parent=0 // loop_footer
    %s11 = sadd.s32 1, %s7
  $region7: #{feature_extractor_forward.9} parent=0 // loop_footer_branch
    %6 = sbr.rel target = $region3
  $region8: #{feature_extractor_forward.9} parent=0 // loop_exit
    _

// kernel: feature_extractor_forward.11
$region0: #{feature_extractor_forward.11}
  #allocation0 [shape = 'u32[]', space=smem, size = 0x4, offset = 0x4, fixed_abs, tag = 'smem constant byte address 0x4 - core index']
  #allocation1 [shape = 'u32[144,128]{1,0:T(1,128)}', space=vmem, size = 0x12000, scoped, tag = 'internal scratch']
  %s0 = inlined_call_operand.vmem [shape: bf16[128,576], index: 0, kind: input, shape index: {}]
  %s1 = inlined_call_operand.vmem [shape: bf16[576,128], index: 1, kind: input, shape index: {}]
  %s2 = inlined_call_operand.vmem [shape: f32[1,128], index: 2, kind: input, shape index: {}]
  %s3 = inlined_call_operand.vmem [shape: f32[1,128], index: 3, kind: input, shape index: {}]
  %s4 = inlined_call_operand.vmem [shape: f32[128,128], index: 4, kind: input, shape index: {}]
  %s5 = inlined_call_operand.vmem [shape: f32[128,128], index: 5, kind: output, shape index: {}]
  %s6 = sld [smem:[#allocation0]]
  $region30: #{feature_extractor_forward.11} parent=0
    _
  %s8 = ssub.s32 1, %s6
  %s9 = scalar_select 0, %s8, %s6
  // Predicated region
  $region2: #{feature_extractor_forward.11} parent=0 // pred_check
    _
  $region3: #{feature_extractor_forward.11} parent=0 // pred_check_branch
    %11 = sbr.rel (0) target = $region5
  $region4: #{feature_extractor_forward.11} parent=0 // pred_region
    _
  $region5: #{feature_extractor_forward.11} parent=0 // pred_fallthru
    _
  // Predicated region
  $region6: #{feature_extractor_forward.11} parent=0 // pred_check
    _
  $region7: #{feature_extractor_forward.11} parent=0 // pred_check_branch
    %13 = sbr.rel (0) target = $region9
  $region8: #{feature_extractor_forward.11} parent=0 // pred_region
    _
  $region9: #{feature_extractor_forward.11} parent=0 // pred_fallthru
    _
  // Predicated region
  $region10: #{feature_extractor_forward.11} parent=0 // pred_check
    _
  $region11: #{feature_extractor_forward.11} parent=0 // pred_check_branch
    %15 = sbr.rel (0) target = $region13
  $region12: #{feature_extractor_forward.11} parent=0 // pred_region
    _
  $region13: #{feature_extractor_forward.11} parent=0 // pred_fallthru
    _
  // Predicated region
  $region14: #{feature_extractor_forward.11} parent=0 // pred_check
    _
  $region15: #{feature_extractor_forward.11} parent=0 // pred_check_branch
    %17 = sbr.rel (0) target = $region17
  $region16: #{feature_extractor_forward.11} parent=0 // pred_region
    _
  $region17: #{feature_extractor_forward.11} parent=0 // pred_fallthru
    _
  // Predicated region
  $region18: #{feature_extractor_forward.11} parent=0 // pred_check
    _
  $region19: #{feature_extractor_forward.11} parent=0 // pred_check_branch
    %19 = sbr.rel (0) target = $region21
  $region20: #{feature_extractor_forward.11} parent=0 // pred_region
    _
  $region21: #{feature_extractor_forward.11} parent=0 // pred_fallthru
    _
  %v21 = vld [vmem:[%s0] sm:$0xff]
  %v22 = vld [vmem:[%s0 + $0x8] sm:$0xff]
  %v23 = vld [vmem:[%s0 + $0x10] sm:$0xf]
  %v24 = vld [vmem:[%s0 + $0x14] sm:$0xff]
  %v25 = vld [vmem:[%s0 + $0x1c] sm:$0xff]
  %v26 = vld [vmem:[%s0 + $0x24] sm:$0xf]
  %v27 = vld [vmem:[%s0 + $0x28] sm:$0xff]
  %v28 = vld [vmem:[%s0 + $0x30] sm:$0xff]
  %v29 = vld [vmem:[%s0 + $0x38] sm:$0xf]
  %v30 = vld [vmem:[%s0 + $0x3c] sm:$0xff]
  %v31 = vld [vmem:[%s0 + $0x44] sm:$0xff]
  %v32 = vld [vmem:[%s0 + $0x4c] sm:$0xf]
  %v33 = vld [vmem:[%s0 + $0x50] sm:$0xff]
  %v34 = vld [vmem:[%s0 + $0x58] sm:$0xff]
  %v35 = vld [vmem:[%s0 + $0x60] sm:$0xf]
  %v36 = vld [vmem:[%s0 + $0x64] sm:$0xff]
  %v37 = vld [vmem:[%s0 + $0x6c] sm:$0xff]
  %v38 = vld [vmem:[%s0 + $0x74] sm:$0xf]
  %v39 = vld [vmem:[%s0 + $0x78] sm:$0xff]
  %v40 = vld [vmem:[%s0 + $0x80] sm:$0xff]
  %v41 = vld [vmem:[%s0 + $0x88] sm:$0xf]
  %v42 = vld [vmem:[%s0 + $0x8c] sm:$0xff]
  %v43 = vld [vmem:[%s0 + $0x94] sm:$0xff]
  %v44 = vld [vmem:[%s0 + $0x9c] sm:$0xf]
  %v45 = vld [vmem:[%s0 + $0xa0] sm:$0xff]
  %v46 = vld [vmem:[%s0 + $0xa8] sm:$0xff]
  %v47 = vld [vmem:[%s0 + $0xb0] sm:$0xf]
  %v48 = vld [vmem:[%s0 + $0xb4] sm:$0xff]
  %v49 = vld [vmem:[%s0 + $0xbc] sm:$0xff]
  %v50 = vld [vmem:[%s0 + $0xc4] sm:$0xf]
  %v51 = vld [vmem:[%s0 + $0xc8] sm:$0xff]
  %v52 = vld [vmem:[%s0 + $0xd0] sm:$0xff]
  %v53 = vld [vmem:[%s0 + $0xd8] sm:$0xf]
  %v54 = vld [vmem:[%s0 + $0xdc] sm:$0xff]
  %v55 = vld [vmem:[%s0 + $0xe4] sm:$0xff]
  %v56 = vld [vmem:[%s0 + $0xec] sm:$0xf]
  %v57 = vld [vmem:[%s0 + $0xf0] sm:$0xff]
  %v58 = vld [vmem:[%s0 + $0xf8] sm:$0xff]
  %v59 = vld [vmem:[%s0 + $0x100] sm:$0xf]
  %v60 = vld [vmem:[%s0 + $0x104] sm:$0xff]
  %v61 = vld [vmem:[%s0 + $0x10c] sm:$0xff]
  %v62 = vld [vmem:[%s0 + $0x114] sm:$0xf]
  %v63 = vld [vmem:[%s0 + $0x118] sm:$0xff]
  %v64 = vld [vmem:[%s0 + $0x120] sm:$0xff]
  %v65 = vld [vmem:[%s0 + $0x128] sm:$0xf]
  %v66 = vld [vmem:[%s0 + $0x12c] sm:$0xff]
  %v67 = vld [vmem:[%s0 + $0x134] sm:$0xff]
  %v68 = vld [vmem:[%s0 + $0x13c] sm:$0xf]
  %v69 = vld [vmem:[%s1] sm:$0xf]
  %v70 = vld [vmem:[%s1 + $0x4] sm:$0xf]
  %v71 = vld [vmem:[%s1 + $0x8] sm:$0xf]
  %v72 = vld [vmem:[%s1 + $0xc] sm:$0xf]
  %v73 = vld [vmem:[%s1 + $0x10] sm:$0xf]
  %v74 = vld [vmem:[%s1 + $0x14] sm:$0xf]
  %v75 = vld [vmem:[%s1 + $0x18] sm:$0xf]
  %v76 = vld [vmem:[%s1 + $0x1c] sm:$0xf]
  %v77 = vld [vmem:[%s1 + $0x20] sm:$0xf]
  %v78 = vld [vmem:[%s1 + $0x24] sm:$0xf]
  %v79 = vld [vmem:[%s1 + $0x28] sm:$0xf]
  %v80 = vld [vmem:[%s1 + $0x2c] sm:$0xf]
  %v81 = vld [vmem:[%s1 + $0x30] sm:$0xf]
  %v82 = vld [vmem:[%s1 + $0x34] sm:$0xf]
  %v83 = vld [vmem:[%s1 + $0x38] sm:$0xf]
  %v84 = vld [vmem:[%s1 + $0x3c] sm:$0xf]
  %v85 = vld [vmem:[%s1 + $0x40] sm:$0xf]
  %v86 = vld [vmem:[%s1 + $0x44] sm:$0xf]
  %v87 = vld [vmem:[%s1 + $0x48] sm:$0xf]
  %v88 = vld [vmem:[%s1 + $0x4c] sm:$0xf]
  %v89 = vld [vmem:[%s1 + $0x50] sm:$0xf]
  %v90 = vld [vmem:[%s1 + $0x54] sm:$0xf]
  %v91 = vld [vmem:[%s1 + $0x58] sm:$0xf]
  %v92 = vld [vmem:[%s1 + $0x5c] sm:$0xf]
  %v93 = vld [vmem:[%s1 + $0x60] sm:$0xf]
  %v94 = vld [vmem:[%s1 + $0x64] sm:$0xf]
  %v95 = vld [vmem:[%s1 + $0x68] sm:$0xf]
  %v96 = vld [vmem:[%s1 + $0x6c] sm:$0xf]
  %v97 = vld [vmem:[%s1 + $0x70] sm:$0xf]
  %v98 = vld [vmem:[%s1 + $0x74] sm:$0xf]
  %v99 = vld [vmem:[%s1 + $0x78] sm:$0xf]
  %v100 = vld [vmem:[%s1 + $0x7c] sm:$0xf]
  %v101 = vld [vmem:[%s1 + $0x80] sm:$0xf]
  %v102 = vld [vmem:[%s1 + $0x84] sm:$0xf]
  %v103 = vld [vmem:[%s1 + $0x88] sm:$0xf]
  %v104 = vld [vmem:[%s1 + $0x8c] sm:$0xf]
  %v105 = vld [vmem:[%s1 + $0x90] sm:$0xf]
  %v106 = vld [vmem:[%s1 + $0x94] sm:$0xf]
  %v107 = vld [vmem:[%s1 + $0x98] sm:$0xf]
  %v108 = vld [vmem:[%s1 + $0x9c] sm:$0xf]
  %v109 = vld [vmem:[%s1 + $0xa0] sm:$0xf]
  %v110 = vld [vmem:[%s1 + $0xa4] sm:$0xf]
  %v111 = vld [vmem:[%s1 + $0xa8] sm:$0xf]
  %v112 = vld [vmem:[%s1 + $0xac] sm:$0xf]
  %v113 = vld [vmem:[%s1 + $0xb0] sm:$0xf]
  %v114 = vld [vmem:[%s1 + $0xb4] sm:$0xf]
  %v115 = vld [vmem:[%s1 + $0xb8] sm:$0xf]
  %v116 = vld [vmem:[%s1 + $0xbc] sm:$0xf]
  %v117 = vld [vmem:[%s1 + $0xc0] sm:$0xf]
  %v118 = vld [vmem:[%s1 + $0xc4] sm:$0xf]
  %v119 = vld [vmem:[%s1 + $0xc8] sm:$0xf]
  %v120 = vld [vmem:[%s1 + $0xcc] sm:$0xf]
  %v121 = vld [vmem:[%s1 + $0xd0] sm:$0xf]
  %v122 = vld [vmem:[%s1 + $0xd4] sm:$0xf]
  %v123 = vld [vmem:[%s1 + $0xd8] sm:$0xf]
  %v124 = vld [vmem:[%s1 + $0xdc] sm:$0xf]
  %v125 = vld [vmem:[%s1 + $0xe0] sm:$0xf]
  %v126 = vld [vmem:[%s1 + $0xe4] sm:$0xf]
  %v127 = vld [vmem:[%s1 + $0xe8] sm:$0xf]
  %v128 = vld [vmem:[%s1 + $0xec] sm:$0xf]
  %v129 = vld [vmem:[%s1 + $0xf0] sm:$0xf]
  %v130 = vld [vmem:[%s1 + $0xf4] sm:$0xf]
  %v131 = vld [vmem:[%s1 + $0xf8] sm:$0xf]
  %v132 = vld [vmem:[%s1 + $0xfc] sm:$0xf]
  %v133 = vld [vmem:[%s1 + $0x100] sm:$0xf]
  %v134 = vld [vmem:[%s1 + $0x104] sm:$0xf]
  %v135 = vld [vmem:[%s1 + $0x108] sm:$0xf]
  %v136 = vld [vmem:[%s1 + $0x10c] sm:$0xf]
  %v137 = vld [vmem:[%s1 + $0x110] sm:$0xf]
  %v138 = vld [vmem:[%s1 + $0x114] sm:$0xf]
  %v139 = vld [vmem:[%s1 + $0x118] sm:$0xf]
  %v140 = vld [vmem:[%s1 + $0x11c] sm:$0xf]
  %v189 = vunpack.c.l.b16 %v21
  %v190 = vunpack.c.h.b16 %v21
  %v191 = vunpack.c.l.b16 %v22
  %v192 = vunpack.c.h.b16 %v22
  %v193 = vunpack.c.l.b16 %v23
  %v194 = vunpack.c.l.b16 %v24
  %v195 = vunpack.c.h.b16 %v24
  %v196 = vunpack.c.l.b16 %v25
  %v197 = vunpack.c.h.b16 %v25
  %v198 = vunpack.c.l.b16 %v26
  %v199 = vunpack.c.l.b16 %v27
  %v200 = vunpack.c.h.b16 %v27
  %v201 = vunpack.c.l.b16 %v28
  %v202 = vunpack.c.h.b16 %v28
  %v203 = vunpack.c.l.b16 %v29
  %v204 = vunpack.c.l.b16 %v30
  %v205 = vunpack.c.h.b16 %v30
  %v206 = vunpack.c.l.b16 %v31
  %v207 = vunpack.c.h.b16 %v31
  %v208 = vunpack.c.l.b16 %v32
  %v209 = vunpack.c.l.b16 %v33
  %v210 = vunpack.c.h.b16 %v33
  %v211 = vunpack.c.l.b16 %v34
  %v212 = vunpack.c.h.b16 %v34
  %v213 = vunpack.c.l.b16 %v35
  %v214 = vunpack.c.l.b16 %v36
  %v215 = vunpack.c.h.b16 %v36
  %v216 = vunpack.c.l.b16 %v37
  %v217 = vunpack.c.h.b16 %v37
  %v218 = vunpack.c.l.b16 %v38
  %v219 = vunpack.c.l.b16 %v39
  %v220 = vunpack.c.h.b16 %v39
  %v221 = vunpack.c.l.b16 %v40
  %v222 = vunpack.c.h.b16 %v40
  %v223 = vunpack.c.l.b16 %v41
  %v224 = vunpack.c.l.b16 %v42
  %v225 = vunpack.c.h.b16 %v42
  %v226 = vunpack.c.l.b16 %v43
  %v227 = vunpack.c.h.b16 %v43
  %v228 = vunpack.c.l.b16 %v44
  %v229 = vunpack.c.l.b16 %v45
  %v230 = vunpack.c.h.b16 %v45
  %v231 = vunpack.c.l.b16 %v46
  %v232 = vunpack.c.h.b16 %v46
  %v233 = vunpack.c.l.b16 %v47
  %v234 = vunpack.c.l.b16 %v48
  %v235 = vunpack.c.h.b16 %v48
  %v236 = vunpack.c.l.b16 %v49
  %v237 = vunpack.c.h.b16 %v49
  %v238 = vunpack.c.l.b16 %v50
  %v239 = vunpack.c.l.b16 %v51
  %v240 = vunpack.c.h.b16 %v51
  %v241 = vunpack.c.l.b16 %v52
  %v242 = vunpack.c.h.b16 %v52
  %v243 = vunpack.c.l.b16 %v53
  %v244 = vunpack.c.l.b16 %v54
  %v245 = vunpack.c.h.b16 %v54
  %v246 = vunpack.c.l.b16 %v55
  %v247 = vunpack.c.h.b16 %v55
  %v248 = vunpack.c.l.b16 %v56
  %v249 = vunpack.c.l.b16 %v57
  %v250 = vunpack.c.h.b16 %v57
  %v251 = vunpack.c.l.b16 %v58
  %v252 = vunpack.c.h.b16 %v58
  %v253 = vunpack.c.l.b16 %v59
  %v254 = vunpack.c.l.b16 %v60
  %v255 = vunpack.c.h.b16 %v60
  %v256 = vunpack.c.l.b16 %v61
  %v257 = vunpack.c.h.b16 %v61
  %v258 = vunpack.c.l.b16 %v62
  %v259 = vunpack.c.l.b16 %v63
  %v260 = vunpack.c.h.b16 %v63
  %v261 = vunpack.c.l.b16 %v64
  %v262 = vunpack.c.h.b16 %v64
  %v263 = vunpack.c.l.b16 %v65
  %v264 = vunpack.c.l.b16 %v66
  %v265 = vunpack.c.h.b16 %v66
  %v266 = vunpack.c.l.b16 %v67
  %v267 = vunpack.c.h.b16 %v67
  %v268 = vunpack.c.l.b16 %v68
  %v269 = vpack.c.b16 %v194, %v189
  %v270 = vpack.c.b16 %v195, %v190
  %v271 = vpack.c.b16 %v196, %v191
  %v272 = vpack.c.b16 %v197, %v192
  %v273 = vpack.c.b16 %v198, %v193
  %v274 = vpack.c.b16 %v204, %v199
  %v275 = vpack.c.b16 %v205, %v200
  %v276 = vpack.c.b16 %v206, %v201
  %v277 = vpack.c.b16 %v207, %v202
  %v278 = vpack.c.b16 %v208, %v203
  %v279 = vpack.c.b16 %v214, %v209
  %v280 = vpack.c.b16 %v215, %v210
  %v281 = vpack.c.b16 %v216, %v211
  %v282 = vpack.c.b16 %v217, %v212
  %v283 = vpack.c.b16 %v218, %v213
  %v284 = vpack.c.b16 %v224, %v219
  %v285 = vpack.c.b16 %v225, %v220
  %v286 = vpack.c.b16 %v226, %v221
  %v287 = vpack.c.b16 %v227, %v222
  %v288 = vpack.c.b16 %v228, %v223
  %v289 = vpack.c.b16 %v234, %v229
  %v290 = vpack.c.b16 %v235, %v230
  %v291 = vpack.c.b16 %v236, %v231
  %v292 = vpack.c.b16 %v237, %v232
  %v293 = vpack.c.b16 %v238, %v233
  %v294 = vpack.c.b16 %v244, %v239
  %v295 = vpack.c.b16 %v245, %v240
  %v296 = vpack.c.b16 %v246, %v241
  %v297 = vpack.c.b16 %v247, %v242
  %v298 = vpack.c.b16 %v248, %v243
  %v299 = vpack.c.b16 %v254, %v249
  %v300 = vpack.c.b16 %v255, %v250
  %v301 = vpack.c.b16 %v256, %v251
  %v302 = vpack.c.b16 %v257, %v252
  %v303 = vpack.c.b16 %v258, %v253
  %v304 = vpack.c.b16 %v264, %v259
  %v305 = vpack.c.b16 %v265, %v260
  %v306 = vpack.c.b16 %v266, %v261
  %v307 = vpack.c.b16 %v267, %v262
  %v308 = vpack.c.b16 %v268, %v263
  %v413 = vunpack.c.l.b16 %v69
  %v414 = vunpack.c.l.b16 %v70
  %v415 = vunpack.c.l.b16 %v71
  %v416 = vunpack.c.l.b16 %v72
  %v417 = vunpack.c.l.b16 %v73
  %v418 = vunpack.c.l.b16 %v74
  %v419 = vunpack.c.l.b16 %v75
  %v420 = vunpack.c.l.b16 %v76
  %v421 = vunpack.c.l.b16 %v77
  %v422 = vunpack.c.l.b16 %v78
  %v423 = vunpack.c.l.b16 %v79
  %v424 = vunpack.c.l.b16 %v80
  %v425 = vunpack.c.l.b16 %v81
  %v426 = vunpack.c.l.b16 %v82
  %v427 = vunpack.c.l.b16 %v83
  %v428 = vunpack.c.l.b16 %v84
  %v429 = vunpack.c.l.b16 %v85
  %v430 = vunpack.c.l.b16 %v86
  %v431 = vunpack.c.l.b16 %v87
  %v432 = vunpack.c.l.b16 %v88
  %v433 = vunpack.c.l.b16 %v89
  %v434 = vunpack.c.l.b16 %v90
  %v435 = vunpack.c.l.b16 %v91
  %v436 = vunpack.c.l.b16 %v92
  %v437 = vunpack.c.l.b16 %v93
  %v438 = vunpack.c.l.b16 %v94
  %v439 = vunpack.c.l.b16 %v95
  %v440 = vunpack.c.l.b16 %v96
  %v441 = vunpack.c.l.b16 %v97
  %v442 = vunpack.c.l.b16 %v98
  %v443 = vunpack.c.l.b16 %v99
  %v444 = vunpack.c.l.b16 %v100
  %v445 = vunpack.c.l.b16 %v101
  %v446 = vunpack.c.l.b16 %v102
  %v447 = vunpack.c.l.b16 %v103
  %v448 = vunpack.c.l.b16 %v104
  %v449 = vunpack.c.l.b16 %v105
  %v450 = vunpack.c.l.b16 %v106
  %v451 = vunpack.c.l.b16 %v107
  %v452 = vunpack.c.l.b16 %v108
  %v453 = vunpack.c.l.b16 %v109
  %v454 = vunpack.c.l.b16 %v110
  %v455 = vunpack.c.l.b16 %v111
  %v456 = vunpack.c.l.b16 %v112
  %v457 = vunpack.c.l.b16 %v113
  %v458 = vunpack.c.l.b16 %v114
  %v459 = vunpack.c.l.b16 %v115
  %v460 = vunpack.c.l.b16 %v116
  %v461 = vunpack.c.l.b16 %v117
  %v462 = vunpack.c.l.b16 %v118
  %v463 = vunpack.c.l.b16 %v119
  %v464 = vunpack.c.l.b16 %v120
  %v465 = vunpack.c.l.b16 %v121
  %v466 = vunpack.c.l.b16 %v122
  %v467 = vunpack.c.l.b16 %v123
  %v468 = vunpack.c.l.b16 %v124
  %v469 = vunpack.c.l.b16 %v125
  %v470 = vunpack.c.l.b16 %v126
  %v471 = vunpack.c.l.b16 %v127
  %v472 = vunpack.c.l.b16 %v128
  %v473 = vunpack.c.l.b16 %v129
  %v474 = vunpack.c.l.b16 %v130
  %v475 = vunpack.c.l.b16 %v131
  %v476 = vunpack.c.l.b16 %v132
  %v477 = vunpack.c.l.b16 %v133
  %v478 = vunpack.c.l.b16 %v134
  %v479 = vunpack.c.l.b16 %v135
  %v480 = vunpack.c.l.b16 %v136
  %v481 = vunpack.c.l.b16 %v137
  %v482 = vunpack.c.l.b16 %v138
  %v483 = vunpack.c.l.b16 %v139
  %v484 = vunpack.c.l.b16 %v140
  %v485 = vpack.c.b16 %v414, %v413
  %v486 = vpack.c.b16 %v416, %v415
  %v487 = vpack.c.b16 %v418, %v417
  %v488 = vpack.c.b16 %v420, %v419
  %v489 = vpack.c.b16 %v422, %v421
  %v490 = vpack.c.b16 %v424, %v423
  %v491 = vpack.c.b16 %v426, %v425
  %v492 = vpack.c.b16 %v428, %v427
  %v493 = vpack.c.b16 %v430, %v429
  %v494 = vpack.c.b16 %v432, %v431
  %v495 = vpack.c.b16 %v434, %v433
  %v496 = vpack.c.b16 %v436, %v435
  %v497 = vpack.c.b16 %v438, %v437
  %v498 = vpack.c.b16 %v440, %v439
  %v499 = vpack.c.b16 %v442, %v441
  %v500 = vpack.c.b16 %v444, %v443
  %v501 = vpack.c.b16 %v446, %v445
  %v502 = vpack.c.b16 %v448, %v447
  %v503 = vpack.c.b16 %v450, %v449
  %v504 = vpack.c.b16 %v452, %v451
  %v505 = vpack.c.b16 %v454, %v453
  %v506 = vpack.c.b16 %v456, %v455
  %v507 = vpack.c.b16 %v458, %v457
  %v508 = vpack.c.b16 %v460, %v459
  %v509 = vpack.c.b16 %v462, %v461
  %v510 = vpack.c.b16 %v464, %v463
  %v511 = vpack.c.b16 %v466, %v465
  %v512 = vpack.c.b16 %v468, %v467
  %v513 = vpack.c.b16 %v470, %v469
  %v514 = vpack.c.b16 %v472, %v471
  %v515 = vpack.c.b16 %v474, %v473
  %v516 = vpack.c.b16 %v476, %v475
  %v517 = vpack.c.b16 %v478, %v477
  %v518 = vpack.c.b16 %v480, %v479
  %v519 = vpack.c.b16 %v482, %v481
  %v520 = vpack.c.b16 %v484, %v483
  %vm557 = vcmask 523264
  %v559 = vsel %vm557, %v273, 0
  %v562 = vsel %vm557, %v278, 0
  %v565 = vsel %vm557, %v283, 0
  %v568 = vsel %vm557, %v288, 0
  %v571 = vsel %vm557, %v293, 0
  %v574 = vsel %vm557, %v298, 0
  %v577 = vsel %vm557, %v303, 0
  %v580 = vsel %vm557, %v308, 0
  %582 = vmatprep.subr.bf16.mxu0 0
  %583 = vmatpush1.bf16.msra.mxu0 %v492
  %584 = vmatprep.subr.bf16.mxu0 0
  %585 = vmatpush1.bf16.msra.mxu0 %v491
  %586 = vmatprep.subr.bf16.mxu0 0
  %587 = vmatpush1.bf16.msra.mxu0 %v490
  %588 = vmatprep.subr.bf16.mxu0 0
  %589 = vmatpush1.bf16.msra.mxu0 %v489
  %590 = vmatprep.subr.bf16.mxu0 0
  %591 = vmatpush1.bf16.msra.mxu0 %v488
  %592 = vmatprep.subr.bf16.mxu0 0
  %593 = vmatpush1.bf16.msra.mxu0 %v487
  %594 = vmatprep.subr.bf16.mxu0 0
  %595 = vmatpush1.bf16.msra.mxu0 %v486
  %596 = vmatprep.subr.bf16.mxu0 0
  %597 = vmatpush1.bf16.msra.mxu0 %v485
  %598 = vmatprep.subr.bf16.mxu0 0
  %599 = vmatpush2.bf16.msra.mxu0 %v500
  %600 = vmatprep.subr.bf16.mxu0 0
  %601 = vmatpush2.bf16.msra.mxu0 %v499
  %602 = vmatprep.subr.bf16.mxu0 0
  %603 = vmatpush2.bf16.msra.mxu0 %v498
  %604 = vmatprep.subr.bf16.mxu0 0
  %605 = vmatpush2.bf16.msra.mxu0 %v497
  %606 = vmatprep.subr.bf16.mxu0 0
  %607 = vmatpush2.bf16.msra.mxu0 %v496
  %608 = vmatprep.subr.bf16.mxu0 0
  %609 = vmatpush2.bf16.msra.mxu0 %v495
  %610 = vmatprep.subr.bf16.mxu0 0
  %611 = vmatpush2.bf16.msra.mxu0 %v494
  %612 = vmatprep.subr.bf16.mxu0 0
  %613 = vmatpush2.bf16.msra.mxu0 %v493
  %614 = vmatprep.mubr.bf16.mxu0 %v270
  %615 = vmatmul.mubr.bf16.gmra.mxu0 %v269
  %v616 = vpop.f32.mrf.mxu0
  %v617 = vadd.f32 0.0, %v616
  %v618 = vpop.f32.mrf.mxu0
  %v619 = vpop.f32.mrf.mxu0
  %v620 = vadd.f32 0.0, %v619
  %v621 = vpop.f32.mrf.mxu0
  %622 = vmatprep.mubr.bf16.mxu0 %v275
  %623 = vmatmul.mubr.bf16.gmra.mxu0 %v274
  %v624 = vpop.f32.mrf.mxu0
  %v625 = vadd.f32 0.0, %v624
  %v626 = vpop.f32.mrf.mxu0
  %v627 = vpop.f32.mrf.mxu0
  %v628 = vadd.f32 0.0, %v627
  %v629 = vpop.f32.mrf.mxu0
  %630 = vmatprep.mubr.bf16.mxu0 %v280
  %631 = vmatmul.mubr.bf16.gmra.mxu0 %v279
  %v632 = vpop.f32.mrf.mxu0
  %v633 = vadd.f32 0.0, %v632
  %v634 = vpop.f32.mrf.mxu0
  %v635 = vpop.f32.mrf.mxu0
  %v636 = vadd.f32 0.0, %v635
  %v637 = vpop.f32.mrf.mxu0
  %638 = vmatprep.mubr.bf16.mxu0 %v285
  %639 = vmatmul.mubr.bf16.gmra.mxu0 %v284
  %v640 = vpop.f32.mrf.mxu0
  %v641 = vadd.f32 0.0, %v640
  %v642 = vpop.f32.mrf.mxu0
  %v643 = vpop.f32.mrf.mxu0
  %v644 = vadd.f32 0.0, %v643
  %v645 = vpop.f32.mrf.mxu0
  %646 = vmatprep.mubr.bf16.mxu0 %v290
  %647 = vmatmul.mubr.bf16.gmra.mxu0 %v289
  %v648 = vpop.f32.mrf.mxu0
  %v649 = vadd.f32 0.0, %v648
  %v650 = vpop.f32.mrf.mxu0
  %v651 = vpop.f32.mrf.mxu0
  %v652 = vadd.f32 0.0, %v651
  %v653 = vpop.f32.mrf.mxu0
  %654 = vmatprep.mubr.bf16.mxu0 %v295
  %655 = vmatmul.mubr.bf16.gmra.mxu0 %v294
  %v656 = vpop.f32.mrf.mxu0
  %v657 = vadd.f32 0.0, %v656
  %v658 = vpop.f32.mrf.mxu0
  %v659 = vpop.f32.mrf.mxu0
  %v660 = vadd.f32 0.0, %v659
  %v661 = vpop.f32.mrf.mxu0
  %662 = vmatprep.mubr.bf16.mxu0 %v300
  %663 = vmatmul.mubr.bf16.gmra.mxu0 %v299
  %v664 = vpop.f32.mrf.mxu0
  %v665 = vadd.f32 0.0, %v664
  %v666 = vpop.f32.mrf.mxu0
  %v667 = vpop.f32.mrf.mxu0
  %v668 = vadd.f32 0.0, %v667
  %v669 = vpop.f32.mrf.mxu0
  %670 = vmatprep.mubr.bf16.mxu0 %v305
  %671 = vmatmul.mubr.bf16.gmra.mxu0 %v304
  %v672 = vpop.f32.mrf.mxu0
  %v673 = vadd.f32 0.0, %v672
  %v674 = vpop.f32.mrf.mxu0
  %v675 = vpop.f32.mrf.mxu0
  %v676 = vadd.f32 0.0, %v675
  %v677 = vpop.f32.mrf.mxu0
  %678 = vdwg.mxu0
  %679 = vmatprep.subr.bf16.mxu0 0
  %680 = vmatpush1.bf16.msra.mxu0 %v508
  %681 = vmatprep.subr.bf16.mxu0 0
  %682 = vmatpush1.bf16.msra.mxu0 %v507
  %683 = vmatprep.subr.bf16.mxu0 0
  %684 = vmatpush1.bf16.msra.mxu0 %v506
  %685 = vmatprep.subr.bf16.mxu0 0
  %686 = vmatpush1.bf16.msra.mxu0 %v505
  %687 = vmatprep.subr.bf16.mxu0 0
  %688 = vmatpush1.bf16.msra.mxu0 %v504
  %689 = vmatprep.subr.bf16.mxu0 0
  %690 = vmatpush1.bf16.msra.mxu0 %v503
  %691 = vmatprep.subr.bf16.mxu0 0
  %692 = vmatpush1.bf16.msra.mxu0 %v502
  %693 = vmatprep.subr.bf16.mxu0 0
  %694 = vmatpush1.bf16.msra.mxu0 %v501
  %695 = vmatprep.subr.bf16.mxu0 0
  %696 = vmatpush2.bf16.msra.mxu0 %v516
  %697 = vmatprep.subr.bf16.mxu0 0
  %698 = vmatpush2.bf16.msra.mxu0 %v515
  %699 = vmatprep.subr.bf16.mxu0 0
  %700 = vmatpush2.bf16.msra.mxu0 %v514
  %701 = vmatprep.subr.bf16.mxu0 0
  %702 = vmatpush2.bf16.msra.mxu0 %v513
  %703 = vmatprep.subr.bf16.mxu0 0
  %704 = vmatpush2.bf16.msra.mxu0 %v512
  %705 = vmatprep.subr.bf16.mxu0 0
  %706 = vmatpush2.bf16.msra.mxu0 %v511
  %707 = vmatprep.subr.bf16.mxu0 0
  %708 = vmatpush2.bf16.msra.mxu0 %v510
  %709 = vmatprep.subr.bf16.mxu0 0
  %710 = vmatpush2.bf16.msra.mxu0 %v509
  %711 = vmatprep.mubr.bf16.mxu0 %v272
  %712 = vmatmul.mubr.bf16.gmra.mxu0 %v271
  %v713 = vpop.f32.mrf.mxu0
  %v714 = vadd.f32 %v617, %v713
  %v715 = vpop.f32.mrf.mxu0
  %v716 = vpop.f32.mrf.mxu0
  %v717 = vadd.f32 %v620, %v716
  %v718 = vpop.f32.mrf.mxu0
  %719 = vmatprep.mubr.bf16.mxu0 %v277
  %720 = vmatmul.mubr.bf16.gmra.mxu0 %v276
  %v721 = vpop.f32.mrf.mxu0
  %v722 = vadd.f32 %v625, %v721
  %v723 = vpop.f32.mrf.mxu0
  %v724 = vpop.f32.mrf.mxu0
  %v725 = vadd.f32 %v628, %v724
  %v726 = vpop.f32.mrf.mxu0
  %727 = vmatprep.mubr.bf16.mxu0 %v282
  %728 = vmatmul.mubr.bf16.gmra.mxu0 %v281
  %v729 = vpop.f32.mrf.mxu0
  %v730 = vadd.f32 %v633, %v729
  %v731 = vpop.f32.mrf.mxu0
  %v732 = vpop.f32.mrf.mxu0
  %v733 = vadd.f32 %v636, %v732
  %v734 = vpop.f32.mrf.mxu0
  %735 = vmatprep.mubr.bf16.mxu0 %v287
  %736 = vmatmul.mubr.bf16.gmra.mxu0 %v286
  %v737 = vpop.f32.mrf.mxu0
  %v738 = vadd.f32 %v641, %v737
  %v739 = vpop.f32.mrf.mxu0
  %v740 = vpop.f32.mrf.mxu0
  %v741 = vadd.f32 %v644, %v740
  %v742 = vpop.f32.mrf.mxu0
  %743 = vmatprep.mubr.bf16.mxu0 %v292
  %744 = vmatmul.mubr.bf16.gmra.mxu0 %v291
  %v745 = vpop.f32.mrf.mxu0
  %v746 = vadd.f32 %v649, %v745
  %v747 = vpop.f32.mrf.mxu0
  %v748 = vpop.f32.mrf.mxu0
  %v749 = vadd.f32 %v652, %v748
  %v750 = vpop.f32.mrf.mxu0
  %751 = vmatprep.mubr.bf16.mxu0 %v297
  %752 = vmatmul.mubr.bf16.gmra.mxu0 %v296
  %v753 = vpop.f32.mrf.mxu0
  %v754 = vadd.f32 %v657, %v753
  %v755 = vpop.f32.mrf.mxu0
  %v756 = vpop.f32.mrf.mxu0
  %v757 = vadd.f32 %v660, %v756
  %v758 = vpop.f32.mrf.mxu0
  %759 = vmatprep.mubr.bf16.mxu0 %v302
  %760 = vmatmul.mubr.bf16.gmra.mxu0 %v301
  %v761 = vpop.f32.mrf.mxu0
  %v762 = vadd.f32 %v665, %v761
  %v763 = vpop.f32.mrf.mxu0
  %v764 = vpop.f32.mrf.mxu0
  %v765 = vadd.f32 %v668, %v764
  %v766 = vpop.f32.mrf.mxu0
  %767 = vmatprep.mubr.bf16.mxu0 %v307
  %768 = vmatmul.mubr.bf16.gmra.mxu0 %v306
  %v769 = vpop.f32.mrf.mxu0
  %v770 = vadd.f32 %v673, %v769
  %v771 = vpop.f32.mrf.mxu0
  %v772 = vpop.f32.mrf.mxu0
  %v773 = vadd.f32 %v676, %v772
  %v774 = vpop.f32.mrf.mxu0
  %775 = vdwg.mxu0
  %776 = vmatprep.subr.bf16.mxu0 0
  %777 = vmatpush1.bf16.msra.mxu0 0
  %778 = vmatprep.subr.bf16.mxu0 0
  %779 = vmatpush1.bf16.msra.mxu0 0
  %780 = vmatprep.subr.bf16.mxu0 0
  %781 = vmatpush1.bf16.msra.mxu0 0
  %782 = vmatprep.subr.bf16.mxu0 0
  %783 = vmatpush1.bf16.msra.mxu0 0
  %784 = vmatprep.subr.bf16.mxu0 0
  %785 = vmatpush1.bf16.msra.mxu0 %v520
  %786 = vmatprep.subr.bf16.mxu0 0
  %787 = vmatpush1.bf16.msra.mxu0 %v519
  %788 = vmatprep.subr.bf16.mxu0 0
  %789 = vmatpush1.bf16.msra.mxu0 %v518
  %790 = vmatprep.subr.bf16.mxu0 0
  %791 = vmatpush1.bf16.msra.mxu0 %v517
  %792 = vmatprep.subr.bf16.mxu0 0
  %793 = vmatpush2.bf16.msra.mxu0 0
  %794 = vmatprep.subr.bf16.mxu0 0
  %795 = vmatpush2.bf16.msra.mxu0 0
  %796 = vmatprep.subr.bf16.mxu0 0
  %797 = vmatpush2.bf16.msra.mxu0 0
  %798 = vmatprep.subr.bf16.mxu0 0
  %799 = vmatpush2.bf16.msra.mxu0 0
  %800 = vmatprep.subr.bf16.mxu0 0
  %801 = vmatpush2.bf16.msra.mxu0 0
  %802 = vmatprep.subr.bf16.mxu0 0
  %803 = vmatpush2.bf16.msra.mxu0 0
  %804 = vmatprep.subr.bf16.mxu0 0
  %805 = vmatpush2.bf16.msra.mxu0 0
  %806 = vmatprep.subr.bf16.mxu0 0
  %807 = vmatpush2.bf16.msra.mxu0 0
  %808 = vmatprep.mubr.bf16.mxu0 0
  %809 = vmatmul.mubr.bf16.gmra.mxu0 %v559
  %v810 = vpop.f32.mrf.mxu0
  %v811 = vadd.f32 %v714, %v810
  %v812 = vpop.f32.mrf.mxu0
  %v813 = vpop.f32.mrf.mxu0
  %v814 = vadd.f32 %v717, %v813
  %v815 = vpop.f32.mrf.mxu0
  %816 = vmatprep.mubr.bf16.mxu0 0
  %817 = vmatmul.mubr.bf16.gmra.mxu0 %v562
  %v818 = vpop.f32.mrf.mxu0
  %v819 = vadd.f32 %v722, %v818
  %v820 = vpop.f32.mrf.mxu0
  %v821 = vpop.f32.mrf.mxu0
  %v822 = vadd.f32 %v725, %v821
  %v823 = vpop.f32.mrf.mxu0
  %824 = vmatprep.mubr.bf16.mxu0 0
  %825 = vmatmul.mubr.bf16.gmra.mxu0 %v565
  %v826 = vpop.f32.mrf.mxu0
  %v827 = vadd.f32 %v730, %v826
  %v828 = vpop.f32.mrf.mxu0
  %v829 = vpop.f32.mrf.mxu0
  %v830 = vadd.f32 %v733, %v829
  %v831 = vpop.f32.mrf.mxu0
  %832 = vmatprep.mubr.bf16.mxu0 0
  %833 = vmatmul.mubr.bf16.gmra.mxu0 %v568
  %v834 = vpop.f32.mrf.mxu0
  %v835 = vadd.f32 %v738, %v834
  %v836 = vpop.f32.mrf.mxu0
  %v837 = vpop.f32.mrf.mxu0
  %v838 = vadd.f32 %v741, %v837
  %v839 = vpop.f32.mrf.mxu0
  %840 = vmatprep.mubr.bf16.mxu0 0
  %841 = vmatmul.mubr.bf16.gmra.mxu0 %v571
  %v842 = vpop.f32.mrf.mxu0
  %v843 = vadd.f32 %v746, %v842
  %v844 = vpop.f32.mrf.mxu0
  %v845 = vpop.f32.mrf.mxu0
  %v846 = vadd.f32 %v749, %v845
  %v847 = vpop.f32.mrf.mxu0
  %848 = vmatprep.mubr.bf16.mxu0 0
  %849 = vmatmul.mubr.bf16.gmra.mxu0 %v574
  %v850 = vpop.f32.mrf.mxu0
  %v851 = vadd.f32 %v754, %v850
  %v852 = vpop.f32.mrf.mxu0
  %v853 = vpop.f32.mrf.mxu0
  %v854 = vadd.f32 %v757, %v853
  %v855 = vpop.f32.mrf.mxu0
  %856 = vmatprep.mubr.bf16.mxu0 0
  %857 = vmatmul.mubr.bf16.gmra.mxu0 %v577
  %v858 = vpop.f32.mrf.mxu0
  %v859 = vadd.f32 %v762, %v858
  %v860 = vpop.f32.mrf.mxu0
  %v861 = vpop.f32.mrf.mxu0
  %v862 = vadd.f32 %v765, %v861
  %v863 = vpop.f32.mrf.mxu0
  %864 = vmatprep.mubr.bf16.mxu0 0
  %865 = vmatmul.mubr.bf16.gmra.mxu0 %v580
  %v866 = vpop.f32.mrf.mxu0
  %v867 = vadd.f32 %v770, %v866
  %v868 = vpop.f32.mrf.mxu0
  %v869 = vpop.f32.mrf.mxu0
  %v870 = vadd.f32 %v773, %v869
  %v871 = vpop.f32.mrf.mxu0
  %872 = vdwg.mxu0
  %v873 = vld [vmem:[%s2] sm:$0x1]
  %v875 = vlaneseq
  %v876 = vshrl.u32 %v875, 7
  %v877 = vsub.s32 0, %v876
  %v878 = vrot.slane %v873, %v877
  %v880 = vmul.f32 %v811, %v878
  %v881 = vmul.f32 %v814, %v878
  %v882 = vmul.f32 %v819, %v878
  %v883 = vmul.f32 %v822, %v878
  %v884 = vmul.f32 %v827, %v878
  %v885 = vmul.f32 %v830, %v878
  %v886 = vmul.f32 %v835, %v878
  %v887 = vmul.f32 %v838, %v878
  %v888 = vmul.f32 %v843, %v878
  %v889 = vmul.f32 %v846, %v878
  %v890 = vmul.f32 %v851, %v878
  %v891 = vmul.f32 %v854, %v878
  %v892 = vmul.f32 %v859, %v878
  %v893 = vmul.f32 %v862, %v878
  %v894 = vmul.f32 %v867, %v878
  %v895 = vmul.f32 %v870, %v878
  %v896 = vld [vmem:[%s3] sm:$0x1]
  %v898 = vlaneseq
  %v899 = vshrl.u32 %v898, 7
  %v900 = vsub.s32 0, %v899
  %v901 = vrot.slane %v896, %v900
  %v903 = vadd.f32 %v880, %v901
  %v904 = vadd.f32 %v881, %v901
  %v905 = vadd.f32 %v882, %v901
  %v906 = vadd.f32 %v883, %v901
  %v907 = vadd.f32 %v884, %v901
  %v908 = vadd.f32 %v885, %v901
  %v909 = vadd.f32 %v886, %v901
  %v910 = vadd.f32 %v887, %v901
  %v911 = vadd.f32 %v888, %v901
  %v912 = vadd.f32 %v889, %v901
  %v913 = vadd.f32 %v890, %v901
  %v914 = vadd.f32 %v891, %v901
  %v915 = vadd.f32 %v892, %v901
  %v916 = vadd.f32 %v893, %v901
  %v917 = vadd.f32 %v894, %v901
  %v918 = vadd.f32 %v895, %v901
  %v919 = vld [vmem:[%s4] sm:$0xff]
  %v920 = vld [vmem:[%s4 + $0x8] sm:$0xff]
  %v921 = vld [vmem:[%s4 + $0x10] sm:$0xff]
  %v922 = vld [vmem:[%s4 + $0x18] sm:$0xff]
  %v923 = vld [vmem:[%s4 + $0x20] sm:$0xff]
  %v924 = vld [vmem:[%s4 + $0x28] sm:$0xff]
  %v925 = vld [vmem:[%s4 + $0x30] sm:$0xff]
  %v926 = vld [vmem:[%s4 + $0x38] sm:$0xff]
  %v927 = vld [vmem:[%s4 + $0x40] sm:$0xff]
  %v928 = vld [vmem:[%s4 + $0x48] sm:$0xff]
  %v929 = vld [vmem:[%s4 + $0x50] sm:$0xff]
  %v930 = vld [vmem:[%s4 + $0x58] sm:$0xff]
  %v931 = vld [vmem:[%s4 + $0x60] sm:$0xff]
  %v932 = vld [vmem:[%s4 + $0x68] sm:$0xff]
  %v933 = vld [vmem:[%s4 + $0x70] sm:$0xff]
  %v934 = vld [vmem:[%s4 + $0x78] sm:$0xff]
  %v935 = vadd.f32 %v903, %v919
  %v936 = vadd.f32 %v904, %v920
  %v937 = vadd.f32 %v905, %v921
  %v938 = vadd.f32 %v906, %v922
  %v939 = vadd.f32 %v907, %v923
  %v940 = vadd.f32 %v908, %v924
  %v941 = vadd.f32 %v909, %v925
  %v942 = vadd.f32 %v910, %v926
  %v943 = vadd.f32 %v911, %v927
  %v944 = vadd.f32 %v912, %v928
  %v945 = vadd.f32 %v913, %v929
  %v946 = vadd.f32 %v914, %v930
  %v947 = vadd.f32 %v915, %v931
  %v948 = vadd.f32 %v916, %v932
  %v949 = vadd.f32 %v917, %v933
  %v950 = vadd.f32 %v918, %v934
  %v951 = vmax.f32 %v935, 0.0
  %v952 = vmax.f32 %v936, 0.0
  %v953 = vmax.f32 %v937, 0.0
  %v954 = vmax.f32 %v938, 0.0
  %v955 = vmax.f32 %v939, 0.0
  %v956 = vmax.f32 %v940, 0.0
  %v957 = vmax.f32 %v941, 0.0
  %v958 = vmax.f32 %v942, 0.0
  %v959 = vmax.f32 %v943, 0.0
  %v960 = vmax.f32 %v944, 0.0
  %v961 = vmax.f32 %v945, 0.0
  %v962 = vmax.f32 %v946, 0.0
  %v963 = vmax.f32 %v947, 0.0
  %v964 = vmax.f32 %v948, 0.0
  %v965 = vmax.f32 %v949, 0.0
  %v966 = vmax.f32 %v950, 0.0
  %967 = vst [vmem:[%s5] sm:$0xff] %v951
  %968 = vst [vmem:[%s5 + $0x8] sm:$0xff] %v952
  %969 = vst [vmem:[%s5 + $0x10] sm:$0xff] %v953
  %970 = vst [vmem:[%s5 + $0x18] sm:$0xff] %v954
  %971 = vst [vmem:[%s5 + $0x20] sm:$0xff] %v955
  %972 = vst [vmem:[%s5 + $0x28] sm:$0xff] %v956
  %973 = vst [vmem:[%s5 + $0x30] sm:$0xff] %v957
  %974 = vst [vmem:[%s5 + $0x38] sm:$0xff] %v958
  %975 = vst [vmem:[%s5 + $0x40] sm:$0xff] %v959
  %976 = vst [vmem:[%s5 + $0x48] sm:$0xff] %v960
  %977 = vst [vmem:[%s5 + $0x50] sm:$0xff] %v961
  %978 = vst [vmem:[%s5 + $0x58] sm:$0xff] %v962
  %979 = vst [vmem:[%s5 + $0x60] sm:$0xff] %v963
  %980 = vst [vmem:[%s5 + $0x68] sm:$0xff] %v964
  %981 = vst [vmem:[%s5 + $0x70] sm:$0xff] %v965
  %982 = vst [vmem:[%s5 + $0x78] sm:$0xff] %v966
  // Predicated region
  $region22: #{feature_extractor_forward.11} parent=0 // pred_check
    _
  $region23: #{feature_extractor_forward.11} parent=0 // pred_check_branch
    %984 = sbr.rel (0) target = $region25
  $region24: #{feature_extractor_forward.11} parent=0 // pred_region
    _
  $region25: #{feature_extractor_forward.11} parent=0 // pred_fallthru
    _
  // Predicated region
  $region26: #{feature_extractor_forward.11} parent=0 // pred_check
    _
  $region27: #{feature_extractor_forward.11} parent=0 // pred_check_branch
    %986 = sbr.rel (0) target = $region29
  $region28: #{feature_extractor_forward.11} parent=0 // pred_region
    _
  $region29: #{feature_extractor_forward.11} parent=0 // pred_fallthru
    _

// kernel: feature_extractor_forward.10
$region0: #{feature_extractor_forward.10}
  #allocation0 [shape = 'u32[]', space=smem, size = 0x4, offset = 0x4, fixed_abs, tag = 'smem constant byte address 0x4 - core index']
  #allocation1 [shape = 'u32[144,128]{1,0:T(1,128)}', space=vmem, size = 0x12000, scoped, tag = 'internal scratch']
  %s0 = inlined_call_operand.vmem [shape: bf16[128,576], index: 0, kind: input, shape index: {}]
  %s1 = inlined_call_operand.vmem [shape: bf16[576,128], index: 1, kind: input, shape index: {}]
  %s2 = inlined_call_operand.vmem [shape: f32[1,128], index: 2, kind: input, shape index: {}]
  %s3 = inlined_call_operand.vmem [shape: f32[1,128], index: 3, kind: input, shape index: {}]
  %s4 = inlined_call_operand.vmem [shape: f32[128,128], index: 4, kind: output, shape index: {}]
  %s5 = sld [smem:[#allocation0]]
  $region26: #{feature_extractor_forward.10} parent=0
    _
  %s7 = ssub.s32 1, %s5
  %s8 = scalar_select 0, %s7, %s5
  // Predicated region
  $region2: #{feature_extractor_forward.10} parent=0 // pred_check
    _
  $region3: #{feature_extractor_forward.10} parent=0 // pred_check_branch
    %10 = sbr.rel (0) target = $region5
  $region4: #{feature_extractor_forward.10} parent=0 // pred_region
    _
  $region5: #{feature_extractor_forward.10} parent=0 // pred_fallthru
    _
  // Predicated region
  $region6: #{feature_extractor_forward.10} parent=0 // pred_check
    _
  $region7: #{feature_extractor_forward.10} parent=0 // pred_check_branch
    %12 = sbr.rel (0) target = $region9
  $region8: #{feature_extractor_forward.10} parent=0 // pred_region
    _
  $region9: #{feature_extractor_forward.10} parent=0 // pred_fallthru
    _
  // Predicated region
  $region10: #{feature_extractor_forward.10} parent=0 // pred_check
    _
  $region11: #{feature_extractor_forward.10} parent=0 // pred_check_branch
    %14 = sbr.rel (0) target = $region13
  $region12: #{feature_extractor_forward.10} parent=0 // pred_region
    _
  $region13: #{feature_extractor_forward.10} parent=0 // pred_fallthru
    _
  // Predicated region
  $region14: #{feature_extractor_forward.10} parent=0 // pred_check
    _
  $region15: #{feature_extractor_forward.10} parent=0 // pred_check_branch
    %16 = sbr.rel (0) target = $region17
  $region16: #{feature_extractor_forward.10} parent=0 // pred_region
    _
  $region17: #{feature_extractor_forward.10} parent=0 // pred_fallthru
    _
  %v18 = vld [vmem:[%s0] sm:$0xff]
  %v19 = vld [vmem:[%s0 + $0x8] sm:$0xff]
  %v20 = vld [vmem:[%s0 + $0x10] sm:$0xf]
  %v21 = vld [vmem:[%s0 + $0x14] sm:$0xff]
  %v22 = vld [vmem:[%s0 + $0x1c] sm:$0xff]
  %v23 = vld [vmem:[%s0 + $0x24] sm:$0xf]
  %v24 = vld [vmem:[%s0 + $0x28] sm:$0xff]
  %v25 = vld [vmem:[%s0 + $0x30] sm:$0xff]
  %v26 = vld [vmem:[%s0 + $0x38] sm:$0xf]
  %v27 = vld [vmem:[%s0 + $0x3c] sm:$0xff]
  %v28 = vld [vmem:[%s0 + $0x44] sm:$0xff]
  %v29 = vld [vmem:[%s0 + $0x4c] sm:$0xf]
  %v30 = vld [vmem:[%s0 + $0x50] sm:$0xff]
  %v31 = vld [vmem:[%s0 + $0x58] sm:$0xff]
  %v32 = vld [vmem:[%s0 + $0x60] sm:$0xf]
  %v33 = vld [vmem:[%s0 + $0x64] sm:$0xff]
  %v34 = vld [vmem:[%s0 + $0x6c] sm:$0xff]
  %v35 = vld [vmem:[%s0 + $0x74] sm:$0xf]
  %v36 = vld [vmem:[%s0 + $0x78] sm:$0xff]
  %v37 = vld [vmem:[%s0 + $0x80] sm:$0xff]
  %v38 = vld [vmem:[%s0 + $0x88] sm:$0xf]
  %v39 = vld [vmem:[%s0 + $0x8c] sm:$0xff]
  %v40 = vld [vmem:[%s0 + $0x94] sm:$0xff]
  %v41 = vld [vmem:[%s0 + $0x9c] sm:$0xf]
  %v42 = vld [vmem:[%s0 + $0xa0] sm:$0xff]
  %v43 = vld [vmem:[%s0 + $0xa8] sm:$0xff]
  %v44 = vld [vmem:[%s0 + $0xb0] sm:$0xf]
  %v45 = vld [vmem:[%s0 + $0xb4] sm:$0xff]
  %v46 = vld [vmem:[%s0 + $0xbc] sm:$0xff]
  %v47 = vld [vmem:[%s0 + $0xc4] sm:$0xf]
  %v48 = vld [vmem:[%s0 + $0xc8] sm:$0xff]
  %v49 = vld [vmem:[%s0 + $0xd0] sm:$0xff]
  %v50 = vld [vmem:[%s0 + $0xd8] sm:$0xf]
  %v51 = vld [vmem:[%s0 + $0xdc] sm:$0xff]
  %v52 = vld [vmem:[%s0 + $0xe4] sm:$0xff]
  %v53 = vld [vmem:[%s0 + $0xec] sm:$0xf]
  %v54 = vld [vmem:[%s0 + $0xf0] sm:$0xff]
  %v55 = vld [vmem:[%s0 + $0xf8] sm:$0xff]
  %v56 = vld [vmem:[%s0 + $0x100] sm:$0xf]
  %v57 = vld [vmem:[%s0 + $0x104] sm:$0xff]
  %v58 = vld [vmem:[%s0 + $0x10c] sm:$0xff]
  %v59 = vld [vmem:[%s0 + $0x114] sm:$0xf]
  %v60 = vld [vmem:[%s0 + $0x118] sm:$0xff]
  %v61 = vld [vmem:[%s0 + $0x120] sm:$0xff]
  %v62 = vld [vmem:[%s0 + $0x128] sm:$0xf]
  %v63 = vld [vmem:[%s0 + $0x12c] sm:$0xff]
  %v64 = vld [vmem:[%s0 + $0x134] sm:$0xff]
  %v65 = vld [vmem:[%s0 + $0x13c] sm:$0xf]
  %v66 = vld [vmem:[%s1] sm:$0xf]
  %v67 = vld [vmem:[%s1 + $0x4] sm:$0xf]
  %v68 = vld [vmem:[%s1 + $0x8] sm:$0xf]
  %v69 = vld [vmem:[%s1 + $0xc] sm:$0xf]
  %v70 = vld [vmem:[%s1 + $0x10] sm:$0xf]
  %v71 = vld [vmem:[%s1 + $0x14] sm:$0xf]
  %v72 = vld [vmem:[%s1 + $0x18] sm:$0xf]
  %v73 = vld [vmem:[%s1 + $0x1c] sm:$0xf]
  %v74 = vld [vmem:[%s1 + $0x20] sm:$0xf]
  %v75 = vld [vmem:[%s1 + $0x24] sm:$0xf]
  %v76 = vld [vmem:[%s1 + $0x28] sm:$0xf]
  %v77 = vld [vmem:[%s1 + $0x2c] sm:$0xf]
  %v78 = vld [vmem:[%s1 + $0x30] sm:$0xf]
  %v79 = vld [vmem:[%s1 + $0x34] sm:$0xf]
  %v80 = vld [vmem:[%s1 + $0x38] sm:$0xf]
  %v81 = vld [vmem:[%s1 + $0x3c] sm:$0xf]
  %v82 = vld [vmem:[%s1 + $0x40] sm:$0xf]
  %v83 = vld [vmem:[%s1 + $0x44] sm:$0xf]
  %v84 = vld [vmem:[%s1 + $0x48] sm:$0xf]
  %v85 = vld [vmem:[%s1 + $0x4c] sm:$0xf]
  %v86 = vld [vmem:[%s1 + $0x50] sm:$0xf]
  %v87 = vld [vmem:[%s1 + $0x54] sm:$0xf]
  %v88 = vld [vmem:[%s1 + $0x58] sm:$0xf]
  %v89 = vld [vmem:[%s1 + $0x5c] sm:$0xf]
  %v90 = vld [vmem:[%s1 + $0x60] sm:$0xf]
  %v91 = vld [vmem:[%s1 + $0x64] sm:$0xf]
  %v92 = vld [vmem:[%s1 + $0x68] sm:$0xf]
  %v93 = vld [vmem:[%s1 + $0x6c] sm:$0xf]
  %v94 = vld [vmem:[%s1 + $0x70] sm:$0xf]
  %v95 = vld [vmem:[%s1 + $0x74] sm:$0xf]
  %v96 = vld [vmem:[%s1 + $0x78] sm:$0xf]
  %v97 = vld [vmem:[%s1 + $0x7c] sm:$0xf]
  %v98 = vld [vmem:[%s1 + $0x80] sm:$0xf]
  %v99 = vld [vmem:[%s1 + $0x84] sm:$0xf]
  %v100 = vld [vmem:[%s1 + $0x88] sm:$0xf]
  %v101 = vld [vmem:[%s1 + $0x8c] sm:$0xf]
  %v102 = vld [vmem:[%s1 + $0x90] sm:$0xf]
  %v103 = vld [vmem:[%s1 + $0x94] sm:$0xf]
  %v104 = vld [vmem:[%s1 + $0x98] sm:$0xf]
  %v105 = vld [vmem:[%s1 + $0x9c] sm:$0xf]
  %v106 = vld [vmem:[%s1 + $0xa0] sm:$0xf]
  %v107 = vld [vmem:[%s1 + $0xa4] sm:$0xf]
  %v108 = vld [vmem:[%s1 + $0xa8] sm:$0xf]
  %v109 = vld [vmem:[%s1 + $0xac] sm:$0xf]
  %v110 = vld [vmem:[%s1 + $0xb0] sm:$0xf]
  %v111 = vld [vmem:[%s1 + $0xb4] sm:$0xf]
  %v112 = vld [vmem:[%s1 + $0xb8] sm:$0xf]
  %v113 = vld [vmem:[%s1 + $0xbc] sm:$0xf]
  %v114 = vld [vmem:[%s1 + $0xc0] sm:$0xf]
  %v115 = vld [vmem:[%s1 + $0xc4] sm:$0xf]
  %v116 = vld [vmem:[%s1 + $0xc8] sm:$0xf]
  %v117 = vld [vmem:[%s1 + $0xcc] sm:$0xf]
  %v118 = vld [vmem:[%s1 + $0xd0] sm:$0xf]
  %v119 = vld [vmem:[%s1 + $0xd4] sm:$0xf]
  %v120 = vld [vmem:[%s1 + $0xd8] sm:$0xf]
  %v121 = vld [vmem:[%s1 + $0xdc] sm:$0xf]
  %v122 = vld [vmem:[%s1 + $0xe0] sm:$0xf]
  %v123 = vld [vmem:[%s1 + $0xe4] sm:$0xf]
  %v124 = vld [vmem:[%s1 + $0xe8] sm:$0xf]
  %v125 = vld [vmem:[%s1 + $0xec] sm:$0xf]
  %v126 = vld [vmem:[%s1 + $0xf0] sm:$0xf]
  %v127 = vld [vmem:[%s1 + $0xf4] sm:$0xf]
  %v128 = vld [vmem:[%s1 + $0xf8] sm:$0xf]
  %v129 = vld [vmem:[%s1 + $0xfc] sm:$0xf]
  %v130 = vld [vmem:[%s1 + $0x100] sm:$0xf]
  %v131 = vld [vmem:[%s1 + $0x104] sm:$0xf]
  %v132 = vld [vmem:[%s1 + $0x108] sm:$0xf]
  %v133 = vld [vmem:[%s1 + $0x10c] sm:$0xf]
  %v134 = vld [vmem:[%s1 + $0x110] sm:$0xf]
  %v135 = vld [vmem:[%s1 + $0x114] sm:$0xf]
  %v136 = vld [vmem:[%s1 + $0x118] sm:$0xf]
  %v137 = vld [vmem:[%s1 + $0x11c] sm:$0xf]
  %v186 = vunpack.c.l.b16 %v18
  %v187 = vunpack.c.h.b16 %v18
  %v188 = vunpack.c.l.b16 %v19
  %v189 = vunpack.c.h.b16 %v19
  %v190 = vunpack.c.l.b16 %v20
  %v191 = vunpack.c.l.b16 %v21
  %v192 = vunpack.c.h.b16 %v21
  %v193 = vunpack.c.l.b16 %v22
  %v194 = vunpack.c.h.b16 %v22
  %v195 = vunpack.c.l.b16 %v23
  %v196 = vunpack.c.l.b16 %v24
  %v197 = vunpack.c.h.b16 %v24
  %v198 = vunpack.c.l.b16 %v25
  %v199 = vunpack.c.h.b16 %v25
  %v200 = vunpack.c.l.b16 %v26
  %v201 = vunpack.c.l.b16 %v27
  %v202 = vunpack.c.h.b16 %v27
  %v203 = vunpack.c.l.b16 %v28
  %v204 = vunpack.c.h.b16 %v28
  %v205 = vunpack.c.l.b16 %v29
  %v206 = vunpack.c.l.b16 %v30
  %v207 = vunpack.c.h.b16 %v30
  %v208 = vunpack.c.l.b16 %v31
  %v209 = vunpack.c.h.b16 %v31
  %v210 = vunpack.c.l.b16 %v32
  %v211 = vunpack.c.l.b16 %v33
  %v212 = vunpack.c.h.b16 %v33
  %v213 = vunpack.c.l.b16 %v34
  %v214 = vunpack.c.h.b16 %v34
  %v215 = vunpack.c.l.b16 %v35
  %v216 = vunpack.c.l.b16 %v36
  %v217 = vunpack.c.h.b16 %v36
  %v218 = vunpack.c.l.b16 %v37
  %v219 = vunpack.c.h.b16 %v37
  %v220 = vunpack.c.l.b16 %v38
  %v221 = vunpack.c.l.b16 %v39
  %v222 = vunpack.c.h.b16 %v39
  %v223 = vunpack.c.l.b16 %v40
  %v224 = vunpack.c.h.b16 %v40
  %v225 = vunpack.c.l.b16 %v41
  %v226 = vunpack.c.l.b16 %v42
  %v227 = vunpack.c.h.b16 %v42
  %v228 = vunpack.c.l.b16 %v43
  %v229 = vunpack.c.h.b16 %v43
  %v230 = vunpack.c.l.b16 %v44
  %v231 = vunpack.c.l.b16 %v45
  %v232 = vunpack.c.h.b16 %v45
  %v233 = vunpack.c.l.b16 %v46
  %v234 = vunpack.c.h.b16 %v46
  %v235 = vunpack.c.l.b16 %v47
  %v236 = vunpack.c.l.b16 %v48
  %v237 = vunpack.c.h.b16 %v48
  %v238 = vunpack.c.l.b16 %v49
  %v239 = vunpack.c.h.b16 %v49
  %v240 = vunpack.c.l.b16 %v50
  %v241 = vunpack.c.l.b16 %v51
  %v242 = vunpack.c.h.b16 %v51
  %v243 = vunpack.c.l.b16 %v52
  %v244 = vunpack.c.h.b16 %v52
  %v245 = vunpack.c.l.b16 %v53
  %v246 = vunpack.c.l.b16 %v54
  %v247 = vunpack.c.h.b16 %v54
  %v248 = vunpack.c.l.b16 %v55
  %v249 = vunpack.c.h.b16 %v55
  %v250 = vunpack.c.l.b16 %v56
  %v251 = vunpack.c.l.b16 %v57
  %v252 = vunpack.c.h.b16 %v57
  %v253 = vunpack.c.l.b16 %v58
  %v254 = vunpack.c.h.b16 %v58
  %v255 = vunpack.c.l.b16 %v59
  %v256 = vunpack.c.l.b16 %v60
  %v257 = vunpack.c.h.b16 %v60
  %v258 = vunpack.c.l.b16 %v61
  %v259 = vunpack.c.h.b16 %v61
  %v260 = vunpack.c.l.b16 %v62
  %v261 = vunpack.c.l.b16 %v63
  %v262 = vunpack.c.h.b16 %v63
  %v263 = vunpack.c.l.b16 %v64
  %v264 = vunpack.c.h.b16 %v64
  %v265 = vunpack.c.l.b16 %v65
  %v266 = vpack.c.b16 %v191, %v186
  %v267 = vpack.c.b16 %v192, %v187
  %v268 = vpack.c.b16 %v193, %v188
  %v269 = vpack.c.b16 %v194, %v189
  %v270 = vpack.c.b16 %v195, %v190
  %v271 = vpack.c.b16 %v201, %v196
  %v272 = vpack.c.b16 %v202, %v197
  %v273 = vpack.c.b16 %v203, %v198
  %v274 = vpack.c.b16 %v204, %v199
  %v275 = vpack.c.b16 %v205, %v200
  %v276 = vpack.c.b16 %v211, %v206
  %v277 = vpack.c.b16 %v212, %v207
  %v278 = vpack.c.b16 %v213, %v208
  %v279 = vpack.c.b16 %v214, %v209
  %v280 = vpack.c.b16 %v215, %v210
  %v281 = vpack.c.b16 %v221, %v216
  %v282 = vpack.c.b16 %v222, %v217
  %v283 = vpack.c.b16 %v223, %v218
  %v284 = vpack.c.b16 %v224, %v219
  %v285 = vpack.c.b16 %v225, %v220
  %v286 = vpack.c.b16 %v231, %v226
  %v287 = vpack.c.b16 %v232, %v227
  %v288 = vpack.c.b16 %v233, %v228
  %v289 = vpack.c.b16 %v234, %v229
  %v290 = vpack.c.b16 %v235, %v230
  %v291 = vpack.c.b16 %v241, %v236
  %v292 = vpack.c.b16 %v242, %v237
  %v293 = vpack.c.b16 %v243, %v238
  %v294 = vpack.c.b16 %v244, %v239
  %v295 = vpack.c.b16 %v245, %v240
  %v296 = vpack.c.b16 %v251, %v246
  %v297 = vpack.c.b16 %v252, %v247
  %v298 = vpack.c.b16 %v253, %v248
  %v299 = vpack.c.b16 %v254, %v249
  %v300 = vpack.c.b16 %v255, %v250
  %v301 = vpack.c.b16 %v261, %v256
  %v302 = vpack.c.b16 %v262, %v257
  %v303 = vpack.c.b16 %v263, %v258
  %v304 = vpack.c.b16 %v264, %v259
  %v305 = vpack.c.b16 %v265, %v260
  %v410 = vunpack.c.l.b16 %v66
  %v411 = vunpack.c.l.b16 %v67
  %v412 = vunpack.c.l.b16 %v68
  %v413 = vunpack.c.l.b16 %v69
  %v414 = vunpack.c.l.b16 %v70
  %v415 = vunpack.c.l.b16 %v71
  %v416 = vunpack.c.l.b16 %v72
  %v417 = vunpack.c.l.b16 %v73
  %v418 = vunpack.c.l.b16 %v74
  %v419 = vunpack.c.l.b16 %v75
  %v420 = vunpack.c.l.b16 %v76
  %v421 = vunpack.c.l.b16 %v77
  %v422 = vunpack.c.l.b16 %v78
  %v423 = vunpack.c.l.b16 %v79
  %v424 = vunpack.c.l.b16 %v80
  %v425 = vunpack.c.l.b16 %v81
  %v426 = vunpack.c.l.b16 %v82
  %v427 = vunpack.c.l.b16 %v83
  %v428 = vunpack.c.l.b16 %v84
  %v429 = vunpack.c.l.b16 %v85
  %v430 = vunpack.c.l.b16 %v86
  %v431 = vunpack.c.l.b16 %v87
  %v432 = vunpack.c.l.b16 %v88
  %v433 = vunpack.c.l.b16 %v89
  %v434 = vunpack.c.l.b16 %v90
  %v435 = vunpack.c.l.b16 %v91
  %v436 = vunpack.c.l.b16 %v92
  %v437 = vunpack.c.l.b16 %v93
  %v438 = vunpack.c.l.b16 %v94
  %v439 = vunpack.c.l.b16 %v95
  %v440 = vunpack.c.l.b16 %v96
  %v441 = vunpack.c.l.b16 %v97
  %v442 = vunpack.c.l.b16 %v98
  %v443 = vunpack.c.l.b16 %v99
  %v444 = vunpack.c.l.b16 %v100
  %v445 = vunpack.c.l.b16 %v101
  %v446 = vunpack.c.l.b16 %v102
  %v447 = vunpack.c.l.b16 %v103
  %v448 = vunpack.c.l.b16 %v104
  %v449 = vunpack.c.l.b16 %v105
  %v450 = vunpack.c.l.b16 %v106
  %v451 = vunpack.c.l.b16 %v107
  %v452 = vunpack.c.l.b16 %v108
  %v453 = vunpack.c.l.b16 %v109
  %v454 = vunpack.c.l.b16 %v110
  %v455 = vunpack.c.l.b16 %v111
  %v456 = vunpack.c.l.b16 %v112
  %v457 = vunpack.c.l.b16 %v113
  %v458 = vunpack.c.l.b16 %v114
  %v459 = vunpack.c.l.b16 %v115
  %v460 = vunpack.c.l.b16 %v116
  %v461 = vunpack.c.l.b16 %v117
  %v462 = vunpack.c.l.b16 %v118
  %v463 = vunpack.c.l.b16 %v119
  %v464 = vunpack.c.l.b16 %v120
  %v465 = vunpack.c.l.b16 %v121
  %v466 = vunpack.c.l.b16 %v122
  %v467 = vunpack.c.l.b16 %v123
  %v468 = vunpack.c.l.b16 %v124
  %v469 = vunpack.c.l.b16 %v125
  %v470 = vunpack.c.l.b16 %v126
  %v471 = vunpack.c.l.b16 %v127
  %v472 = vunpack.c.l.b16 %v128
  %v473 = vunpack.c.l.b16 %v129
  %v474 = vunpack.c.l.b16 %v130
  %v475 = vunpack.c.l.b16 %v131
  %v476 = vunpack.c.l.b16 %v132
  %v477 = vunpack.c.l.b16 %v133
  %v478 = vunpack.c.l.b16 %v134
  %v479 = vunpack.c.l.b16 %v135
  %v480 = vunpack.c.l.b16 %v136
  %v481 = vunpack.c.l.b16 %v137
  %v482 = vpack.c.b16 %v411, %v410
  %v483 = vpack.c.b16 %v413, %v412
  %v484 = vpack.c.b16 %v415, %v414
  %v485 = vpack.c.b16 %v417, %v416
  %v486 = vpack.c.b16 %v419, %v418
  %v487 = vpack.c.b16 %v421, %v420
  %v488 = vpack.c.b16 %v423, %v422
  %v489 = vpack.c.b16 %v425, %v424
  %v490 = vpack.c.b16 %v427, %v426
  %v491 = vpack.c.b16 %v429, %v428
  %v492 = vpack.c.b16 %v431, %v430
  %v493 = vpack.c.b16 %v433, %v432
  %v494 = vpack.c.b16 %v435, %v434
  %v495 = vpack.c.b16 %v437, %v436
  %v496 = vpack.c.b16 %v439, %v438
  %v497 = vpack.c.b16 %v441, %v440
  %v498 = vpack.c.b16 %v443, %v442
  %v499 = vpack.c.b16 %v445, %v444
  %v500 = vpack.c.b16 %v447, %v446
  %v501 = vpack.c.b16 %v449, %v448
  %v502 = vpack.c.b16 %v451, %v450
  %v503 = vpack.c.b16 %v453, %v452
  %v504 = vpack.c.b16 %v455, %v454
  %v505 = vpack.c.b16 %v457, %v456
  %v506 = vpack.c.b16 %v459, %v458
  %v507 = vpack.c.b16 %v461, %v460
  %v508 = vpack.c.b16 %v463, %v462
  %v509 = vpack.c.b16 %v465, %v464
  %v510 = vpack.c.b16 %v467, %v466
  %v511 = vpack.c.b16 %v469, %v468
  %v512 = vpack.c.b16 %v471, %v470
  %v513 = vpack.c.b16 %v473, %v472
  %v514 = vpack.c.b16 %v475, %v474
  %v515 = vpack.c.b16 %v477, %v476
  %v516 = vpack.c.b16 %v479, %v478
  %v517 = vpack.c.b16 %v481, %v480
  %vm554 = vcmask 523264
  %v556 = vsel %vm554, %v270, 0
  %v559 = vsel %vm554, %v275, 0
  %v562 = vsel %vm554, %v280, 0
  %v565 = vsel %vm554, %v285, 0
  %v568 = vsel %vm554, %v290, 0
  %v571 = vsel %vm554, %v295, 0
  %v574 = vsel %vm554, %v300, 0
  %v577 = vsel %vm554, %v305, 0
  %579 = vmatprep.subr.bf16.mxu0 0
  %580 = vmatpush1.bf16.msra.mxu0 %v489
  %581 = vmatprep.subr.bf16.mxu0 0
  %582 = vmatpush1.bf16.msra.mxu0 %v488
  %583 = vmatprep.subr.bf16.mxu0 0
  %584 = vmatpush1.bf16.msra.mxu0 %v487
  %585 = vmatprep.subr.bf16.mxu0 0
  %586 = vmatpush1.bf16.msra.mxu0 %v486
  %587 = vmatprep.subr.bf16.mxu0 0
  %588 = vmatpush1.bf16.msra.mxu0 %v485
  %589 = vmatprep.subr.bf16.mxu0 0
  %590 = vmatpush1.bf16.msra.mxu0 %v484
  %591 = vmatprep.subr.bf16.mxu0 0
  %592 = vmatpush1.bf16.msra.mxu0 %v483
  %593 = vmatprep.subr.bf16.mxu0 0
  %594 = vmatpush1.bf16.msra.mxu0 %v482
  %595 = vmatprep.subr.bf16.mxu0 0
  %596 = vmatpush2.bf16.msra.mxu0 %v497
  %597 = vmatprep.subr.bf16.mxu0 0
  %598 = vmatpush2.bf16.msra.mxu0 %v496
  %599 = vmatprep.subr.bf16.mxu0 0
  %600 = vmatpush2.bf16.msra.mxu0 %v495
  %601 = vmatprep.subr.bf16.mxu0 0
  %602 = vmatpush2.bf16.msra.mxu0 %v494
  %603 = vmatprep.subr.bf16.mxu0 0
  %604 = vmatpush2.bf16.msra.mxu0 %v493
  %605 = vmatprep.subr.bf16.mxu0 0
  %606 = vmatpush2.bf16.msra.mxu0 %v492
  %607 = vmatprep.subr.bf16.mxu0 0
  %608 = vmatpush2.bf16.msra.mxu0 %v491
  %609 = vmatprep.subr.bf16.mxu0 0
  %610 = vmatpush2.bf16.msra.mxu0 %v490
  %611 = vmatprep.mubr.bf16.mxu0 %v267
  %612 = vmatmul.mubr.bf16.gmra.mxu0 %v266
  %v613 = vpop.f32.mrf.mxu0
  %v614 = vadd.f32 0.0, %v613
  %v615 = vpop.f32.mrf.mxu0
  %v616 = vpop.f32.mrf.mxu0
  %v617 = vadd.f32 0.0, %v616
  %v618 = vpop.f32.mrf.mxu0
  %619 = vmatprep.mubr.bf16.mxu0 %v272
  %620 = vmatmul.mubr.bf16.gmra.mxu0 %v271
  %v621 = vpop.f32.mrf.mxu0
  %v622 = vadd.f32 0.0, %v621
  %v623 = vpop.f32.mrf.mxu0
  %v624 = vpop.f32.mrf.mxu0
  %v625 = vadd.f32 0.0, %v624
  %v626 = vpop.f32.mrf.mxu0
  %627 = vmatprep.mubr.bf16.mxu0 %v277
  %628 = vmatmul.mubr.bf16.gmra.mxu0 %v276
  %v629 = vpop.f32.mrf.mxu0
  %v630 = vadd.f32 0.0, %v629
  %v631 = vpop.f32.mrf.mxu0
  %v632 = vpop.f32.mrf.mxu0
  %v633 = vadd.f32 0.0, %v632
  %v634 = vpop.f32.mrf.mxu0
  %635 = vmatprep.mubr.bf16.mxu0 %v282
  %636 = vmatmul.mubr.bf16.gmra.mxu0 %v281
  %v637 = vpop.f32.mrf.mxu0
  %v638 = vadd.f32 0.0, %v637
  %v639 = vpop.f32.mrf.mxu0
  %v640 = vpop.f32.mrf.mxu0
  %v641 = vadd.f32 0.0, %v640
  %v642 = vpop.f32.mrf.mxu0
  %643 = vmatprep.mubr.bf16.mxu0 %v287
  %644 = vmatmul.mubr.bf16.gmra.mxu0 %v286
  %v645 = vpop.f32.mrf.mxu0
  %v646 = vadd.f32 0.0, %v645
  %v647 = vpop.f32.mrf.mxu0
  %v648 = vpop.f32.mrf.mxu0
  %v649 = vadd.f32 0.0, %v648
  %v650 = vpop.f32.mrf.mxu0
  %651 = vmatprep.mubr.bf16.mxu0 %v292
  %652 = vmatmul.mubr.bf16.gmra.mxu0 %v291
  %v653 = vpop.f32.mrf.mxu0
  %v654 = vadd.f32 0.0, %v653
  %v655 = vpop.f32.mrf.mxu0
  %v656 = vpop.f32.mrf.mxu0
  %v657 = vadd.f32 0.0, %v656
  %v658 = vpop.f32.mrf.mxu0
  %659 = vmatprep.mubr.bf16.mxu0 %v297
  %660 = vmatmul.mubr.bf16.gmra.mxu0 %v296
  %v661 = vpop.f32.mrf.mxu0
  %v662 = vadd.f32 0.0, %v661
  %v663 = vpop.f32.mrf.mxu0
  %v664 = vpop.f32.mrf.mxu0
  %v665 = vadd.f32 0.0, %v664
  %v666 = vpop.f32.mrf.mxu0
  %667 = vmatprep.mubr.bf16.mxu0 %v302
  %668 = vmatmul.mubr.bf16.gmra.mxu0 %v301
  %v669 = vpop.f32.mrf.mxu0
  %v670 = vadd.f32 0.0, %v669
  %v671 = vpop.f32.mrf.mxu0
  %v672 = vpop.f32.mrf.mxu0
  %v673 = vadd.f32 0.0, %v672
  %v674 = vpop.f32.mrf.mxu0
  %675 = vdwg.mxu0
  %676 = vmatprep.subr.bf16.mxu0 0
  %677 = vmatpush1.bf16.msra.mxu0 %v505
  %678 = vmatprep.subr.bf16.mxu0 0
  %679 = vmatpush1.bf16.msra.mxu0 %v504
  %680 = vmatprep.subr.bf16.mxu0 0
  %681 = vmatpush1.bf16.msra.mxu0 %v503
  %682 = vmatprep.subr.bf16.mxu0 0
  %683 = vmatpush1.bf16.msra.mxu0 %v502
  %684 = vmatprep.subr.bf16.mxu0 0
  %685 = vmatpush1.bf16.msra.mxu0 %v501
  %686 = vmatprep.subr.bf16.mxu0 0
  %687 = vmatpush1.bf16.msra.mxu0 %v500
  %688 = vmatprep.subr.bf16.mxu0 0
  %689 = vmatpush1.bf16.msra.mxu0 %v499
  %690 = vmatprep.subr.bf16.mxu0 0
  %691 = vmatpush1.bf16.msra.mxu0 %v498
  %692 = vmatprep.subr.bf16.mxu0 0
  %693 = vmatpush2.bf16.msra.mxu0 %v513
  %694 = vmatprep.subr.bf16.mxu0 0
  %695 = vmatpush2.bf16.msra.mxu0 %v512
  %696 = vmatprep.subr.bf16.mxu0 0
  %697 = vmatpush2.bf16.msra.mxu0 %v511
  %698 = vmatprep.subr.bf16.mxu0 0
  %699 = vmatpush2.bf16.msra.mxu0 %v510
  %700 = vmatprep.subr.bf16.mxu0 0
  %701 = vmatpush2.bf16.msra.mxu0 %v509
  %702 = vmatprep.subr.bf16.mxu0 0
  %703 = vmatpush2.bf16.msra.mxu0 %v508
  %704 = vmatprep.subr.bf16.mxu0 0
  %705 = vmatpush2.bf16.msra.mxu0 %v507
  %706 = vmatprep.subr.bf16.mxu0 0
  %707 = vmatpush2.bf16.msra.mxu0 %v506
  %708 = vmatprep.mubr.bf16.mxu0 %v269
  %709 = vmatmul.mubr.bf16.gmra.mxu0 %v268
  %v710 = vpop.f32.mrf.mxu0
  %v711 = vadd.f32 %v614, %v710
  %v712 = vpop.f32.mrf.mxu0
  %v713 = vpop.f32.mrf.mxu0
  %v714 = vadd.f32 %v617, %v713
  %v715 = vpop.f32.mrf.mxu0
  %716 = vmatprep.mubr.bf16.mxu0 %v274
  %717 = vmatmul.mubr.bf16.gmra.mxu0 %v273
  %v718 = vpop.f32.mrf.mxu0
  %v719 = vadd.f32 %v622, %v718
  %v720 = vpop.f32.mrf.mxu0
  %v721 = vpop.f32.mrf.mxu0
  %v722 = vadd.f32 %v625, %v721
  %v723 = vpop.f32.mrf.mxu0
  %724 = vmatprep.mubr.bf16.mxu0 %v279
  %725 = vmatmul.mubr.bf16.gmra.mxu0 %v278
  %v726 = vpop.f32.mrf.mxu0
  %v727 = vadd.f32 %v630, %v726
  %v728 = vpop.f32.mrf.mxu0
  %v729 = vpop.f32.mrf.mxu0
  %v730 = vadd.f32 %v633, %v729
  %v731 = vpop.f32.mrf.mxu0
  %732 = vmatprep.mubr.bf16.mxu0 %v284
  %733 = vmatmul.mubr.bf16.gmra.mxu0 %v283
  %v734 = vpop.f32.mrf.mxu0
  %v735 = vadd.f32 %v638, %v734
  %v736 = vpop.f32.mrf.mxu0
  %v737 = vpop.f32.mrf.mxu0
  %v738 = vadd.f32 %v641, %v737
  %v739 = vpop.f32.mrf.mxu0
  %740 = vmatprep.mubr.bf16.mxu0 %v289
  %741 = vmatmul.mubr.bf16.gmra.mxu0 %v288
  %v742 = vpop.f32.mrf.mxu0
  %v743 = vadd.f32 %v646, %v742
  %v744 = vpop.f32.mrf.mxu0
  %v745 = vpop.f32.mrf.mxu0
  %v746 = vadd.f32 %v649, %v745
  %v747 = vpop.f32.mrf.mxu0
  %748 = vmatprep.mubr.bf16.mxu0 %v294
  %749 = vmatmul.mubr.bf16.gmra.mxu0 %v293
  %v750 = vpop.f32.mrf.mxu0
  %v751 = vadd.f32 %v654, %v750
  %v752 = vpop.f32.mrf.mxu0
  %v753 = vpop.f32.mrf.mxu0
  %v754 = vadd.f32 %v657, %v753
  %v755 = vpop.f32.mrf.mxu0
  %756 = vmatprep.mubr.bf16.mxu0 %v299
  %757 = vmatmul.mubr.bf16.gmra.mxu0 %v298
  %v758 = vpop.f32.mrf.mxu0
  %v759 = vadd.f32 %v662, %v758
  %v760 = vpop.f32.mrf.mxu0
  %v761 = vpop.f32.mrf.mxu0
  %v762 = vadd.f32 %v665, %v761
  %v763 = vpop.f32.mrf.mxu0
  %764 = vmatprep.mubr.bf16.mxu0 %v304
  %765 = vmatmul.mubr.bf16.gmra.mxu0 %v303
  %v766 = vpop.f32.mrf.mxu0
  %v767 = vadd.f32 %v670, %v766
  %v768 = vpop.f32.mrf.mxu0
  %v769 = vpop.f32.mrf.mxu0
  %v770 = vadd.f32 %v673, %v769
  %v771 = vpop.f32.mrf.mxu0
  %772 = vdwg.mxu0
  %773 = vmatprep.subr.bf16.mxu0 0
  %774 = vmatpush1.bf16.msra.mxu0 0
  %775 = vmatprep.subr.bf16.mxu0 0
  %776 = vmatpush1.bf16.msra.mxu0 0
  %777 = vmatprep.subr.bf16.mxu0 0
  %778 = vmatpush1.bf16.msra.mxu0 0
  %779 = vmatprep.subr.bf16.mxu0 0
  %780 = vmatpush1.bf16.msra.mxu0 0
  %781 = vmatprep.subr.bf16.mxu0 0
  %782 = vmatpush1.bf16.msra.mxu0 %v517
  %783 = vmatprep.subr.bf16.mxu0 0
  %784 = vmatpush1.bf16.msra.mxu0 %v516
  %785 = vmatprep.subr.bf16.mxu0 0
  %786 = vmatpush1.bf16.msra.mxu0 %v515
  %787 = vmatprep.subr.bf16.mxu0 0
  %788 = vmatpush1.bf16.msra.mxu0 %v514
  %789 = vmatprep.subr.bf16.mxu0 0
  %790 = vmatpush2.bf16.msra.mxu0 0
  %791 = vmatprep.subr.bf16.mxu0 0
  %792 = vmatpush2.bf16.msra.mxu0 0
  %793 = vmatprep.subr.bf16.mxu0 0
  %794 = vmatpush2.bf16.msra.mxu0 0
  %795 = vmatprep.subr.bf16.mxu0 0
  %796 = vmatpush2.bf16.msra.mxu0 0
  %797 = vmatprep.subr.bf16.mxu0 0
  %798 = vmatpush2.bf16.msra.mxu0 0
  %799 = vmatprep.subr.bf16.mxu0 0
  %800 = vmatpush2.bf16.msra.mxu0 0
  %801 = vmatprep.subr.bf16.mxu0 0
  %802 = vmatpush2.bf16.msra.mxu0 0
  %803 = vmatprep.subr.bf16.mxu0 0
  %804 = vmatpush2.bf16.msra.mxu0 0
  %805 = vmatprep.mubr.bf16.mxu0 0
  %806 = vmatmul.mubr.bf16.gmra.mxu0 %v556
  %v807 = vpop.f32.mrf.mxu0
  %v808 = vadd.f32 %v711, %v807
  %v809 = vpop.f32.mrf.mxu0
  %v810 = vpop.f32.mrf.mxu0
  %v811 = vadd.f32 %v714, %v810
  %v812 = vpop.f32.mrf.mxu0
  %813 = vmatprep.mubr.bf16.mxu0 0
  %814 = vmatmul.mubr.bf16.gmra.mxu0 %v559
  %v815 = vpop.f32.mrf.mxu0
  %v816 = vadd.f32 %v719, %v815
  %v817 = vpop.f32.mrf.mxu0
  %v818 = vpop.f32.mrf.mxu0
  %v819 = vadd.f32 %v722, %v818
  %v820 = vpop.f32.mrf.mxu0
  %821 = vmatprep.mubr.bf16.mxu0 0
  %822 = vmatmul.mubr.bf16.gmra.mxu0 %v562
  %v823 = vpop.f32.mrf.mxu0
  %v824 = vadd.f32 %v727, %v823
  %v825 = vpop.f32.mrf.mxu0
  %v826 = vpop.f32.mrf.mxu0
  %v827 = vadd.f32 %v730, %v826
  %v828 = vpop.f32.mrf.mxu0
  %829 = vmatprep.mubr.bf16.mxu0 0
  %830 = vmatmul.mubr.bf16.gmra.mxu0 %v565
  %v831 = vpop.f32.mrf.mxu0
  %v832 = vadd.f32 %v735, %v831
  %v833 = vpop.f32.mrf.mxu0
  %v834 = vpop.f32.mrf.mxu0
  %v835 = vadd.f32 %v738, %v834
  %v836 = vpop.f32.mrf.mxu0
  %837 = vmatprep.mubr.bf16.mxu0 0
  %838 = vmatmul.mubr.bf16.gmra.mxu0 %v568
  %v839 = vpop.f32.mrf.mxu0
  %v840 = vadd.f32 %v743, %v839
  %v841 = vpop.f32.mrf.mxu0
  %v842 = vpop.f32.mrf.mxu0
  %v843 = vadd.f32 %v746, %v842
  %v844 = vpop.f32.mrf.mxu0
  %845 = vmatprep.mubr.bf16.mxu0 0
  %846 = vmatmul.mubr.bf16.gmra.mxu0 %v571
  %v847 = vpop.f32.mrf.mxu0
  %v848 = vadd.f32 %v751, %v847
  %v849 = vpop.f32.mrf.mxu0
  %v850 = vpop.f32.mrf.mxu0
  %v851 = vadd.f32 %v754, %v850
  %v852 = vpop.f32.mrf.mxu0
  %853 = vmatprep.mubr.bf16.mxu0 0
  %854 = vmatmul.mubr.bf16.gmra.mxu0 %v574
  %v855 = vpop.f32.mrf.mxu0
  %v856 = vadd.f32 %v759, %v855
  %v857 = vpop.f32.mrf.mxu0
  %v858 = vpop.f32.mrf.mxu0
  %v859 = vadd.f32 %v762, %v858
  %v860 = vpop.f32.mrf.mxu0
  %861 = vmatprep.mubr.bf16.mxu0 0
  %862 = vmatmul.mubr.bf16.gmra.mxu0 %v577
  %v863 = vpop.f32.mrf.mxu0
  %v864 = vadd.f32 %v767, %v863
  %v865 = vpop.f32.mrf.mxu0
  %v866 = vpop.f32.mrf.mxu0
  %v867 = vadd.f32 %v770, %v866
  %v868 = vpop.f32.mrf.mxu0
  %869 = vdwg.mxu0
  %v870 = vld [vmem:[%s2] sm:$0x1]
  %v872 = vlaneseq
  %v873 = vshrl.u32 %v872, 7
  %v874 = vsub.s32 0, %v873
  %v875 = vrot.slane %v870, %v874
  %v877 = vmul.f32 %v808, %v875
  %v878 = vmul.f32 %v811, %v875
  %v879 = vmul.f32 %v816, %v875
  %v880 = vmul.f32 %v819, %v875
  %v881 = vmul.f32 %v824, %v875
  %v882 = vmul.f32 %v827, %v875
  %v883 = vmul.f32 %v832, %v875
  %v884 = vmul.f32 %v835, %v875
  %v885 = vmul.f32 %v840, %v875
  %v886 = vmul.f32 %v843, %v875
  %v887 = vmul.f32 %v848, %v875
  %v888 = vmul.f32 %v851, %v875
  %v889 = vmul.f32 %v856, %v875
  %v890 = vmul.f32 %v859, %v875
  %v891 = vmul.f32 %v864, %v875
  %v892 = vmul.f32 %v867, %v875
  %v893 = vld [vmem:[%s3] sm:$0x1]
  %v895 = vlaneseq
  %v896 = vshrl.u32 %v895, 7
  %v897 = vsub.s32 0, %v896
  %v898 = vrot.slane %v893, %v897
  %v900 = vadd.f32 %v877, %v898
  %v901 = vadd.f32 %v878, %v898
  %v902 = vadd.f32 %v879, %v898
  %v903 = vadd.f32 %v880, %v898
  %v904 = vadd.f32 %v881, %v898
  %v905 = vadd.f32 %v882, %v898
  %v906 = vadd.f32 %v883, %v898
  %v907 = vadd.f32 %v884, %v898
  %v908 = vadd.f32 %v885, %v898
  %v909 = vadd.f32 %v886, %v898
  %v910 = vadd.f32 %v887, %v898
  %v911 = vadd.f32 %v888, %v898
  %v912 = vadd.f32 %v889, %v898
  %v913 = vadd.f32 %v890, %v898
  %v914 = vadd.f32 %v891, %v898
  %v915 = vadd.f32 %v892, %v898
  %v916 = vmax.f32 %v900, 0.0
  %v917 = vmax.f32 %v901, 0.0
  %v918 = vmax.f32 %v902, 0.0
  %v919 = vmax.f32 %v903, 0.0
  %v920 = vmax.f32 %v904, 0.0
  %v921 = vmax.f32 %v905, 0.0
  %v922 = vmax.f32 %v906, 0.0
  %v923 = vmax.f32 %v907, 0.0
  %v924 = vmax.f32 %v908, 0.0
  %v925 = vmax.f32 %v909, 0.0
  %v926 = vmax.f32 %v910, 0.0
  %v927 = vmax.f32 %v911, 0.0
  %v928 = vmax.f32 %v912, 0.0
  %v929 = vmax.f32 %v913, 0.0
  %v930 = vmax.f32 %v914, 0.0
  %v931 = vmax.f32 %v915, 0.0
  %932 = vst [vmem:[%s4] sm:$0xff] %v916
  %933 = vst [vmem:[%s4 + $0x8] sm:$0xff] %v917
  %934 = vst [vmem:[%s4 + $0x10] sm:$0xff] %v918
  %935 = vst [vmem:[%s4 + $0x18] sm:$0xff] %v919
  %936 = vst [vmem:[%s4 + $0x20] sm:$0xff] %v920
  %937 = vst [vmem:[%s4 + $0x28] sm:$0xff] %v921
  %938 = vst [vmem:[%s4 + $0x30] sm:$0xff] %v922
  %939 = vst [vmem:[%s4 + $0x38] sm:$0xff] %v923
  %940 = vst [vmem:[%s4 + $0x40] sm:$0xff] %v924
  %941 = vst [vmem:[%s4 + $0x48] sm:$0xff] %v925
  %942 = vst [vmem:[%s4 + $0x50] sm:$0xff] %v926
  %943 = vst [vmem:[%s4 + $0x58] sm:$0xff] %v927
  %944 = vst [vmem:[%s4 + $0x60] sm:$0xff] %v928
  %945 = vst [vmem:[%s4 + $0x68] sm:$0xff] %v929
  %946 = vst [vmem:[%s4 + $0x70] sm:$0xff] %v930
  %947 = vst [vmem:[%s4 + $0x78] sm:$0xff] %v931
  // Predicated region
  $region18: #{feature_extractor_forward.10} parent=0 // pred_check
    _
  $region19: #{feature_extractor_forward.10} parent=0 // pred_check_branch
    %949 = sbr.rel (0) target = $region21
  $region20: #{feature_extractor_forward.10} parent=0 // pred_region
    _
  $region21: #{feature_extractor_forward.10} parent=0 // pred_fallthru
    _
  // Predicated region
  $region22: #{feature_extractor_forward.10} parent=0 // pred_check
    _
  $region23: #{feature_extractor_forward.10} parent=0 // pred_check_branch
    %951 = sbr.rel (0) target = $region25
  $region24: #{feature_extractor_forward.10} parent=0 // pred_region
    _
  $region25: #{feature_extractor_forward.10} parent=0 // pred_fallthru
    _

</llo_original>
